<compile_context>
chip_gen: v7x
topology: tpu7x:2x2x1
jax: 0.10.0
libtpu: 0.0.40
codegen_flags: <defaults>
</compile_context>

<pallas_src>
import functools
import numpy as np
import jax
import jax.numpy as jnp
from jax.experimental import pallas as pl
from jax.experimental.pallas import tpu as pltpu


def _bilinear_matrix(out_size, in_size):
    """1-D interpolation matrix matching PyTorch bilinear, align_corners=False."""
    scale = in_size / out_size
    i = np.arange(out_size, dtype=np.float64)
    src = scale * (i + 0.5) - 0.5
    src = np.maximum(src, 0.0)                       # PyTorch clamps below at 0
    i0 = np.minimum(np.floor(src).astype(np.int64), in_size - 1)
    i1 = np.minimum(i0 + 1, in_size - 1)
    l1 = src - i0
    l0 = 1.0 - l1
    w = np.zeros((out_size, in_size), dtype=np.float32)
    w[np.arange(out_size), i0] += l0.astype(np.float32)
    w[np.arange(out_size), i1] += l1.astype(np.float32)
    return w


def _pick_num_row_tiles(Ho, K, Wo, target_bytes=8 << 20):
    """Number of output-row tiles: per-step out block <= target, tHo % 8 == 0."""
    divs = [r for r in range(1, Ho + 1)
            if Ho % r == 0 and (Ho // r) % 8 == 0]
    if not divs:
        return 1
    for r in divs:
        if r >= 2 and K * (Ho // r) * Wo * 4 <= target_bytes:
            return r
    return divs[-1]


def _segment_head_kernel(x_ref, w1c_ref, shift_ref, w2_ref, b2_ref,
                         wh_ref, wwT_ref, o_ref, xcat_ref, u1_ref,
                         *, H, W, Wc, K):
    # x_ref:     (1, H, W, Cin)      one image, NHWC (unpadded)
    # w1c_ref:   (3, 3*Cin, Cmid)    3x3 conv weight, BN scale folded, kx-concat
    # shift_ref: (1, Cmid)           folded BatchNorm shift (eval), f32
    # w2_ref:    (Cmid, K)           1x1 conv weight
    # b2_ref:    (1, K)              1x1 conv bias, f32
    # wh_ref:    (tHo, H)            row-interp matrix rows for this output tile
    # wwT_ref:   (Wc, Wo)            column-interp matrix (zero rows for pad cols)
    # o_ref:     (1, K, tHo, Wo)     output tile, NCHW
    # xcat_ref:  (H+2, Wc, 3*Cin)    VMEM scratch: zero-halo, kx-tap-concatenated
    # u1_ref:    (K*H, Wo)           VMEM scratch: column-upsampled logits (K-major)
    cd = wwT_ref.dtype
    cin = x_ref.shape[-1]
    t = pl.program_id(1)

    @pl.when(t == 0)
    def _():
        # ---- build the kx-tap-concatenated, zero-halo image in VMEM (once) ----
        xcat_ref[...] = jnp.zeros_like(xcat_ref)
        img = x_ref[0]                                             # (H, W, Cin)
        # S_kx[i, w, :] = x_pad[i, w + kx, :]  (x_pad = image with 1px zero halo)
        xcat_ref[1:H + 1, 1:W, 0:cin] = img[:, :W - 1, :]          # kx = 0
        xcat_ref[1:H + 1, 0:W, cin:2 * cin] = img                  # kx = 1
        xcat_ref[1:H + 1, 0:W - 1, 2 * cin:3 * cin] = img[:, 1:, :]  # kx = 2

        # ---- 3x3 conv: 3 accumulating matmuls over row-offset views ----
        xflat = xcat_ref[...].reshape((H + 2) * Wc, 3 * cin)
        acc = jnp.dot(xflat[0:H * Wc], w1c_ref[0],
                      preferred_element_type=jnp.float32)
        acc = acc + jnp.dot(xflat[Wc:Wc + H * Wc], w1c_ref[1],
                            preferred_element_type=jnp.float32)
        acc = acc + jnp.dot(xflat[2 * Wc:2 * Wc + H * Wc], w1c_ref[2],
                            preferred_element_type=jnp.float32)

        # ---- folded BatchNorm shift + ReLU (f32 elementwise) ----
        y = jnp.maximum(acc + shift_ref[...], 0.0)                 # (H*Wc, Cmid)

        # ---- 1x1 conv with bias -> logits (H*Wc, K), f32 accumulation ----
        logits = jnp.dot(y.astype(cd), w2_ref[...],
                         preferred_element_type=jnp.float32) + b2_ref[...]

        # ---- relayout ONCE to K-major (K*H, Wc); cast hoisted out of the loop --
        logits3 = logits.astype(cd).reshape(H, Wc, K)
        lkm = jnp.concatenate([logits3[:, :, k] for k in range(K)], axis=0)

        # ---- column upsample: one big matmul; zero wwT rows kill pad columns ---
        u1_ref[...] = jnp.dot(lkm, wwT_ref[...],
                              preferred_element_type=jnp.float32
                              ).astype(u1_ref.dtype)

    # ---- row upsample for this output-row tile: K large (tHo,H)@(H,Wo) dots ----
    wh_t = wh_ref[...]                                             # (tHo, H)
    for k in range(K):
        band = jnp.dot(wh_t, u1_ref[k * H:(k + 1) * H, :],
                       preferred_element_type=jnp.float32)         # (tHo, Wo)
        o_ref[0, k, :, :] = band.astype(o_ref.dtype)


def segment_head_forward(x_nchw, params, up_factor,
                         compute_dtype=jnp.bfloat16,
                         num_row_tiles=None,
                         out_dtype=jnp.float32):
    N, Cin, H, W = x_nchw.shape
    w1 = params['w1']                     # (3, 3, Cin, Cmid)  HWIO
    bn_scale = params['bn_scale']         # (Cmid,)
    bn_shift = params['bn_shift']         # (Cmid,)
    w2 = params['w2']                     # (Cmid, K)
    b2 = params['b2']                     # (K,)
    Cmid = w1.shape[-1]
    K = w2.shape[-1]
    Ho, Wo = H * up_factor, W * up_factor
    Wc = ((W + 7) // 8) * 8               # conv computed at this padded width
    cd = compute_dtype

    # Fold eval-mode BN scale into the 3x3 weight (exact), kx-concat layout.
    w1f = w1 * bn_scale[None, None, None, :]
    w1cat = w1f.reshape(3, 3 * Cin, Cmid).astype(cd)      # (ky, kx*Cin+cin, cmid)

    # NHWC activation; halo / width padding happens inside the kernel.
    x_nhwc = jnp.transpose(x_nchw, (0, 2, 3, 1)).astype(cd)

    # Separable bilinear interpolation matrices.
    wh = jnp.asarray(_bilinear_matrix(Ho, H), cd)                  # (Ho, H)
    wwT_np = np.zeros((Wc, Wo), np.float32)
    wwT_np[:W, :] = _bilinear_matrix(Wo, W).T          # zero rows for pad columns
    wwT = jnp.asarray(wwT_np, cd)                                  # (Wc, Wo)

    # Output-row tiling (second, "arbitrary", grid axis).
    if num_row_tiles is None:
        num_row_tiles = _pick_num_row_tiles(Ho, K, Wo)
    assert Ho % num_row_tiles == 0
    tHo = Ho // num_row_tiles
    assert tHo % 8 == 0 or tHo == Ho

    it = jnp.dtype(cd).itemsize
    ot = jnp.dtype(out_dtype).itemsize

    flops = int(N * (2 * 9 * H * Wc * Cin * Cmid          # 3x3 conv
                     + 2 * H * Wc * Cmid * K              # 1x1 conv
                     + 2 * K * H * Wc * Wo                # column upsample
                     + 2 * K * Ho * H * Wo))              # row upsample
    bytes_accessed = int(N * H * W * Cin * it
                         + (9 * Cin * Cmid + Cmid * K + Wc * Wo + Ho * H) * it
                         + (Cmid + K) * 4
                         + N * K * Ho * Wo * ot)

    # Scoped-VMEM budget from the actual footprint, clamped to the chip capacity.
    try:
        vmem_cap = int(pltpu.get_tpu_info().vmem_capacity_bytes)
    except Exception:
        vmem_cap = 64 * 1024 * 1024
    vmem_est = int(
        2 * H * W * Cin * it                               # x block (2-buffered)
        + 2 * K * tHo * Wo * ot                            # out block (2-buffered)
        + 2 * tHo * H * it                                 # wh block (2-buffered)
        + (9 * Cin * Cmid + Cmid * K + Wc * Wo) * it + (Cmid + K) * 4   # weights
        + ((H + 2) * Wc * 3 * Cin + K * H * Wo) * it       # scratch buffers
        + (2 * H * Wc * Cmid + 2 * H * Wc * K + K * H * Wo) * 4)  # live temps
    vmem_limit = int(min(max(32 * 1024 * 1024, (vmem_est * 5) // 4),
                         (vmem_cap * 3) // 4))

    kernel = functools.partial(_segment_head_kernel, H=H, W=W, Wc=Wc, K=K)
    out = pl.pallas_call(
        kernel,
        out_shape=jax.ShapeDtypeStruct((N, K, Ho, Wo), out_dtype),
        grid=(N, num_row_tiles),
        in_specs=[
            pl.BlockSpec((1, H, W, Cin), lambda n, t: (n, 0, 0, 0)),     # x
            pl.BlockSpec((3, 3 * Cin, Cmid), lambda n, t: (0, 0, 0)),    # w1cat
            pl.BlockSpec((1, Cmid), lambda n, t: (0, 0)),                # bn shift
            pl.BlockSpec((Cmid, K), lambda n, t: (0, 0)),                # w2
            pl.BlockSpec((1, K), lambda n, t: (0, 0)),                   # b2
            pl.BlockSpec((tHo, H), lambda n, t: (t, 0)),                 # wh rows
            pl.BlockSpec((Wc, Wo), lambda n, t: (0, 0)),                 # wwT
        ],
        out_specs=pl.BlockSpec((1, K, tHo, Wo), lambda n, t: (n, 0, t, 0)),
        scratch_shapes=[
            pltpu.VMEM((H + 2, Wc, 3 * Cin), cd),   # halo'd, kx-concat image
            pltpu.VMEM((K * H, Wo), cd),            # column-upsampled logits
        ],
        compiler_params=pltpu.CompilerParams(
            dimension_semantics=("parallel", "arbitrary"),
            vmem_limit_bytes=vmem_limit),
        cost_estimate=pl.CostEstimate(flops=flops, transcendentals=0,
                                      bytes_accessed=bytes_accessed),
    )(x_nhwc, w1cat,
      bn_shift.reshape(1, Cmid).astype(jnp.float32),
      w2.astype(cd),
      b2.reshape(1, K).astype(jnp.float32),
      wh, wwT)
    return out


def _reference(x_nchw, params, up_factor):
    """Plain-JAX reference (same math, used only as a sanity check)."""
    N, Cin, H, W = x_nchw.shape
    Ho, Wo = H * up_factor, W * up_factor
    x = jnp.transpose(x_nchw, (0, 2, 3, 1))
    y = jax.lax.conv_general_dilated(
        x, params['w1'], (1, 1), 'SAME',
        dimension_numbers=('NHWC', 'HWIO', 'NHWC'))
    y = jnp.maximum(y * params['bn_scale'].reshape(1, 1, 1, -1)
                    + params['bn_shift'].reshape(1, 1, 1, -1), 0.0)
    logits = jnp.einsum('nhwd,dk->nhwk', y, params['w2']) + params['b2']
    logits_nchw = jnp.transpose(logits, (0, 3, 1, 2))
    wh = jnp.asarray(_bilinear_matrix(Ho, H))
    ww = jnp.asarray(_bilinear_matrix(Wo, W))
    up = jnp.einsum('oh,nkhw->nkow', wh, logits_nchw)
    up = jnp.einsum('pw,nkow->nkop', ww, up)
    return up


def init_params(key, in_chan, mid_chan, n_classes):
    k1, k2 = jax.random.split(key)
    # kaiming_normal_(a=1): gain = sqrt(2/(1+1)) = 1, std = 1/sqrt(fan_in)
    std1 = 1.0 / np.sqrt(in_chan * 3 * 3)
    w1_oihw = std1 * jax.random.normal(k1, (mid_chan, in_chan, 3, 3), jnp.float32)
    w1 = jnp.transpose(w1_oihw, (2, 3, 1, 0))                 # HWIO
    std2 = 1.0 / np.sqrt(mid_chan * 1 * 1)
    w2_oikk = std2 * jax.random.normal(k2, (n_classes, mid_chan, 1, 1), jnp.float32)
    w2 = jnp.transpose(w2_oikk[:, :, 0, 0], (1, 0))           # (Cmid, K)
    b2 = jnp.zeros((n_classes,), jnp.float32)                 # constant_(0)
    # BatchNorm2d defaults (eval mode): gamma=1, beta=0, mean=0, var=1, eps=1e-5
    eps = 1e-5
    gamma = jnp.ones((mid_chan,), jnp.float32)
    beta = jnp.zeros((mid_chan,), jnp.float32)
    running_mean = jnp.zeros((mid_chan,), jnp.float32)
    running_var = jnp.ones((mid_chan,), jnp.float32)
    bn_scale = gamma / jnp.sqrt(running_var + eps)
    bn_shift = beta - running_mean * bn_scale
    return dict(w1=w1, bn_scale=bn_scale, bn_shift=bn_shift, w2=w2, b2=b2)


if __name__ == "__main__":
    # small shapes: batch=2, in_chan=4, mid_chan=32, n_classes=4, 16x16 spatial,
    # up_factor=4 -> output (2, 4, 64, 64); auto row-tiling picks 2 output tiles.
    N, Cin, Cmid, K, H, W, UP = 2, 4, 32, 4, 16, 16, 4
    key = jax.random.PRNGKey(0)
    kx_, kp = jax.random.split(key)
    x = jax.random.normal(kx_, (N, Cin, H, W), jnp.float32)
    params = init_params(kp, Cin, Cmid, K)

    ref = jax.block_until_ready(_reference(x, params, UP))

    # f32 MXU path (near-exact check).
    out = jax.block_until_ready(
        segment_head_forward(x, params, UP, compute_dtype=jnp.float32))
    assert out.shape == (N, K, H * UP, W * UP), out.shape
    np.testing.assert_allclose(np.asarray(out), np.asarray(ref),
                               rtol=1e-4, atol=1e-4)

    # default bf16 MXU-operand path (f32 accumulation), looser tolerance.
    out_bf16 = jax.block_until_ready(segment_head_forward(x, params, UP))
    np.testing.assert_allclose(np.asarray(out_bf16), np.asarray(ref),
                               rtol=5e-2, atol=5e-2)

    print("KERNEL_OK")
</pallas_src>

<mosaic_0001>
module attributes {stable_mosaic.version = 11 : i64} {
  func.func @_segment_head_kernel(%arg0: i32, %arg1: i32, %arg2: memref<1x16x16x4xf32, #tpu.memory_space<vmem>>, %arg3: memref<3x12x32xf32, #tpu.memory_space<vmem>>, %arg4: memref<1x32xf32, #tpu.memory_space<vmem>>, %arg5: memref<32x4xf32, #tpu.memory_space<vmem>>, %arg6: memref<1x4xf32, #tpu.memory_space<vmem>>, %arg7: memref<32x16xf32, #tpu.memory_space<vmem>>, %arg8: memref<16x64xf32, #tpu.memory_space<vmem>>, %arg9: memref<1x4x32x64xf32, #tpu.memory_space<vmem>>, %arg10: memref<18x16x12xf32, #tpu.memory_space<vmem>>, %arg11: memref<64x64xf32, #tpu.memory_space<vmem>>) attributes {dimension_semantics = [#tpu.dimension_semantics<parallel>, #tpu.dimension_semantics<arbitrary>], iteration_bounds = array<i64: 2, 2>, scalar_prefetch = 0 : i64, scratch_operands = 2 : i64, tpu.core_type = #tpu.core_type<tc>, window_params = [{transform_indices = @transform_0, window_bounds = array<i64: 1, 16, 16, 4>}, {pipeline_mode = #tpu.pipeline_mode<synchronous>, transform_indices = @transform_1, window_bounds = array<i64: 3, 12, 32>}, {pipeline_mode = #tpu.pipeline_mode<synchronous>, transform_indices = @transform_2, window_bounds = array<i64: 1, 32>}, {pipeline_mode = #tpu.pipeline_mode<synchronous>, transform_indices = @transform_3, window_bounds = array<i64: 32, 4>}, {pipeline_mode = #tpu.pipeline_mode<synchronous>, transform_indices = @transform_4, window_bounds = array<i64: 1, 4>}, {transform_indices = @transform_5, window_bounds = array<i64: 32, 16>}, {pipeline_mode = #tpu.pipeline_mode<synchronous>, transform_indices = @transform_6, window_bounds = array<i64: 16, 64>}, {transform_indices = @transform_7, window_bounds = array<i64: 1, 4, 32, 64>}]} {
    %c0_i32 = arith.constant 0 : i32
    %0 = arith.cmpi eq, %arg1, %c0_i32 : i32
    %1 = arith.extui %0 : i1 to i32
    %c0_i32_0 = arith.constant 0 : i32
    %2 = arith.cmpi ne, %1, %c0_i32_0 : i32
    scf.if %2 {
      %cst_23 = arith.constant 0.000000e+00 : f32
      %24 = vector.broadcast %cst_23 : f32 to vector<18x16x12xf32>
      %c0_24 = arith.constant 0 : index
      %c0_25 = arith.constant 0 : index
      %c0_26 = arith.constant 0 : index
      %25 = vector.load %arg10[%c0_24, %c0_25, %c0_26] : memref<18x16x12xf32, #tpu.memory_space<vmem>>, vector<18x16x12xf32>
      tpu.vector_store %arg10[%c0_24, %c0_25, %c0_26], %24 {strides = array<i32>} : memref<18x16x12xf32, #tpu.memory_space<vmem>>, vector<18x16x12xf32>,
      %c0_27 = arith.constant 0 : index
      %c0_28 = arith.constant 0 : index
      %c0_29 = arith.constant 0 : index
      %c0_30 = arith.constant 0 : index
      %26 = vector.load %arg2[%c0_27, %c0_28, %c0_29, %c0_30] : memref<1x16x16x4xf32, #tpu.memory_space<vmem>>, vector<1x16x16x4xf32>
      %27 = vector.shape_cast %26 : vector<1x16x16x4xf32> to vector<16x16x4xf32>
      %28 = vector.extract_strided_slice %27 {offsets = [0, 0, 0], sizes = [16, 15, 4], strides = [1, 1, 1]} : vector<16x16x4xf32> to vector<16x15x4xf32>
      %c1_31 = arith.constant 1 : index
      %c1_32 = arith.constant 1 : index
      %c0_33 = arith.constant 0 : index
      %29 = vector.load %arg10[%c1_31, %c1_32, %c0_33] : memref<18x16x12xf32, #tpu.memory_space<vmem>>, vector<16x15x4xf32>
      tpu.vector_store %arg10[%c1_31, %c1_32, %c0_33], %28 {strides = array<i32>} : memref<18x16x12xf32, #tpu.memory_space<vmem>>, vector<16x15x4xf32>,
      %c1_34 = arith.constant 1 : index
      %c0_35 = arith.constant 0 : index
      %c4 = arith.constant 4 : index
      %30 = vector.load %arg10[%c1_34, %c0_35, %c4] : memref<18x16x12xf32, #tpu.memory_space<vmem>>, vector<16x16x4xf32>
      tpu.vector_store %arg10[%c1_34, %c0_35, %c4], %27 {strides = array<i32>} : memref<18x16x12xf32, #tpu.memory_space<vmem>>, vector<16x16x4xf32>,
      %31 = vector.extract_strided_slice %27 {offsets = [0, 1, 0], sizes = [16, 15, 4], strides = [1, 1, 1]} : vector<16x16x4xf32> to vector<16x15x4xf32>
      %c1_36 = arith.constant 1 : index
      %c0_37 = arith.constant 0 : index
      %c8 = arith.constant 8 : index
      %32 = vector.load %arg10[%c1_36, %c0_37, %c8] : memref<18x16x12xf32, #tpu.memory_space<vmem>>, vector<16x15x4xf32>
      tpu.vector_store %arg10[%c1_36, %c0_37, %c8], %31 {strides = array<i32>} : memref<18x16x12xf32, #tpu.memory_space<vmem>>, vector<16x15x4xf32>,
      %c0_38 = arith.constant 0 : index
      %c0_39 = arith.constant 0 : index
      %c0_40 = arith.constant 0 : index
      %33 = vector.load %arg10[%c0_38, %c0_39, %c0_40] : memref<18x16x12xf32, #tpu.memory_space<vmem>>, vector<18x16x12xf32>
      %34 = vector.shape_cast %33 : vector<18x16x12xf32> to vector<288x12xf32>
      %35 = vector.extract_strided_slice %34 {offsets = [0, 0], sizes = [256, 12], strides = [1, 1]} : vector<288x12xf32> to vector<256x12xf32>
      %c0_41 = arith.constant 0 : index
      %c0_42 = arith.constant 0 : index
      %c0_43 = arith.constant 0 : index
      %36 = vector.load %arg3[%c0_41, %c0_42, %c0_43] : memref<3x12x32xf32, #tpu.memory_space<vmem>>, vector<1x12x32xf32>
      %37 = vector.shape_cast %36 : vector<1x12x32xf32> to vector<12x32xf32>
      %cst_44 = arith.constant dense<0.000000e+00> : vector<256x32xf32>
      %38 = tpu.matmul %35, %37, %cst_44 {dimension_numbers = #tpu.dot_dimension_numbers<[1], [0], [0], [1], [0, 0, 1, 1], [], []>} : vector<256x12xf32>, vector<12x32xf32>, vector<256x32xf32> -> vector<256x32xf32>
      %39 = vector.extract_strided_slice %34 {offsets = [16, 0], sizes = [256, 12], strides = [1, 1]} : vector<288x12xf32> to vector<256x12xf32>
      %c1_45 = arith.constant 1 : index
      %c0_46 = arith.constant 0 : index
      %c0_47 = arith.constant 0 : index
      %40 = vector.load %arg3[%c1_45, %c0_46, %c0_47] : memref<3x12x32xf32, #tpu.memory_space<vmem>>, vector<1x12x32xf32>
      %41 = vector.shape_cast %40 : vector<1x12x32xf32> to vector<12x32xf32>
      %cst_48 = arith.constant dense<0.000000e+00> : vector<256x32xf32>
      %42 = tpu.matmul %39, %41, %cst_48 {dimension_numbers = #tpu.dot_dimension_numbers<[1], [0], [0], [1], [0, 0, 1, 1], [], []>} : vector<256x12xf32>, vector<12x32xf32>, vector<256x32xf32> -> vector<256x32xf32>
      %43 = arith.addf %38, %42 : vector<256x32xf32>
      %44 = vector.extract_strided_slice %34 {offsets = [32, 0], sizes = [256, 12], strides = [1, 1]} : vector<288x12xf32> to vector<256x12xf32>
      %c2_49 = arith.constant 2 : index
      %c0_50 = arith.constant 0 : index
      %c0_51 = arith.constant 0 : index
      %45 = vector.load %arg3[%c2_49, %c0_50, %c0_51] : memref<3x12x32xf32, #tpu.memory_space<vmem>>, vector<1x12x32xf32>
      %46 = vector.shape_cast %45 : vector<1x12x32xf32> to vector<12x32xf32>
      %cst_52 = arith.constant dense<0.000000e+00> : vector<256x32xf32>
      %47 = tpu.matmul %44, %46, %cst_52 {dimension_numbers = #tpu.dot_dimension_numbers<[1], [0], [0], [1], [0, 0, 1, 1], [], []>} : vector<256x12xf32>, vector<12x32xf32>, vector<256x32xf32> -> vector<256x32xf32>
      %48 = arith.addf %43, %47 : vector<256x32xf32>
      %c0_53 = arith.constant 0 : index
      %c0_54 = arith.constant 0 : index
      %49 = vector.load %arg4[%c0_53, %c0_54] : memref<1x32xf32, #tpu.memory_space<vmem>>, vector<1x32xf32>
      %50 = vector.broadcast %49 : vector<1x32xf32> to vector<256x32xf32>
      %51 = arith.addf %48, %50 : vector<256x32xf32>
      %cst_55 = arith.constant 0.000000e+00 : f32
      %52 = vector.broadcast %cst_55 : f32 to vector<256x32xf32>
      %53 = arith.maximumf %51, %52 : vector<256x32xf32>
      %c0_56 = arith.constant 0 : index
      %c0_57 = arith.constant 0 : index
      %54 = vector.load %arg5[%c0_56, %c0_57] : memref<32x4xf32, #tpu.memory_space<vmem>>, vector<32x4xf32>
      %cst_58 = arith.constant dense<0.000000e+00> : vector<256x4xf32>
      %55 = tpu.matmul %53, %54, %cst_58 {dimension_numbers = #tpu.dot_dimension_numbers<[1], [0], [0], [1], [0, 0, 1, 1], [], []>} : vector<256x32xf32>, vector<32x4xf32>, vector<256x4xf32> -> vector<256x4xf32>
      %c0_59 = arith.constant 0 : index
      %c0_60 = arith.constant 0 : index
      %56 = vector.load %arg6[%c0_59, %c0_60] : memref<1x4xf32, #tpu.memory_space<vmem>>, vector<1x4xf32>
      %57 = vector.broadcast %56 : vector<1x4xf32> to vector<256x4xf32>
      %58 = arith.addf %55, %57 : vector<256x4xf32>
      %59 = vector.shape_cast %58 : vector<256x4xf32> to vector<16x16x4xf32>
      %60 = vector.extract_strided_slice %59 {offsets = [0, 0, 0], sizes = [16, 16, 1], strides = [1, 1, 1]} : vector<16x16x4xf32> to vector<16x16x1xf32>
      %61 = vector.shape_cast %60 : vector<16x16x1xf32> to vector<16x16xf32>
      %62 = vector.extract_strided_slice %59 {offsets = [0, 0, 1], sizes = [16, 16, 1], strides = [1, 1, 1]} : vector<16x16x4xf32> to vector<16x16x1xf32>
      %63 = vector.shape_cast %62 : vector<16x16x1xf32> to vector<16x16xf32>
      %64 = vector.extract_strided_slice %59 {offsets = [0, 0, 2], sizes = [16, 16, 1], strides = [1, 1, 1]} : vector<16x16x4xf32> to vector<16x16x1xf32>
      %65 = vector.shape_cast %64 : vector<16x16x1xf32> to vector<16x16xf32>
      %66 = vector.extract_strided_slice %59 {offsets = [0, 0, 3], sizes = [16, 16, 1], strides = [1, 1, 1]} : vector<16x16x4xf32> to vector<16x16x1xf32>
      %67 = vector.shape_cast %66 : vector<16x16x1xf32> to vector<16x16xf32>
      %68 = tpu.concatenate %61, %63, %65, %67 in 0 : vector<16x16xf32>, vector<16x16xf32>, vector<16x16xf32>, vector<16x16xf32> -> vector<64x16xf32>
      %c0_61 = arith.constant 0 : index
      %c0_62 = arith.constant 0 : index
      %69 = vector.load %arg8[%c0_61, %c0_62] : memref<16x64xf32, #tpu.memory_space<vmem>>, vector<16x64xf32>
      %cst_63 = arith.constant dense<0.000000e+00> : vector<64x64xf32>
      %70 = tpu.matmul %68, %69, %cst_63 {dimension_numbers = #tpu.dot_dimension_numbers<[1], [0], [0], [1], [0, 0, 1, 1], [], []>} : vector<64x16xf32>, vector<16x64xf32>, vector<64x64xf32> -> vector<64x64xf32>
      %c0_64 = arith.constant 0 : index
      %c0_65 = arith.constant 0 : index
      %71 = vector.load %arg11[%c0_64, %c0_65] : memref<64x64xf32, #tpu.memory_space<vmem>>, vector<64x64xf32>
      tpu.vector_store %arg11[%c0_64, %c0_65], %70 {strides = array<i32>} : memref<64x64xf32, #tpu.memory_space<vmem>>, vector<64x64xf32>,
    } else {
    }
    %c0 = arith.constant 0 : index
    %c0_1 = arith.constant 0 : index
    %3 = vector.load %arg7[%c0, %c0_1] : memref<32x16xf32, #tpu.memory_space<vmem>>, vector<32x16xf32>
    %c0_2 = arith.constant 0 : index
    %c0_3 = arith.constant 0 : index
    %4 = vector.load %arg11[%c0_2, %c0_3] : memref<64x64xf32, #tpu.memory_space<vmem>>, vector<16x64xf32>
    %cst = arith.constant dense<0.000000e+00> : vector<32x64xf32>
    %5 = tpu.matmul %3, %4, %cst {dimension_numbers = #tpu.dot_dimension_numbers<[1], [0], [0], [1], [0, 0, 1, 1], [], []>} : vector<32x16xf32>, vector<16x64xf32>, vector<32x64xf32> -> vector<32x64xf32>
    %c0_4 = arith.constant 0 : index
    %c0_5 = arith.constant 0 : index
    %c0_6 = arith.constant 0 : index
    %c0_7 = arith.constant 0 : index
    %6 = vector.load %arg9[%c0_4, %c0_5, %c0_6, %c0_7] : memref<1x4x32x64xf32, #tpu.memory_space<vmem>>, vector<1x1x32x64xf32>
    %7 = vector.shape_cast %6 : vector<1x1x32x64xf32> to vector<32x64xf32>
    %8 = vector.shape_cast %5 : vector<32x64xf32> to vector<1x1x32x64xf32>
    tpu.vector_store %arg9[%c0_4, %c0_5, %c0_6, %c0_7], %8 {strides = array<i32>} : memref<1x4x32x64xf32, #tpu.memory_space<vmem>>, vector<1x1x32x64xf32>,
    %c16 = arith.constant 16 : index
    %c0_8 = arith.constant 0 : index
    %9 = vector.load %arg11[%c16, %c0_8] : memref<64x64xf32, #tpu.memory_space<vmem>>, vector<16x64xf32>
    %cst_9 = arith.constant dense<0.000000e+00> : vector<32x64xf32>
    %10 = tpu.matmul %3, %9, %cst_9 {dimension_numbers = #tpu.dot_dimension_numbers<[1], [0], [0], [1], [0, 0, 1, 1], [], []>} : vector<32x16xf32>, vector<16x64xf32>, vector<32x64xf32> -> vector<32x64xf32>
    %c0_10 = arith.constant 0 : index
    %c1 = arith.constant 1 : index
    %c0_11 = arith.constant 0 : index
    %c0_12 = arith.constant 0 : index
    %11 = vector.load %arg9[%c0_10, %c1, %c0_11, %c0_12] : memref<1x4x32x64xf32, #tpu.memory_space<vmem>>, vector<1x1x32x64xf32>
    %12 = vector.shape_cast %11 : vector<1x1x32x64xf32> to vector<32x64xf32>
    %13 = vector.shape_cast %10 : vector<32x64xf32> to vector<1x1x32x64xf32>
    tpu.vector_store %arg9[%c0_10, %c1, %c0_11, %c0_12], %13 {strides = array<i32>} : memref<1x4x32x64xf32, #tpu.memory_space<vmem>>, vector<1x1x32x64xf32>,
    %c32 = arith.constant 32 : index
    %c0_13 = arith.constant 0 : index
    %14 = vector.load %arg11[%c32, %c0_13] : memref<64x64xf32, #tpu.memory_space<vmem>>, vector<16x64xf32>
    %cst_14 = arith.constant dense<0.000000e+00> : vector<32x64xf32>
    %15 = tpu.matmul %3, %14, %cst_14 {dimension_numbers = #tpu.dot_dimension_numbers<[1], [0], [0], [1], [0, 0, 1, 1], [], []>} : vector<32x16xf32>, vector<16x64xf32>, vector<32x64xf32> -> vector<32x64xf32>
    %c0_15 = arith.constant 0 : index
    %c2 = arith.constant 2 : index
    %c0_16 = arith.constant 0 : index
    %c0_17 = arith.constant 0 : index
    %16 = vector.load %arg9[%c0_15, %c2, %c0_16, %c0_17] : memref<1x4x32x64xf32, #tpu.memory_space<vmem>>, vector<1x1x32x64xf32>
    %17 = vector.shape_cast %16 : vector<1x1x32x64xf32> to vector<32x64xf32>
    %18 = vector.shape_cast %15 : vector<32x64xf32> to vector<1x1x32x64xf32>
    tpu.vector_store %arg9[%c0_15, %c2, %c0_16, %c0_17], %18 {strides = array<i32>} : memref<1x4x32x64xf32, #tpu.memory_space<vmem>>, vector<1x1x32x64xf32>,
    %c48 = arith.constant 48 : index
    %c0_18 = arith.constant 0 : index
    %19 = vector.load %arg11[%c48, %c0_18] : memref<64x64xf32, #tpu.memory_space<vmem>>, vector<16x64xf32>
    %cst_19 = arith.constant dense<0.000000e+00> : vector<32x64xf32>
    %20 = tpu.matmul %3, %19, %cst_19 {dimension_numbers = #tpu.dot_dimension_numbers<[1], [0], [0], [1], [0, 0, 1, 1], [], []>} : vector<32x16xf32>, vector<16x64xf32>, vector<32x64xf32> -> vector<32x64xf32>
    %c0_20 = arith.constant 0 : index
    %c3 = arith.constant 3 : index
    %c0_21 = arith.constant 0 : index
    %c0_22 = arith.constant 0 : index
    %21 = vector.load %arg9[%c0_20, %c3, %c0_21, %c0_22] : memref<1x4x32x64xf32, #tpu.memory_space<vmem>>, vector<1x1x32x64xf32>
    %22 = vector.shape_cast %21 : vector<1x1x32x64xf32> to vector<32x64xf32>
    %23 = vector.shape_cast %20 : vector<32x64xf32> to vector<1x1x32x64xf32>
    tpu.vector_store %arg9[%c0_20, %c3, %c0_21, %c0_22], %23 {strides = array<i32>} : memref<1x4x32x64xf32, #tpu.memory_space<vmem>>, vector<1x1x32x64xf32>,
    return
  }
  func.func @transform_0(%arg0: i32, %arg1: i32) -> (i32, i32, i32, i32) {
    %c0_i32 = arith.constant 0 : i32
    %c0_i32_0 = arith.constant 0 : i32
    %c0_i32_1 = arith.constant 0 : i32
    %c0_i32_2 = arith.constant 0 : i32
    return %arg0, %c0_i32, %c0_i32_0, %c0_i32_1 : i32, i32, i32, i32
  }
  func.func @transform_1(%arg0: i32, %arg1: i32) -> (i32, i32, i32) {
    %c0_i32 = arith.constant 0 : i32
    %c0_i32_0 = arith.constant 0 : i32
    %c0_i32_1 = arith.constant 0 : i32
    %c0_i32_2 = arith.constant 0 : i32
    return %c0_i32, %c0_i32_0, %c0_i32_1 : i32, i32, i32
  }
  func.func @transform_2(%arg0: i32, %arg1: i32) -> (i32, i32) {
    %c0_i32 = arith.constant 0 : i32
    %c0_i32_0 = arith.constant 0 : i32
    %c0_i32_1 = arith.constant 0 : i32
    return %c0_i32, %c0_i32_0 : i32, i32
  }
  func.func @transform_3(%arg0: i32, %arg1: i32) -> (i32, i32) {
    %c0_i32 = arith.constant 0 : i32
    %c0_i32_0 = arith.constant 0 : i32
    %c0_i32_1 = arith.constant 0 : i32
    return %c0_i32, %c0_i32_0 : i32, i32
  }
  func.func @transform_4(%arg0: i32, %arg1: i32) -> (i32, i32) {
    %c0_i32 = arith.constant 0 : i32
    %c0_i32_0 = arith.constant 0 : i32
    %c0_i32_1 = arith.constant 0 : i32
    return %c0_i32, %c0_i32_0 : i32, i32
  }
  func.func @transform_5(%arg0: i32, %arg1: i32) -> (i32, i32) {
    %c0_i32 = arith.constant 0 : i32
    %c0_i32_0 = arith.constant 0 : i32
    return %arg1, %c0_i32 : i32, i32
  }
  func.func @transform_6(%arg0: i32, %arg1: i32) -> (i32, i32) {
    %c0_i32 = arith.constant 0 : i32
    %c0_i32_0 = arith.constant 0 : i32
    %c0_i32_1 = arith.constant 0 : i32
    return %c0_i32, %c0_i32_0 : i32, i32
  }
  func.func @transform_7(%arg0: i32, %arg1: i32) -> (i32, i32, i32, i32) {
    %c0_i32 = arith.constant 0 : i32
    %c0_i32_0 = arith.constant 0 : i32
    %c0_i32_1 = arith.constant 0 : i32
    return %arg0, %c0_i32, %arg1, %c0_i32_0 : i32, i32, i32, i32
  }
}

</mosaic_0001>

<llo_original>
// kernel: tpu_custom_call.1
$region0: #{tpu_custom_call.1}
  #allocation0 [shape = 'u32[]', space=smem, size = 0x4, offset = 0x4, fixed_abs, tag = 'smem constant byte address 0x4 - core index']
  #allocation1 [shape = 'u32[144,128]{1,0:T(1,128)}', space=vmem, size = 0x12000, scoped, tag = 'internal scratch']
  #allocation2 [shape = 'f32[18,16,12]{2,1,0:T(8,128)}', space=vmem, size = 0x24000, scoped, tag = 'scratch operand']
  #allocation3 [shape = 'f32[64,64]{1,0:T(8,128)}', space=vmem, size = 0x8000, scoped, tag = 'scratch operand']
  #allocation6 [shape = 's32[]', space=sflag, size = 0x4, offset = 0, fixed_abs, tag = 'sflag constant byte address 0x0 - dummy sync flag']
  %s0 = inlined_call_operand.vmem [shape: f32[2,16,16,4], index: 0, kind: input, shape index: {}]
  %s1 = inlined_call_operand.vmem [shape: f32[3,12,32], index: 1, kind: input, shape index: {}]
  %s2 = inlined_call_operand.vmem [shape: f32[1,32], index: 2, kind: input, shape index: {}]
  %s3 = inlined_call_operand.vmem [shape: f32[32,4], index: 3, kind: input, shape index: {}]
  %s4 = inlined_call_operand.vmem [shape: f32[1,4], index: 4, kind: input, shape index: {}]
  %s5 = inlined_call_operand.vmem [shape: f32[64,16], index: 5, kind: input, shape index: {}]
  %s6 = inlined_call_operand.vmem [shape: f32[16,64], index: 6, kind: input, shape index: {}]
  %s7 = inlined_call_operand.hbm [shape: f32[2,4,64,64], index: 7, kind: output, shape index: {}]
  %s8 = sld [smem:[#allocation0]]
  $region65: #{tpu_custom_call.1} parent=0
    _
  %s10 = ssub.s32 1, %s8
  %s11 = scalar_select 0, %s10, %s8
  $region1: #{tpu_custom_call.1} parent=0
    #allocation4 [shape = 'u8[131072]{0}', space=vmem, size = 0x20000, scoped, tag = 'output window, operand 0']
    #allocation5 [shape = 's32[2]{0}', space=sflag, size = 0x8, scoped, tag = 'scoped memory for tpu_custom_call.1']
    %12 = vsyncpa [#allocation5], 0
    %s13 = scalar_lea.sflag [#allocation5], 1
    %14 = vsyncpa %s13, 0
    loop: start=0, step=1, limit=6
    $region2: #{tpu_custom_call.1} parent=1 // loop_pre_header
      _
    $region3: #{tpu_custom_call.1} parent=1 // loop_header
      %s16 = sphi 0, %s20
      %p17 = scmp.ge.s32.totalorder %s16, 6
      %s23 = sphi 0, %s35
      %s24 = sphi 0, %s31
      %s25 = sphi 0, %s23
      %s26 = sphi 0, %s24
      %s27 = sphi 0, %s25
      %s28 = sphi 0, %s26
      %s38 = sphi 0, %s40
      %s41 = sphi 0, %s38
      %s42 = sphi 0, %s41
      %s58 = sphi 0, %s42
      %s62 = sphi 0, %s62
      %s64 = sphi 0, %s62
      %s65 = sphi 0, %s64
      %s79 = sphi 0, %s65
      %s83 = sphi 0, %s83
      %s85 = sphi 0, %s83
      %s86 = sphi 0, %s85
      %s100 = sphi 0, %s86
      %s104 = sphi 0, %s104
      %s106 = sphi 0, %s104
      %s107 = sphi 0, %s106
      %s121 = sphi 0, %s107
      %s125 = sphi 0, %s125
      %s127 = sphi 0, %s125
      %s128 = sphi 0, %s127
      %s142 = sphi 0, %s128
      %s148 = sphi 0, %s150
      %s151 = sphi 0, %s148
      %s152 = sphi 0, %s151
      %s168 = sphi 0, %s152
      %s172 = sphi 0, %s172
      %s174 = sphi 0, %s172
      %s175 = sphi 0, %s174
      %s189 = sphi 0, %s175
      %s197 = sphi 0, %s199
      %s200 = sphi 0, %s197
      %s201 = sphi 0, %s200
      %s217 = sphi 0, %s201
    $region4: #{tpu_custom_call.1} parent=1 // loop_header_branch
      %19 = sbr.rel (%p17) target = $region8
    $region5: #{tpu_custom_call.1} parent=1 // loop_body
      %s21 = ssub.s32 %s16, 1
      %s22 = ssub.s32 %s16, 2
      %s29 = sadd.s32 1, %s24
      %p30 = scmp.ge.s32.totalorder %s29, 2
      %s31 = scalar_select %p30, 0, %s29
      %s32 = sadd.s32 1, %s23
      %s33 = scalar_select %p30, %s32, %s23
      %p34 = scmp.ge.s32.totalorder %s33, 2
      %s35 = scalar_select %p34, 0, %s33
      %s36 = ssub.s32 %s23, %s35
      %p37 = scmp.eq.s32.totalorder %s36, 0
      %s39 = sadd.s32 %s38, 1
      %s40 = scalar_select %p37, %s38, %s39
      %p43 = pneg %p37
      %p44 = scmp.eq.s32.totalorder %s16, 3
      %p45 = por %p43, %p44
      %p46 = scmp.ne.s32.totalorder %s38, %s41
      %p47 = scmp.eq.s32.totalorder %s16, 0
      %p48 = por %p46, %p47
      %p49 = scmp.ne.s32.totalorder %s38, %s41
      %p50 = scmp.eq.s32.totalorder %s21, 3
      %p51 = por %p49, %p50
      %p52 = scmp.ne.s32.totalorder %s41, %s42
      %p53 = scmp.eq.s32.totalorder %s21, 0
      %p54 = por %p52, %p53
      %p55 = scmp.ne.s32.totalorder %s41, %s42
      %p56 = scmp.eq.s32.totalorder %s22, 3
      %p57 = por %p55, %p56
      %p59 = scmp.ne.s32.totalorder %s42, %s58
      %p60 = scmp.eq.s32.totalorder %s22, 0
      %p61 = por %p59, %p60
      %s63 = sadd.s32 %s62, 1
      %p66 = scmp.eq.s32.totalorder %s16, 3
      %p67 = scmp.ne.s32.totalorder %s62, %s64
      %p68 = scmp.eq.s32.totalorder %s16, 0
      %p69 = por %p67, %p68
      %p70 = scmp.ne.s32.totalorder %s62, %s64
      %p71 = scmp.eq.s32.totalorder %s21, 3
      %p72 = por %p70, %p71
      %p73 = scmp.ne.s32.totalorder %s64, %s65
      %p74 = scmp.eq.s32.totalorder %s21, 0
      %p75 = por %p73, %p74
      %p76 = scmp.ne.s32.totalorder %s64, %s65
      %p77 = scmp.eq.s32.totalorder %s22, 3
      %p78 = por %p76, %p77
      %p80 = scmp.ne.s32.totalorder %s65, %s79
      %p81 = scmp.eq.s32.totalorder %s22, 0
      %p82 = por %p80, %p81
      %s84 = sadd.s32 %s83, 1
      %p87 = scmp.eq.s32.totalorder %s16, 3
      %p88 = scmp.ne.s32.totalorder %s83, %s85
      %p89 = scmp.eq.s32.totalorder %s16, 0
      %p90 = por %p88, %p89
      %p91 = scmp.ne.s32.totalorder %s83, %s85
      %p92 = scmp.eq.s32.totalorder %s21, 3
      %p93 = por %p91, %p92
      %p94 = scmp.ne.s32.totalorder %s85, %s86
      %p95 = scmp.eq.s32.totalorder %s21, 0
      %p96 = por %p94, %p95
      %p97 = scmp.ne.s32.totalorder %s85, %s86
      %p98 = scmp.eq.s32.totalorder %s22, 3
      %p99 = por %p97, %p98
      %p101 = scmp.ne.s32.totalorder %s86, %s100
      %p102 = scmp.eq.s32.totalorder %s22, 0
      %p103 = por %p101, %p102
      %s105 = sadd.s32 %s104, 1
      %p108 = scmp.eq.s32.totalorder %s16, 3
      %p109 = scmp.ne.s32.totalorder %s104, %s106
      %p110 = scmp.eq.s32.totalorder %s16, 0
      %p111 = por %p109, %p110
      %p112 = scmp.ne.s32.totalorder %s104, %s106
      %p113 = scmp.eq.s32.totalorder %s21, 3
      %p114 = por %p112, %p113
      %p115 = scmp.ne.s32.totalorder %s106, %s107
      %p116 = scmp.eq.s32.totalorder %s21, 0
      %p117 = por %p115, %p116
      %p118 = scmp.ne.s32.totalorder %s106, %s107
      %p119 = scmp.eq.s32.totalorder %s22, 3
      %p120 = por %p118, %p119
      %p122 = scmp.ne.s32.totalorder %s107, %s121
      %p123 = scmp.eq.s32.totalorder %s22, 0
      %p124 = por %p122, %p123
      %s126 = sadd.s32 %s125, 1
      %p129 = scmp.eq.s32.totalorder %s16, 3
      %p130 = scmp.ne.s32.totalorder %s125, %s127
      %p131 = scmp.eq.s32.totalorder %s16, 0
      %p132 = por %p130, %p131
      %p133 = scmp.ne.s32.totalorder %s125, %s127
      %p134 = scmp.eq.s32.totalorder %s21, 3
      %p135 = por %p133, %p134
      %p136 = scmp.ne.s32.totalorder %s127, %s128
      %p137 = scmp.eq.s32.totalorder %s21, 0
      %p138 = por %p136, %p137
      %p139 = scmp.ne.s32.totalorder %s127, %s128
      %p140 = scmp.eq.s32.totalorder %s22, 3
      %p141 = por %p139, %p140
      %p143 = scmp.ne.s32.totalorder %s128, %s142
      %p144 = scmp.eq.s32.totalorder %s22, 0
      %p145 = por %p143, %p144
      %s146 = ssub.s32 %s24, %s31
      %p147 = scmp.eq.s32.totalorder %s146, 0
      %s149 = sadd.s32 %s148, 1
      %s150 = scalar_select %p147, %s148, %s149
      %p153 = pneg %p147
      %p154 = scmp.eq.s32.totalorder %s16, 3
      %p155 = por %p153, %p154
      %p156 = scmp.ne.s32.totalorder %s148, %s151
      %p157 = scmp.eq.s32.totalorder %s16, 0
      %p158 = por %p156, %p157
      %p159 = scmp.ne.s32.totalorder %s148, %s151
      %p160 = scmp.eq.s32.totalorder %s21, 3
      %p161 = por %p159, %p160
      %p162 = scmp.ne.s32.totalorder %s151, %s152
      %p163 = scmp.eq.s32.totalorder %s21, 0
      %p164 = por %p162, %p163
      %p165 = scmp.ne.s32.totalorder %s151, %s152
      %p166 = scmp.eq.s32.totalorder %s22, 3
      %p167 = por %p165, %p166
      %p169 = scmp.ne.s32.totalorder %s152, %s168
      %p170 = scmp.eq.s32.totalorder %s22, 0
      %p171 = por %p169, %p170
      %s173 = sadd.s32 %s172, 1
      %p176 = scmp.eq.s32.totalorder %s16, 3
      %p177 = scmp.ne.s32.totalorder %s172, %s174
      %p178 = scmp.eq.s32.totalorder %s16, 0
      %p179 = por %p177, %p178
      %p180 = scmp.ne.s32.totalorder %s172, %s174
      %p181 = scmp.eq.s32.totalorder %s21, 3
      %p182 = por %p180, %p181
      %p183 = scmp.ne.s32.totalorder %s174, %s175
      %p184 = scmp.eq.s32.totalorder %s21, 0
      %p185 = por %p183, %p184
      %p186 = scmp.ne.s32.totalorder %s174, %s175
      %p187 = scmp.eq.s32.totalorder %s22, 3
      %p188 = por %p186, %p187
      %p190 = scmp.ne.s32.totalorder %s175, %s189
      %p191 = scmp.eq.s32.totalorder %s22, 0
      %p192 = por %p190, %p191
      %s193 = ssub.s32 %s23, %s35
      %s194 = ssub.s32 %s24, %s31
      %s195 = sor.u32 %s193, %s194
      %p196 = scmp.eq.s32.totalorder %s195, 0
      %s198 = sadd.s32 %s197, 1
      %s199 = scalar_select %p196, %s197, %s198
      %p202 = pneg %p196
      %p203 = scmp.eq.s32.totalorder %s16, 3
      %p204 = por %p202, %p203
      %p205 = scmp.ne.s32.totalorder %s197, %s200
      %p206 = scmp.eq.s32.totalorder %s16, 0
      %p207 = por %p205, %p206
      %p208 = scmp.ne.s32.totalorder %s197, %s200
      %p209 = scmp.eq.s32.totalorder %s21, 3
      %p210 = por %p208, %p209
      %p211 = scmp.ne.s32.totalorder %s200, %s201
      %p212 = scmp.eq.s32.totalorder %s21, 0
      %p213 = por %p211, %p212
      %p214 = scmp.ne.s32.totalorder %s200, %s201
      %p215 = scmp.eq.s32.totalorder %s22, 3
      %p216 = por %p214, %p215
      %p218 = scmp.ne.s32.totalorder %s201, %s217
      %p219 = scmp.eq.s32.totalorder %s22, 0
      %p220 = por %p218, %p219
      %p221 = scmp.le.s32.totalorder 1, %s16
      %p222 = scmp.lt.s32.totalorder %s16, 5
      %p223 = pnand %p221, %p222
      %p224 = pneg %p223
      // Predicated region
      $region9: #{tpu_custom_call.1} parent=5 // pred_check
        _
      $region10: #{tpu_custom_call.1} parent=5 // pred_check_branch
        %226 = sbr.rel (%p223) target = $region12
      $region11: #{tpu_custom_call.1} parent=5 // pred_region
        %s227 = ssub.s32 %s16, 1
        // Predicated region
        $region13: #{tpu_custom_call.1} parent=11 // pred_check
          %p228 = pneg %p75
        $region14: #{tpu_custom_call.1} parent=11 // pred_check_branch
          %230 = sbr.rel (%p228) target = $region16
        $region15: #{tpu_custom_call.1} parent=11 // pred_region
          _
        $region16: #{tpu_custom_call.1} parent=11 // pred_fallthru
          _
        // Predicated region
        $region17: #{tpu_custom_call.1} parent=11 // pred_check
          %p231 = pneg %p96
        $region18: #{tpu_custom_call.1} parent=11 // pred_check_branch
          %233 = sbr.rel (%p231) target = $region20
        $region19: #{tpu_custom_call.1} parent=11 // pred_region
          _
        $region20: #{tpu_custom_call.1} parent=11 // pred_fallthru
          _
        // Predicated region
        $region21: #{tpu_custom_call.1} parent=11 // pred_check
          %p234 = pneg %p117
        $region22: #{tpu_custom_call.1} parent=11 // pred_check_branch
          %236 = sbr.rel (%p234) target = $region24
        $region23: #{tpu_custom_call.1} parent=11 // pred_region
          _
        $region24: #{tpu_custom_call.1} parent=11 // pred_fallthru
          _
        // Predicated region
        $region25: #{tpu_custom_call.1} parent=11 // pred_check
          %p237 = pneg %p138
        $region26: #{tpu_custom_call.1} parent=11 // pred_check_branch
          %239 = sbr.rel (%p237) target = $region28
        $region27: #{tpu_custom_call.1} parent=11 // pred_region
          _
        $region28: #{tpu_custom_call.1} parent=11 // pred_fallthru
          _
        // Predicated region
        $region29: #{tpu_custom_call.1} parent=11 // pred_check
          %p240 = pneg %p185
        $region30: #{tpu_custom_call.1} parent=11 // pred_check_branch
          %242 = sbr.rel (%p240) target = $region32
        $region31: #{tpu_custom_call.1} parent=11 // pred_region
          _
        $region32: #{tpu_custom_call.1} parent=11 // pred_fallthru
          _
      $region12: #{tpu_custom_call.1} parent=5 // pred_fallthru
        _
      %p243 = scmp.lt.s32.totalorder %s16, 4
      // Predicated region
      $region33: #{tpu_custom_call.1} parent=5 // pred_check
        %p244 = pneg %p243
      $region34: #{tpu_custom_call.1} parent=5 // pred_check_branch
        %246 = sbr.rel (%p244) target = $region36
      $region35: #{tpu_custom_call.1} parent=5 // pred_region
        // Predicated region
        $region37: #{tpu_custom_call.1} parent=35 // pred_check
          %p247 = pneg %p48
        $region38: #{tpu_custom_call.1} parent=35 // pred_check_branch
          %249 = sbr.rel (%p247) target = $region40
        $region39: #{tpu_custom_call.1} parent=35 // pred_region
          %p250 = scmp.lt.s32.totalorder %s23, 1
          %s251 = scalar_select %p250, %s23, 1
          %s252 = smul.addr %s251, 32
          %s253 = smul.addr %s252, 8
          %s254 = scalar_lea.vmem %s0, %s253
        $region40: #{tpu_custom_call.1} parent=35 // pred_fallthru
          _
        // Predicated region
        $region41: #{tpu_custom_call.1} parent=35 // pred_check
          %p255 = pneg %p158
        $region42: #{tpu_custom_call.1} parent=35 // pred_check_branch
          %257 = sbr.rel (%p255) target = $region44
        $region43: #{tpu_custom_call.1} parent=35 // pred_region
          %s258 = smul.u32 4, %s24
          %p259 = scmp.lt.s32.totalorder %s258, 7
          %s260 = scalar_select %p259, %s258, 7
          %s261 = smul.addr %s260, 8
          %s262 = scalar_lea.vmem %s5, %s261
          %s263 = smul.u32 4, %s24
        $region44: #{tpu_custom_call.1} parent=35 // pred_fallthru
          _
      $region36: #{tpu_custom_call.1} parent=5 // pred_fallthru
        _
      %p264 = scmp.le.s32.totalorder 1, %s16
      %p265 = scmp.lt.s32.totalorder %s16, 5
      %p266 = pnand %p264, %p265
      %p267 = pneg %p266
      // Predicated region
      $region45: #{tpu_custom_call.1} parent=5 // pred_check
        _
      $region46: #{tpu_custom_call.1} parent=5 // pred_check_branch
        %269 = sbr.rel (%p266) target = $region48
      $region47: #{tpu_custom_call.1} parent=5 // pred_region
        %s270 = ssub.s32 %s16, 1
        %p271 = scmp.lt.s32.totalorder %s25, 1
        %s272 = scalar_select %p271, %s25, 1
        %s273 = smul.addr %s272, 32
        %s274 = smul.addr %s273, 8
        %s275 = scalar_lea.vmem %s0, %s274
        %p276 = pneg %p54
        %p277 = pneg %p51
        %p278 = pneg %p75
        %p279 = pneg %p72
        %p280 = pneg %p96
        %p281 = pneg %p93
        %p282 = pneg %p117
        %p283 = pneg %p114
        %p284 = pneg %p138
        %p285 = pneg %p135
        %s286 = smul.u32 4, %s26
        %p287 = scmp.lt.s32.totalorder %s286, 7
        %s288 = scalar_select %p287, %s286, 7
        %s289 = smul.addr %s288, 8
        %s290 = scalar_lea.vmem %s5, %s289
        %p291 = pneg %p164
        %p292 = pneg %p161
        %p293 = pneg %p185
        %p294 = pneg %p182
        %p295 = pneg %p213
        %p296 = pneg %p210
        %s297 = sand.u32 %s200, 1
        %s298 = scalar_lea.sflag [#allocation5], %s297
        %s299 = sand.u32 %s200, 1
        %s300 = smul.addr %s299, 128
        %s301 = scalar_lea.vmem [#allocation4], %s300
        %p302 = scmp.lt.s32.totalorder %s25, 1
        %s303 = scalar_select %p302, %s25, 1
        %s304 = smul.addr %s303, 32
        %s305 = smul.addr %s304, 8
        %s306 = scalar_lea.vmem %s0, %s305
        %s307 = smul.u32 4, %s26
        %p308 = scmp.lt.s32.totalorder %s307, 7
        %s309 = scalar_select %p308, %s307, 7
        %s310 = smul.addr %s309, 8
        %s311 = scalar_lea.vmem %s5, %s310
        %s312 = smul.u32 4, %s26
        %s313 = smul.u32 4, %s26
        %p314 = scmp.eq.s32.totalorder %s26, 0
        // Predicated region
        $region49: #{tpu_custom_call.1} parent=47 // pred_check
          %p315 = pneg %p314
        $region50: #{tpu_custom_call.1} parent=47 // pred_check_branch
          %317 = sbr.rel (%p315) target = $region52
        $region51: #{tpu_custom_call.1} parent=47 // pred_region
          %vm318 = vcmask 97280
          %319 = vst.msk [vmem:[#allocation2] sm:$0xff] %vm318, 0.0
          %320 = vst.msk [vmem:[#allocation2 + $0x8] sm:$0xff] %vm318, 0.0
          %321 = vst.msk [vmem:[#allocation2 + $0x10] sm:$0xff] %vm318, 0.0
          %322 = vst.msk [vmem:[#allocation2 + $0x18] sm:$0xff] %vm318, 0.0
          %323 = vst.msk [vmem:[#allocation2 + $0x20] sm:$0xff] %vm318, 0.0
          %324 = vst.msk [vmem:[#allocation2 + $0x28] sm:$0xff] %vm318, 0.0
          %325 = vst.msk [vmem:[#allocation2 + $0x30] sm:$0xff] %vm318, 0.0
          %326 = vst.msk [vmem:[#allocation2 + $0x38] sm:$0xff] %vm318, 0.0
          %327 = vst.msk [vmem:[#allocation2 + $0x40] sm:$0xff] %vm318, 0.0
          %328 = vst.msk [vmem:[#allocation2 + $0x48] sm:$0xff] %vm318, 0.0
          %329 = vst.msk [vmem:[#allocation2 + $0x50] sm:$0xff] %vm318, 0.0
          %330 = vst.msk [vmem:[#allocation2 + $0x58] sm:$0xff] %vm318, 0.0
          %331 = vst.msk [vmem:[#allocation2 + $0x60] sm:$0xff] %vm318, 0.0
          %332 = vst.msk [vmem:[#allocation2 + $0x68] sm:$0xff] %vm318, 0.0
          %333 = vst.msk [vmem:[#allocation2 + $0x70] sm:$0xff] %vm318, 0.0
          %334 = vst.msk [vmem:[#allocation2 + $0x78] sm:$0xff] %vm318, 0.0
          %335 = vst.msk [vmem:[#allocation2 + $0x80] sm:$0xff] %vm318, 0.0
          %336 = vst.msk [vmem:[#allocation2 + $0x88] sm:$0xff] %vm318, 0.0
          %337 = vst.msk [vmem:[#allocation2 + $0x90] sm:$0xff] %vm318, 0.0
          %338 = vst.msk [vmem:[#allocation2 + $0x98] sm:$0xff] %vm318, 0.0
          %339 = vst.msk [vmem:[#allocation2 + $0xa0] sm:$0xff] %vm318, 0.0
          %340 = vst.msk [vmem:[#allocation2 + $0xa8] sm:$0xff] %vm318, 0.0
          %341 = vst.msk [vmem:[#allocation2 + $0xb0] sm:$0xff] %vm318, 0.0
          %342 = vst.msk [vmem:[#allocation2 + $0xb8] sm:$0xff] %vm318, 0.0
          %343 = vst.msk [vmem:[#allocation2 + $0xc0] sm:$0xff] %vm318, 0.0
          %344 = vst.msk [vmem:[#allocation2 + $0xc8] sm:$0xff] %vm318, 0.0
          %345 = vst.msk [vmem:[#allocation2 + $0xd0] sm:$0xff] %vm318, 0.0
          %346 = vst.msk [vmem:[#allocation2 + $0xd8] sm:$0xff] %vm318, 0.0
          %347 = vst.msk [vmem:[#allocation2 + $0xe0] sm:$0xff] %vm318, 0.0
          %348 = vst.msk [vmem:[#allocation2 + $0xe8] sm:$0xff] %vm318, 0.0
          %349 = vst.msk [vmem:[#allocation2 + $0xf0] sm:$0xff] %vm318, 0.0
          %350 = vst.msk [vmem:[#allocation2 + $0xf8] sm:$0xff] %vm318, 0.0
          %351 = vst.msk [vmem:[#allocation2 + $0x100] sm:$0xff] %vm318, 0.0
          %352 = vst.msk [vmem:[#allocation2 + $0x108] sm:$0xff] %vm318, 0.0
          %353 = vst.msk [vmem:[#allocation2 + $0x110] sm:$0xff] %vm318, 0.0
          %354 = vst.msk [vmem:[#allocation2 + $0x118] sm:$0xff] %vm318, 0.0
          %v355 = vld [vmem:[%s306] sm:$0xff]
          %v356 = vld [vmem:[%s306 + $0x8] sm:$0xff]
          %v357 = vld [vmem:[%s306 + $0x10] sm:$0xff]
          %v358 = vld [vmem:[%s306 + $0x18] sm:$0xff]
          %v359 = vld [vmem:[%s306 + $0x20] sm:$0xff]
          %v360 = vld [vmem:[%s306 + $0x28] sm:$0xff]
          %v361 = vld [vmem:[%s306 + $0x30] sm:$0xff]
          %v362 = vld [vmem:[%s306 + $0x38] sm:$0xff]
          %v363 = vld [vmem:[%s306 + $0x40] sm:$0xff]
          %v364 = vld [vmem:[%s306 + $0x48] sm:$0xff]
          %v365 = vld [vmem:[%s306 + $0x50] sm:$0xff]
          %v366 = vld [vmem:[%s306 + $0x58] sm:$0xff]
          %v367 = vld [vmem:[%s306 + $0x60] sm:$0xff]
          %v368 = vld [vmem:[%s306 + $0x68] sm:$0xff]
          %v369 = vld [vmem:[%s306 + $0x70] sm:$0xff]
          %v370 = vld [vmem:[%s306 + $0x78] sm:$0xff]
          %v371 = vld [vmem:[%s306 + $0x80] sm:$0xff]
          %v372 = vld [vmem:[%s306 + $0x88] sm:$0xff]
          %v373 = vld [vmem:[%s306 + $0x90] sm:$0xff]
          %v374 = vld [vmem:[%s306 + $0x98] sm:$0xff]
          %v375 = vld [vmem:[%s306 + $0xa0] sm:$0xff]
          %v376 = vld [vmem:[%s306 + $0xa8] sm:$0xff]
          %v377 = vld [vmem:[%s306 + $0xb0] sm:$0xff]
          %v378 = vld [vmem:[%s306 + $0xb8] sm:$0xff]
          %v379 = vld [vmem:[%s306 + $0xc0] sm:$0xff]
          %v380 = vld [vmem:[%s306 + $0xc8] sm:$0xff]
          %v381 = vld [vmem:[%s306 + $0xd0] sm:$0xff]
          %v382 = vld [vmem:[%s306 + $0xd8] sm:$0xff]
          %v383 = vld [vmem:[%s306 + $0xe0] sm:$0xff]
          %v384 = vld [vmem:[%s306 + $0xe8] sm:$0xff]
          %v385 = vld [vmem:[%s306 + $0xf0] sm:$0xff]
          %v386 = vld [vmem:[%s306 + $0xf8] sm:$0xff]
          %s387 = scalar_lea.vmem [#allocation2], 16
          %vm388 = vcmask 31744
          %389 = vst.msk [vmem:[%s387 + $0x1] sm:$0xff] %vm388, %v355
          %vm390 = vcmask 30720
          %391 = vst.msk [vmem:[%s387 + $0x9] sm:$0x7f] %vm390, %v356
          %392 = vst.msk [vmem:[%s387 + $0x11] sm:$0xff] %vm388, %v357
          %393 = vst.msk [vmem:[%s387 + $0x19] sm:$0x7f] %vm390, %v358
          %394 = vst.msk [vmem:[%s387 + $0x21] sm:$0xff] %vm388, %v359
          %395 = vst.msk [vmem:[%s387 + $0x29] sm:$0x7f] %vm390, %v360
          %396 = vst.msk [vmem:[%s387 + $0x31] sm:$0xff] %vm388, %v361
          %397 = vst.msk [vmem:[%s387 + $0x39] sm:$0x7f] %vm390, %v362
          %398 = vst.msk [vmem:[%s387 + $0x41] sm:$0xff] %vm388, %v363
          %399 = vst.msk [vmem:[%s387 + $0x49] sm:$0x7f] %vm390, %v364
          %400 = vst.msk [vmem:[%s387 + $0x51] sm:$0xff] %vm388, %v365
          %401 = vst.msk [vmem:[%s387 + $0x59] sm:$0x7f] %vm390, %v366
          %402 = vst.msk [vmem:[%s387 + $0x61] sm:$0xff] %vm388, %v367
          %403 = vst.msk [vmem:[%s387 + $0x69] sm:$0x7f] %vm390, %v368
          %404 = vst.msk [vmem:[%s387 + $0x71] sm:$0xff] %vm388, %v369
          %405 = vst.msk [vmem:[%s387 + $0x79] sm:$0x7f] %vm390, %v370
          %406 = vst.msk [vmem:[%s387 + $0x81] sm:$0xff] %vm388, %v371
          %407 = vst.msk [vmem:[%s387 + $0x89] sm:$0x7f] %vm390, %v372
          %408 = vst.msk [vmem:[%s387 + $0x91] sm:$0xff] %vm388, %v373
          %409 = vst.msk [vmem:[%s387 + $0x99] sm:$0x7f] %vm390, %v374
          %410 = vst.msk [vmem:[%s387 + $0xa1] sm:$0xff] %vm388, %v375
          %411 = vst.msk [vmem:[%s387 + $0xa9] sm:$0x7f] %vm390, %v376
          %412 = vst.msk [vmem:[%s387 + $0xb1] sm:$0xff] %vm388, %v377
          %413 = vst.msk [vmem:[%s387 + $0xb9] sm:$0x7f] %vm390, %v378
          %414 = vst.msk [vmem:[%s387 + $0xc1] sm:$0xff] %vm388, %v379
          %415 = vst.msk [vmem:[%s387 + $0xc9] sm:$0x7f] %vm390, %v380
          %416 = vst.msk [vmem:[%s387 + $0xd1] sm:$0xff] %vm388, %v381
          %417 = vst.msk [vmem:[%s387 + $0xd9] sm:$0x7f] %vm390, %v382
          %418 = vst.msk [vmem:[%s387 + $0xe1] sm:$0xff] %vm388, %v383
          %419 = vst.msk [vmem:[%s387 + $0xe9] sm:$0x7f] %vm390, %v384
          %420 = vst.msk [vmem:[%s387 + $0xf1] sm:$0xff] %vm388, %v385
          %421 = vst.msk [vmem:[%s387 + $0xf9] sm:$0x7f] %vm390, %v386
          %454 = vrot.lane.b32.xlu0 %v355, 4
          %v455 = vpop.permute.xlu0 %454
          %456 = vrot.lane.b32.xlu0 %v356, 4
          %v457 = vpop.permute.xlu0 %456
          %458 = vrot.lane.b32.xlu0 %v357, 4
          %v459 = vpop.permute.xlu0 %458
          %460 = vrot.lane.b32.xlu0 %v358, 4
          %v461 = vpop.permute.xlu0 %460
          %462 = vrot.lane.b32.xlu0 %v359, 4
          %v463 = vpop.permute.xlu0 %462
          %464 = vrot.lane.b32.xlu0 %v360, 4
          %v465 = vpop.permute.xlu0 %464
          %466 = vrot.lane.b32.xlu0 %v361, 4
          %v467 = vpop.permute.xlu0 %466
          %468 = vrot.lane.b32.xlu0 %v362, 4
          %v469 = vpop.permute.xlu0 %468
          %470 = vrot.lane.b32.xlu0 %v363, 4
          %v471 = vpop.permute.xlu0 %470
          %472 = vrot.lane.b32.xlu0 %v364, 4
          %v473 = vpop.permute.xlu0 %472
          %474 = vrot.lane.b32.xlu0 %v365, 4
          %v475 = vpop.permute.xlu0 %474
          %476 = vrot.lane.b32.xlu0 %v366, 4
          %v477 = vpop.permute.xlu0 %476
          %478 = vrot.lane.b32.xlu0 %v367, 4
          %v479 = vpop.permute.xlu0 %478
          %480 = vrot.lane.b32.xlu0 %v368, 4
          %v481 = vpop.permute.xlu0 %480
          %482 = vrot.lane.b32.xlu0 %v369, 4
          %v483 = vpop.permute.xlu0 %482
          %484 = vrot.lane.b32.xlu0 %v370, 4
          %v485 = vpop.permute.xlu0 %484
          %486 = vrot.lane.b32.xlu0 %v371, 4
          %v487 = vpop.permute.xlu0 %486
          %488 = vrot.lane.b32.xlu0 %v372, 4
          %v489 = vpop.permute.xlu0 %488
          %490 = vrot.lane.b32.xlu0 %v373, 4
          %v491 = vpop.permute.xlu0 %490
          %492 = vrot.lane.b32.xlu0 %v374, 4
          %v493 = vpop.permute.xlu0 %492
          %494 = vrot.lane.b32.xlu0 %v375, 4
          %v495 = vpop.permute.xlu0 %494
          %496 = vrot.lane.b32.xlu0 %v376, 4
          %v497 = vpop.permute.xlu0 %496
          %498 = vrot.lane.b32.xlu0 %v377, 4
          %v499 = vpop.permute.xlu0 %498
          %500 = vrot.lane.b32.xlu0 %v378, 4
          %v501 = vpop.permute.xlu0 %500
          %502 = vrot.lane.b32.xlu0 %v379, 4
          %v503 = vpop.permute.xlu0 %502
          %504 = vrot.lane.b32.xlu0 %v380, 4
          %v505 = vpop.permute.xlu0 %504
          %506 = vrot.lane.b32.xlu0 %v381, 4
          %v507 = vpop.permute.xlu0 %506
          %508 = vrot.lane.b32.xlu0 %v382, 4
          %v509 = vpop.permute.xlu0 %508
          %510 = vrot.lane.b32.xlu0 %v383, 4
          %v511 = vpop.permute.xlu0 %510
          %512 = vrot.lane.b32.xlu0 %v384, 4
          %v513 = vpop.permute.xlu0 %512
          %514 = vrot.lane.b32.xlu0 %v385, 4
          %v515 = vpop.permute.xlu0 %514
          %516 = vrot.lane.b32.xlu0 %v386, 4
          %v517 = vpop.permute.xlu0 %516
          %vm550 = vcmask 64544
          %551 = vst.msk [vmem:[%s387] sm:$0xff] %vm550, %v455
          %552 = vst.msk [vmem:[%s387 + $0x8] sm:$0xff] %vm550, %v457
          %553 = vst.msk [vmem:[%s387 + $0x10] sm:$0xff] %vm550, %v459
          %554 = vst.msk [vmem:[%s387 + $0x18] sm:$0xff] %vm550, %v461
          %555 = vst.msk [vmem:[%s387 + $0x20] sm:$0xff] %vm550, %v463
          %556 = vst.msk [vmem:[%s387 + $0x28] sm:$0xff] %vm550, %v465
          %557 = vst.msk [vmem:[%s387 + $0x30] sm:$0xff] %vm550, %v467
          %558 = vst.msk [vmem:[%s387 + $0x38] sm:$0xff] %vm550, %v469
          %559 = vst.msk [vmem:[%s387 + $0x40] sm:$0xff] %vm550, %v471
          %560 = vst.msk [vmem:[%s387 + $0x48] sm:$0xff] %vm550, %v473
          %561 = vst.msk [vmem:[%s387 + $0x50] sm:$0xff] %vm550, %v475
          %562 = vst.msk [vmem:[%s387 + $0x58] sm:$0xff] %vm550, %v477
          %563 = vst.msk [vmem:[%s387 + $0x60] sm:$0xff] %vm550, %v479
          %564 = vst.msk [vmem:[%s387 + $0x68] sm:$0xff] %vm550, %v481
          %565 = vst.msk [vmem:[%s387 + $0x70] sm:$0xff] %vm550, %v483
          %566 = vst.msk [vmem:[%s387 + $0x78] sm:$0xff] %vm550, %v485
          %567 = vst.msk [vmem:[%s387 + $0x80] sm:$0xff] %vm550, %v487
          %568 = vst.msk [vmem:[%s387 + $0x88] sm:$0xff] %vm550, %v489
          %569 = vst.msk [vmem:[%s387 + $0x90] sm:$0xff] %vm550, %v491
          %570 = vst.msk [vmem:[%s387 + $0x98] sm:$0xff] %vm550, %v493
          %571 = vst.msk [vmem:[%s387 + $0xa0] sm:$0xff] %vm550, %v495
          %572 = vst.msk [vmem:[%s387 + $0xa8] sm:$0xff] %vm550, %v497
          %573 = vst.msk [vmem:[%s387 + $0xb0] sm:$0xff] %vm550, %v499
          %574 = vst.msk [vmem:[%s387 + $0xb8] sm:$0xff] %vm550, %v501
          %575 = vst.msk [vmem:[%s387 + $0xc0] sm:$0xff] %vm550, %v503
          %576 = vst.msk [vmem:[%s387 + $0xc8] sm:$0xff] %vm550, %v505
          %577 = vst.msk [vmem:[%s387 + $0xd0] sm:$0xff] %vm550, %v507
          %578 = vst.msk [vmem:[%s387 + $0xd8] sm:$0xff] %vm550, %v509
          %579 = vst.msk [vmem:[%s387 + $0xe0] sm:$0xff] %vm550, %v511
          %580 = vst.msk [vmem:[%s387 + $0xe8] sm:$0xff] %vm550, %v513
          %581 = vst.msk [vmem:[%s387 + $0xf0] sm:$0xff] %vm550, %v515
          %582 = vst.msk [vmem:[%s387 + $0xf8] sm:$0xff] %vm550, %v517
          %583 = vrot.lane.b32.xlu0 %v355, 8
          %v584 = vpop.permute.xlu0 %583
          %585 = vrot.lane.b32.xlu0 %v356, 8
          %v586 = vpop.permute.xlu0 %585
          %587 = vrot.lane.b32.xlu0 %v357, 8
          %v588 = vpop.permute.xlu0 %587
          %589 = vrot.lane.b32.xlu0 %v358, 8
          %v590 = vpop.permute.xlu0 %589
          %591 = vrot.lane.b32.xlu0 %v359, 8
          %v592 = vpop.permute.xlu0 %591
          %593 = vrot.lane.b32.xlu0 %v360, 8
          %v594 = vpop.permute.xlu0 %593
          %595 = vrot.lane.b32.xlu0 %v361, 8
          %v596 = vpop.permute.xlu0 %595
          %597 = vrot.lane.b32.xlu0 %v362, 8
          %v598 = vpop.permute.xlu0 %597
          %599 = vrot.lane.b32.xlu0 %v363, 8
          %v600 = vpop.permute.xlu0 %599
          %601 = vrot.lane.b32.xlu0 %v364, 8
          %v602 = vpop.permute.xlu0 %601
          %603 = vrot.lane.b32.xlu0 %v365, 8
          %v604 = vpop.permute.xlu0 %603
          %605 = vrot.lane.b32.xlu0 %v366, 8
          %v606 = vpop.permute.xlu0 %605
          %607 = vrot.lane.b32.xlu0 %v367, 8
          %v608 = vpop.permute.xlu0 %607
          %609 = vrot.lane.b32.xlu0 %v368, 8
          %v610 = vpop.permute.xlu0 %609
          %611 = vrot.lane.b32.xlu0 %v369, 8
          %v612 = vpop.permute.xlu0 %611
          %613 = vrot.lane.b32.xlu0 %v370, 8
          %v614 = vpop.permute.xlu0 %613
          %615 = vrot.lane.b32.xlu0 %v371, 8
          %v616 = vpop.permute.xlu0 %615
          %617 = vrot.lane.b32.xlu0 %v372, 8
          %v618 = vpop.permute.xlu0 %617
          %619 = vrot.lane.b32.xlu0 %v373, 8
          %v620 = vpop.permute.xlu0 %619
          %621 = vrot.lane.b32.xlu0 %v374, 8
          %v622 = vpop.permute.xlu0 %621
          %623 = vrot.lane.b32.xlu0 %v375, 8
          %v624 = vpop.permute.xlu0 %623
          %625 = vrot.lane.b32.xlu0 %v376, 8
          %v626 = vpop.permute.xlu0 %625
          %627 = vrot.lane.b32.xlu0 %v377, 8
          %v628 = vpop.permute.xlu0 %627
          %629 = vrot.lane.b32.xlu0 %v378, 8
          %v630 = vpop.permute.xlu0 %629
          %631 = vrot.lane.b32.xlu0 %v379, 8
          %v632 = vpop.permute.xlu0 %631
          %633 = vrot.lane.b32.xlu0 %v380, 8
          %v634 = vpop.permute.xlu0 %633
          %635 = vrot.lane.b32.xlu0 %v381, 8
          %v636 = vpop.permute.xlu0 %635
          %637 = vrot.lane.b32.xlu0 %v382, 8
          %v638 = vpop.permute.xlu0 %637
          %639 = vrot.lane.b32.xlu0 %v383, 8
          %v640 = vpop.permute.xlu0 %639
          %641 = vrot.lane.b32.xlu0 %v384, 8
          %v642 = vpop.permute.xlu0 %641
          %643 = vrot.lane.b32.xlu0 %v385, 8
          %v644 = vpop.permute.xlu0 %643
          %645 = vrot.lane.b32.xlu0 %v386, 8
          %v646 = vpop.permute.xlu0 %645
          %vm679 = vcmask 97345
          %680 = vst.msk [vmem:[%s387 - $0x1] sm:$0xfe] %vm679, %v584
          %vm681 = vcmask 97344
          %682 = vst.msk [vmem:[%s387 + $0x7] sm:$0xff] %vm681, %v586
          %683 = vst.msk [vmem:[%s387 + $0xf] sm:$0xfe] %vm679, %v588
          %684 = vst.msk [vmem:[%s387 + $0x17] sm:$0xff] %vm681, %v590
          %685 = vst.msk [vmem:[%s387 + $0x1f] sm:$0xfe] %vm679, %v592
          %686 = vst.msk [vmem:[%s387 + $0x27] sm:$0xff] %vm681, %v594
          %687 = vst.msk [vmem:[%s387 + $0x2f] sm:$0xfe] %vm679, %v596
          %688 = vst.msk [vmem:[%s387 + $0x37] sm:$0xff] %vm681, %v598
          %689 = vst.msk [vmem:[%s387 + $0x3f] sm:$0xfe] %vm679, %v600
          %690 = vst.msk [vmem:[%s387 + $0x47] sm:$0xff] %vm681, %v602
          %691 = vst.msk [vmem:[%s387 + $0x4f] sm:$0xfe] %vm679, %v604
          %692 = vst.msk [vmem:[%s387 + $0x57] sm:$0xff] %vm681, %v606
          %693 = vst.msk [vmem:[%s387 + $0x5f] sm:$0xfe] %vm679, %v608
          %694 = vst.msk [vmem:[%s387 + $0x67] sm:$0xff] %vm681, %v610
          %695 = vst.msk [vmem:[%s387 + $0x6f] sm:$0xfe] %vm679, %v612
          %696 = vst.msk [vmem:[%s387 + $0x77] sm:$0xff] %vm681, %v614
          %697 = vst.msk [vmem:[%s387 + $0x7f] sm:$0xfe] %vm679, %v616
          %698 = vst.msk [vmem:[%s387 + $0x87] sm:$0xff] %vm681, %v618
          %699 = vst.msk [vmem:[%s387 + $0x8f] sm:$0xfe] %vm679, %v620
          %700 = vst.msk [vmem:[%s387 + $0x97] sm:$0xff] %vm681, %v622
          %701 = vst.msk [vmem:[%s387 + $0x9f] sm:$0xfe] %vm679, %v624
          %702 = vst.msk [vmem:[%s387 + $0xa7] sm:$0xff] %vm681, %v626
          %703 = vst.msk [vmem:[%s387 + $0xaf] sm:$0xfe] %vm679, %v628
          %704 = vst.msk [vmem:[%s387 + $0xb7] sm:$0xff] %vm681, %v630
          %705 = vst.msk [vmem:[%s387 + $0xbf] sm:$0xfe] %vm679, %v632
          %706 = vst.msk [vmem:[%s387 + $0xc7] sm:$0xff] %vm681, %v634
          %707 = vst.msk [vmem:[%s387 + $0xcf] sm:$0xfe] %vm679, %v636
          %708 = vst.msk [vmem:[%s387 + $0xd7] sm:$0xff] %vm681, %v638
          %709 = vst.msk [vmem:[%s387 + $0xdf] sm:$0xfe] %vm679, %v640
          %710 = vst.msk [vmem:[%s387 + $0xe7] sm:$0xff] %vm681, %v642
          %711 = vst.msk [vmem:[%s387 + $0xef] sm:$0xfe] %vm679, %v644
          %712 = vst.msk [vmem:[%s387 + $0xf7] sm:$0xff] %vm681, %v646
          %v713 = vld [vmem:[#allocation2] sm:$0xff]
          %v714 = vld [vmem:[#allocation2 + $0x8] sm:$0xff]
          %v715 = vld [vmem:[#allocation2 + $0x10] sm:$0xff]
          %v716 = vld [vmem:[#allocation2 + $0x18] sm:$0xff]
          %v717 = vld [vmem:[#allocation2 + $0x20] sm:$0xff]
          %v718 = vld [vmem:[#allocation2 + $0x28] sm:$0xff]
          %v719 = vld [vmem:[#allocation2 + $0x30] sm:$0xff]
          %v720 = vld [vmem:[#allocation2 + $0x38] sm:$0xff]
          %v721 = vld [vmem:[#allocation2 + $0x40] sm:$0xff]
          %v722 = vld [vmem:[#allocation2 + $0x48] sm:$0xff]
          %v723 = vld [vmem:[#allocation2 + $0x50] sm:$0xff]
          %v724 = vld [vmem:[#allocation2 + $0x58] sm:$0xff]
          %v725 = vld [vmem:[#allocation2 + $0x60] sm:$0xff]
          %v726 = vld [vmem:[#allocation2 + $0x68] sm:$0xff]
          %v727 = vld [vmem:[#allocation2 + $0x70] sm:$0xff]
          %v728 = vld [vmem:[#allocation2 + $0x78] sm:$0xff]
          %v729 = vld [vmem:[#allocation2 + $0x80] sm:$0xff]
          %v730 = vld [vmem:[#allocation2 + $0x88] sm:$0xff]
          %v731 = vld [vmem:[#allocation2 + $0x90] sm:$0xff]
          %v732 = vld [vmem:[#allocation2 + $0x98] sm:$0xff]
          %v733 = vld [vmem:[#allocation2 + $0xa0] sm:$0xff]
          %v734 = vld [vmem:[#allocation2 + $0xa8] sm:$0xff]
          %v735 = vld [vmem:[#allocation2 + $0xb0] sm:$0xff]
          %v736 = vld [vmem:[#allocation2 + $0xb8] sm:$0xff]
          %v737 = vld [vmem:[#allocation2 + $0xc0] sm:$0xff]
          %v738 = vld [vmem:[#allocation2 + $0xc8] sm:$0xff]
          %v739 = vld [vmem:[#allocation2 + $0xd0] sm:$0xff]
          %v740 = vld [vmem:[#allocation2 + $0xd8] sm:$0xff]
          %v741 = vld [vmem:[#allocation2 + $0xe0] sm:$0xff]
          %v742 = vld [vmem:[#allocation2 + $0xe8] sm:$0xff]
          %v743 = vld [vmem:[#allocation2 + $0xf0] sm:$0xff]
          %v744 = vld [vmem:[#allocation2 + $0xf8] sm:$0xff]
          %v745 = vld [vmem:[#allocation2 + $0x100] sm:$0xff]
          %v746 = vld [vmem:[#allocation2 + $0x108] sm:$0xff]
          %v747 = vld [vmem:[#allocation2 + $0x110] sm:$0xff]
          %v748 = vld [vmem:[#allocation2 + $0x118] sm:$0xff]
          %v749 = vld [vmem:[%s1] sm:$0xff]
          %v750 = vld [vmem:[%s1 + $0x8] sm:$0xf]
          %s751 = scalar_lea.vmem %s1, 16
          %v752 = vld [vmem:[%s751] sm:$0xff]
          %v753 = vld [vmem:[%s751 + $0x8] sm:$0xf]
          %v755 = vsel %vm318, %v715, 0
          %v758 = vsel %vm318, %v716, 0
          %v761 = vsel %vm318, %v717, 0
          %v764 = vsel %vm318, %v718, 0
          %v767 = vsel %vm318, %v719, 0
          %v770 = vsel %vm318, %v720, 0
          %v773 = vsel %vm318, %v721, 0
          %v776 = vsel %vm318, %v722, 0
          %v779 = vsel %vm318, %v723, 0
          %v782 = vsel %vm318, %v724, 0
          %v785 = vsel %vm318, %v725, 0
          %v788 = vsel %vm318, %v726, 0
          %v791 = vsel %vm318, %v727, 0
          %v794 = vsel %vm318, %v728, 0
          %v797 = vsel %vm318, %v729, 0
          %v800 = vsel %vm318, %v730, 0
          %v803 = vsel %vm318, %v731, 0
          %v806 = vsel %vm318, %v732, 0
          %v809 = vsel %vm318, %v733, 0
          %v812 = vsel %vm318, %v734, 0
          %v815 = vsel %vm318, %v735, 0
          %v818 = vsel %vm318, %v736, 0
          %v821 = vsel %vm318, %v737, 0
          %v824 = vsel %vm318, %v738, 0
          %v827 = vsel %vm318, %v739, 0
          %v830 = vsel %vm318, %v740, 0
          %v833 = vsel %vm318, %v741, 0
          %v836 = vsel %vm318, %v742, 0
          %v839 = vsel %vm318, %v743, 0
          %v842 = vsel %vm318, %v744, 0
          %v845 = vsel %vm318, %v745, 0
          %v848 = vsel %vm318, %v746, 0
          %vm850 = vcmask 1043456
          %v852 = vsel %vm850, %v753, 0
          %854 = vmatprep.subr.mxu0 0.0
          %855 = vmatpush1.msra.mxu0 %v752
          %856 = vmatprep.subr.mxu0 0.0
          %857 = vmatpush1.msra.mxu0 %v852
          %858 = vmatprep.subr.mxu0 0.0
          %859 = vmatpush1.msra.mxu0 0.0
          %860 = vmatprep.subr.mxu0 0.0
          %861 = vmatpush1.msra.mxu0 0.0
          %862 = vmatprep.subr.mxu0 0.0
          %863 = vmatpush1.msra.mxu0 0.0
          %864 = vmatprep.subr.mxu0 0.0
          %865 = vmatpush1.msra.mxu0 0.0
          %866 = vmatprep.subr.mxu0 0.0
          %867 = vmatpush1.msra.mxu0 0.0
          %868 = vmatprep.subr.mxu0 0.0
          %869 = vmatpush1.msra.mxu0 0.0
          %870 = vmatprep.subr.mxu0 0.0
          %871 = vmatpush1.msra.mxu0 0.0
          %872 = vmatprep.subr.mxu0 0.0
          %873 = vmatpush1.msra.mxu0 0.0
          %874 = vmatprep.subr.mxu0 0.0
          %875 = vmatpush1.msra.mxu0 0.0
          %876 = vmatprep.subr.mxu0 0.0
          %877 = vmatpush1.msra.mxu0 0.0
          %878 = vmatprep.subr.mxu0 0.0
          %879 = vmatpush1.msra.mxu0 0.0
          %880 = vmatprep.subr.mxu0 0.0
          %881 = vmatpush1.msra.mxu0 0.0
          %882 = vmatprep.subr.mxu0 0.0
          %883 = vmatpush1.msra.mxu0 0.0
          %884 = vmatprep.subr.mxu0 0.0
          %885 = vmatpush1.msra.mxu0 0.0
          %886 = vmatprep.subr.mxu0 0.0
          %887 = vmatpush1.msra.mxu0 0.0
          %888 = vmatprep.subr.mxu0 0.0
          %889 = vmatpush1.msra.mxu0 0.0
          %890 = vmatprep.subr.mxu0 0.0
          %891 = vmatpush1.msra.mxu0 0.0
          %892 = vmatprep.subr.mxu0 0.0
          %893 = vmatpush1.msra.mxu0 0.0
          %894 = vmatprep.subr.mxu0 0.0
          %895 = vmatpush1.msra.mxu0 0.0
          %896 = vmatprep.subr.mxu0 0.0
          %897 = vmatpush1.msra.mxu0 0.0
          %898 = vmatprep.subr.mxu0 0.0
          %899 = vmatpush1.msra.mxu0 0.0
          %900 = vmatprep.subr.mxu0 0.0
          %901 = vmatpush1.msra.mxu0 0.0
          %902 = vmatprep.subr.mxu0 0.0
          %903 = vmatpush1.msra.mxu0 0.0
          %904 = vmatprep.subr.mxu0 0.0
          %905 = vmatpush1.msra.mxu0 0.0
          %906 = vmatprep.subr.mxu0 0.0
          %907 = vmatpush1.msra.mxu0 0.0
          %908 = vmatprep.subr.mxu0 0.0
          %909 = vmatpush1.msra.mxu0 0.0
          %910 = vmatprep.subr.mxu0 0.0
          %911 = vmatpush1.msra.mxu0 0.0
          %912 = vmatprep.subr.mxu0 0.0
          %913 = vmatpush1.msra.mxu0 0.0
          %914 = vmatprep.subr.mxu0 0.0
          %915 = vmatpush1.msra.mxu0 0.0
          %916 = vmatprep.subr.mxu0 0.0
          %917 = vmatpush1.msra.mxu0 0.0
          %918 = vmatprep.mubr.f32.mxu0 0.0
          %919 = vmatmul.mubr.f32.gmra.mrb[0].mxu0 %v755
          %v920 = vpop.f32.mrb[0].mxu0
          %v921 = vadd.f32 0.0, %v920
          %v922 = vpop.f32.mrb[0].mxu0
          %923 = vmatprep.mubr.f32.mxu0 0.0
          %924 = vmatmul.mubr.f32.gmra.mrb[0].mxu0 %v758
          %v925 = vpop.f32.mrb[0].mxu0
          %v926 = vadd.f32 0.0, %v925
          %v927 = vpop.f32.mrb[0].mxu0
          %928 = vmatprep.mubr.f32.mxu0 0.0
          %929 = vmatmul.mubr.f32.gmra.mrb[0].mxu0 %v761
          %v930 = vpop.f32.mrb[0].mxu0
          %v931 = vadd.f32 0.0, %v930
          %v932 = vpop.f32.mrb[0].mxu0
          %933 = vmatprep.mubr.f32.mxu0 0.0
          %934 = vmatmul.mubr.f32.gmra.mrb[0].mxu0 %v764
          %v935 = vpop.f32.mrb[0].mxu0
          %v936 = vadd.f32 0.0, %v935
          %v937 = vpop.f32.mrb[0].mxu0
          %938 = vmatprep.mubr.f32.mxu0 0.0
          %939 = vmatmul.mubr.f32.gmra.mrb[0].mxu0 %v767
          %v940 = vpop.f32.mrb[0].mxu0
          %v941 = vadd.f32 0.0, %v940
          %v942 = vpop.f32.mrb[0].mxu0
          %943 = vmatprep.mubr.f32.mxu0 0.0
          %944 = vmatmul.mubr.f32.gmra.mrb[0].mxu0 %v770
          %v945 = vpop.f32.mrb[0].mxu0
          %v946 = vadd.f32 0.0, %v945
          %v947 = vpop.f32.mrb[0].mxu0
          %948 = vmatprep.mubr.f32.mxu0 0.0
          %949 = vmatmul.mubr.f32.gmra.mrb[0].mxu0 %v773
          %v950 = vpop.f32.mrb[0].mxu0
          %v951 = vadd.f32 0.0, %v950
          %v952 = vpop.f32.mrb[0].mxu0
          %953 = vmatprep.mubr.f32.mxu0 0.0
          %954 = vmatmul.mubr.f32.gmra.mrb[0].mxu0 %v776
          %v955 = vpop.f32.mrb[0].mxu0
          %v956 = vadd.f32 0.0, %v955
          %v957 = vpop.f32.mrb[0].mxu0
          %958 = vmatprep.mubr.f32.mxu0 0.0
          %959 = vmatmul.mubr.f32.gmra.mrb[0].mxu0 %v779
          %v960 = vpop.f32.mrb[0].mxu0
          %v961 = vadd.f32 0.0, %v960
          %v962 = vpop.f32.mrb[0].mxu0
          %963 = vmatprep.mubr.f32.mxu0 0.0
          %964 = vmatmul.mubr.f32.gmra.mrb[0].mxu0 %v782
          %v965 = vpop.f32.mrb[0].mxu0
          %v966 = vadd.f32 0.0, %v965
          %v967 = vpop.f32.mrb[0].mxu0
          %968 = vmatprep.mubr.f32.mxu0 0.0
          %969 = vmatmul.mubr.f32.gmra.mrb[0].mxu0 %v785
          %v970 = vpop.f32.mrb[0].mxu0
          %v971 = vadd.f32 0.0, %v970
          %v972 = vpop.f32.mrb[0].mxu0
          %973 = vmatprep.mubr.f32.mxu0 0.0
          %974 = vmatmul.mubr.f32.gmra.mrb[0].mxu0 %v788
          %v975 = vpop.f32.mrb[0].mxu0
          %v976 = vadd.f32 0.0, %v975
          %v977 = vpop.f32.mrb[0].mxu0
          %978 = vmatprep.mubr.f32.mxu0 0.0
          %979 = vmatmul.mubr.f32.gmra.mrb[0].mxu0 %v791
          %v980 = vpop.f32.mrb[0].mxu0
          %v981 = vadd.f32 0.0, %v980
          %v982 = vpop.f32.mrb[0].mxu0
          %983 = vmatprep.mubr.f32.mxu0 0.0
          %984 = vmatmul.mubr.f32.gmra.mrb[0].mxu0 %v794
          %v985 = vpop.f32.mrb[0].mxu0
          %v986 = vadd.f32 0.0, %v985
          %v987 = vpop.f32.mrb[0].mxu0
          %988 = vmatprep.mubr.f32.mxu0 0.0
          %989 = vmatmul.mubr.f32.gmra.mrb[0].mxu0 %v797
          %v990 = vpop.f32.mrb[0].mxu0
          %v991 = vadd.f32 0.0, %v990
          %v992 = vpop.f32.mrb[0].mxu0
          %993 = vmatprep.mubr.f32.mxu0 0.0
          %994 = vmatmul.mubr.f32.gmra.mrb[0].mxu0 %v800
          %v995 = vpop.f32.mrb[0].mxu0
          %v996 = vadd.f32 0.0, %v995
          %v997 = vpop.f32.mrb[0].mxu0
          %998 = vmatprep.mubr.f32.mxu0 0.0
          %999 = vmatmul.mubr.f32.gmra.mrb[0].mxu0 %v803
          %v1000 = vpop.f32.mrb[0].mxu0
          %v1001 = vadd.f32 0.0, %v1000
          %v1002 = vpop.f32.mrb[0].mxu0
          %1003 = vmatprep.mubr.f32.mxu0 0.0
          %1004 = vmatmul.mubr.f32.gmra.mrb[0].mxu0 %v806
          %v1005 = vpop.f32.mrb[0].mxu0
          %v1006 = vadd.f32 0.0, %v1005
          %v1007 = vpop.f32.mrb[0].mxu0
          %1008 = vmatprep.mubr.f32.mxu0 0.0
          %1009 = vmatmul.mubr.f32.gmra.mrb[0].mxu0 %v809
          %v1010 = vpop.f32.mrb[0].mxu0
          %v1011 = vadd.f32 0.0, %v1010
          %v1012 = vpop.f32.mrb[0].mxu0
          %1013 = vmatprep.mubr.f32.mxu0 0.0
          %1014 = vmatmul.mubr.f32.gmra.mrb[0].mxu0 %v812
          %v1015 = vpop.f32.mrb[0].mxu0
          %v1016 = vadd.f32 0.0, %v1015
          %v1017 = vpop.f32.mrb[0].mxu0
          %1018 = vmatprep.mubr.f32.mxu0 0.0
          %1019 = vmatmul.mubr.f32.gmra.mrb[0].mxu0 %v815
          %v1020 = vpop.f32.mrb[0].mxu0
          %v1021 = vadd.f32 0.0, %v1020
          %v1022 = vpop.f32.mrb[0].mxu0
          %1023 = vmatprep.mubr.f32.mxu0 0.0
          %1024 = vmatmul.mubr.f32.gmra.mrb[0].mxu0 %v818
          %v1025 = vpop.f32.mrb[0].mxu0
          %v1026 = vadd.f32 0.0, %v1025
          %v1027 = vpop.f32.mrb[0].mxu0
          %1028 = vmatprep.mubr.f32.mxu0 0.0
          %1029 = vmatmul.mubr.f32.gmra.mrb[0].mxu0 %v821
          %v1030 = vpop.f32.mrb[0].mxu0
          %v1031 = vadd.f32 0.0, %v1030
          %v1032 = vpop.f32.mrb[0].mxu0
          %1033 = vmatprep.mubr.f32.mxu0 0.0
          %1034 = vmatmul.mubr.f32.gmra.mrb[0].mxu0 %v824
          %v1035 = vpop.f32.mrb[0].mxu0
          %v1036 = vadd.f32 0.0, %v1035
          %v1037 = vpop.f32.mrb[0].mxu0
          %1038 = vmatprep.mubr.f32.mxu0 0.0
          %1039 = vmatmul.mubr.f32.gmra.mrb[0].mxu0 %v827
          %v1040 = vpop.f32.mrb[0].mxu0
          %v1041 = vadd.f32 0.0, %v1040
          %v1042 = vpop.f32.mrb[0].mxu0
          %1043 = vmatprep.mubr.f32.mxu0 0.0
          %1044 = vmatmul.mubr.f32.gmra.mrb[0].mxu0 %v830
          %v1045 = vpop.f32.mrb[0].mxu0
          %v1046 = vadd.f32 0.0, %v1045
          %v1047 = vpop.f32.mrb[0].mxu0
          %1048 = vmatprep.mubr.f32.mxu0 0.0
          %1049 = vmatmul.mubr.f32.gmra.mrb[0].mxu0 %v833
          %v1050 = vpop.f32.mrb[0].mxu0
          %v1051 = vadd.f32 0.0, %v1050
          %v1052 = vpop.f32.mrb[0].mxu0
          %1053 = vmatprep.mubr.f32.mxu0 0.0
          %1054 = vmatmul.mubr.f32.gmra.mrb[0].mxu0 %v836
          %v1055 = vpop.f32.mrb[0].mxu0
          %v1056 = vadd.f32 0.0, %v1055
          %v1057 = vpop.f32.mrb[0].mxu0
          %1058 = vmatprep.mubr.f32.mxu0 0.0
          %1059 = vmatmul.mubr.f32.gmra.mrb[0].mxu0 %v839
          %v1060 = vpop.f32.mrb[0].mxu0
          %v1061 = vadd.f32 0.0, %v1060
          %v1062 = vpop.f32.mrb[0].mxu0
          %1063 = vmatprep.mubr.f32.mxu0 0.0
          %1064 = vmatmul.mubr.f32.gmra.mrb[0].mxu0 %v842
          %v1065 = vpop.f32.mrb[0].mxu0
          %v1066 = vadd.f32 0.0, %v1065
          %v1067 = vpop.f32.mrb[0].mxu0
          %1068 = vmatprep.mubr.f32.mxu0 0.0
          %1069 = vmatmul.mubr.f32.gmra.mrb[0].mxu0 %v845
          %v1070 = vpop.f32.mrb[0].mxu0
          %v1071 = vadd.f32 0.0, %v1070
          %v1072 = vpop.f32.mrb[0].mxu0
          %1073 = vmatprep.mubr.f32.mxu0 0.0
          %1074 = vmatmul.mubr.f32.gmra.mrb[0].mxu0 %v848
          %v1075 = vpop.f32.mrb[0].mxu0
          %v1076 = vadd.f32 0.0, %v1075
          %v1077 = vpop.f32.mrb[0].mxu0
          %1078 = vdwg.mxu0
          %v1080 = vsel %vm318, %v713, 0
          %v1083 = vsel %vm318, %v714, 0
          %v1086 = vsel %vm850, %v750, 0
          %1088 = vmatprep.subr.mxu0 0.0
          %1089 = vmatpush1.msra.mxu0 %v749
          %1090 = vmatprep.subr.mxu0 0.0
          %1091 = vmatpush1.msra.mxu0 %v1086
          %1092 = vmatprep.subr.mxu0 0.0
          %1093 = vmatpush1.msra.mxu0 0.0
          %1094 = vmatprep.subr.mxu0 0.0
          %1095 = vmatpush1.msra.mxu0 0.0
          %1096 = vmatprep.subr.mxu0 0.0
          %1097 = vmatpush1.msra.mxu0 0.0
          %1098 = vmatprep.subr.mxu0 0.0
          %1099 = vmatpush1.msra.mxu0 0.0
          %1100 = vmatprep.subr.mxu0 0.0
          %1101 = vmatpush1.msra.mxu0 0.0
          %1102 = vmatprep.subr.mxu0 0.0
          %1103 = vmatpush1.msra.mxu0 0.0
          %1104 = vmatprep.subr.mxu0 0.0
          %1105 = vmatpush1.msra.mxu0 0.0
          %1106 = vmatprep.subr.mxu0 0.0
          %1107 = vmatpush1.msra.mxu0 0.0
          %1108 = vmatprep.subr.mxu0 0.0
          %1109 = vmatpush1.msra.mxu0 0.0
          %1110 = vmatprep.subr.mxu0 0.0
          %1111 = vmatpush1.msra.mxu0 0.0
          %1112 = vmatprep.subr.mxu0 0.0
          %1113 = vmatpush1.msra.mxu0 0.0
          %1114 = vmatprep.subr.mxu0 0.0
          %1115 = vmatpush1.msra.mxu0 0.0
          %1116 = vmatprep.subr.mxu0 0.0
          %1117 = vmatpush1.msra.mxu0 0.0
          %1118 = vmatprep.subr.mxu0 0.0
          %1119 = vmatpush1.msra.mxu0 0.0
          %1120 = vmatprep.subr.mxu0 0.0
          %1121 = vmatpush1.msra.mxu0 0.0
          %1122 = vmatprep.subr.mxu0 0.0
          %1123 = vmatpush1.msra.mxu0 0.0
          %1124 = vmatprep.subr.mxu0 0.0
          %1125 = vmatpush1.msra.mxu0 0.0
          %1126 = vmatprep.subr.mxu0 0.0
          %1127 = vmatpush1.msra.mxu0 0.0
          %1128 = vmatprep.subr.mxu0 0.0
          %1129 = vmatpush1.msra.mxu0 0.0
          %1130 = vmatprep.subr.mxu0 0.0
          %1131 = vmatpush1.msra.mxu0 0.0
          %1132 = vmatprep.subr.mxu0 0.0
          %1133 = vmatpush1.msra.mxu0 0.0
          %1134 = vmatprep.subr.mxu0 0.0
          %1135 = vmatpush1.msra.mxu0 0.0
          %1136 = vmatprep.subr.mxu0 0.0
          %1137 = vmatpush1.msra.mxu0 0.0
          %1138 = vmatprep.subr.mxu0 0.0
          %1139 = vmatpush1.msra.mxu0 0.0
          %1140 = vmatprep.subr.mxu0 0.0
          %1141 = vmatpush1.msra.mxu0 0.0
          %1142 = vmatprep.subr.mxu0 0.0
          %1143 = vmatpush1.msra.mxu0 0.0
          %1144 = vmatprep.subr.mxu0 0.0
          %1145 = vmatpush1.msra.mxu0 0.0
          %1146 = vmatprep.subr.mxu0 0.0
          %1147 = vmatpush1.msra.mxu0 0.0
          %1148 = vmatprep.subr.mxu0 0.0
          %1149 = vmatpush1.msra.mxu0 0.0
          %1150 = vmatprep.subr.mxu0 0.0
          %1151 = vmatpush1.msra.mxu0 0.0
          %1152 = vmatprep.mubr.f32.mxu0 0.0
          %1153 = vmatmul.mubr.f32.gmra.mrb[0].mxu0 %v1080
          %v1154 = vpop.f32.mrb[0].mxu0
          %v1155 = vadd.f32 %v921, %v1154
          %v1156 = vpop.f32.mrb[0].mxu0
          %1157 = vmatprep.mubr.f32.mxu0 0.0
          %1158 = vmatmul.mubr.f32.gmra.mrb[0].mxu0 %v1083
          %v1159 = vpop.f32.mrb[0].mxu0
          %v1160 = vadd.f32 %v926, %v1159
          %v1161 = vpop.f32.mrb[0].mxu0
          %1162 = vmatprep.mubr.f32.mxu0 0.0
          %1163 = vmatmul.mubr.f32.gmra.mrb[0].mxu0 %v755
          %v1164 = vpop.f32.mrb[0].mxu0
          %v1165 = vadd.f32 %v931, %v1164
          %v1166 = vpop.f32.mrb[0].mxu0
          %1167 = vmatprep.mubr.f32.mxu0 0.0
          %1168 = vmatmul.mubr.f32.gmra.mrb[0].mxu0 %v758
          %v1169 = vpop.f32.mrb[0].mxu0
          %v1170 = vadd.f32 %v936, %v1169
          %v1171 = vpop.f32.mrb[0].mxu0
          %1172 = vmatprep.mubr.f32.mxu0 0.0
          %1173 = vmatmul.mubr.f32.gmra.mrb[0].mxu0 %v761
          %v1174 = vpop.f32.mrb[0].mxu0
          %v1175 = vadd.f32 %v941, %v1174
          %v1176 = vpop.f32.mrb[0].mxu0
          %1177 = vmatprep.mubr.f32.mxu0 0.0
          %1178 = vmatmul.mubr.f32.gmra.mrb[0].mxu0 %v764
          %v1179 = vpop.f32.mrb[0].mxu0
          %v1180 = vadd.f32 %v946, %v1179
          %v1181 = vpop.f32.mrb[0].mxu0
          %1182 = vmatprep.mubr.f32.mxu0 0.0
          %1183 = vmatmul.mubr.f32.gmra.mrb[0].mxu0 %v767
          %v1184 = vpop.f32.mrb[0].mxu0
          %v1185 = vadd.f32 %v951, %v1184
          %v1186 = vpop.f32.mrb[0].mxu0
          %1187 = vmatprep.mubr.f32.mxu0 0.0
          %1188 = vmatmul.mubr.f32.gmra.mrb[0].mxu0 %v770
          %v1189 = vpop.f32.mrb[0].mxu0
          %v1190 = vadd.f32 %v956, %v1189
          %v1191 = vpop.f32.mrb[0].mxu0
          %1192 = vmatprep.mubr.f32.mxu0 0.0
          %1193 = vmatmul.mubr.f32.gmra.mrb[0].mxu0 %v773
          %v1194 = vpop.f32.mrb[0].mxu0
          %v1195 = vadd.f32 %v961, %v1194
          %v1196 = vpop.f32.mrb[0].mxu0
          %1197 = vmatprep.mubr.f32.mxu0 0.0
          %1198 = vmatmul.mubr.f32.gmra.mrb[0].mxu0 %v776
          %v1199 = vpop.f32.mrb[0].mxu0
          %v1200 = vadd.f32 %v966, %v1199
          %v1201 = vpop.f32.mrb[0].mxu0
          %1202 = vmatprep.mubr.f32.mxu0 0.0
          %1203 = vmatmul.mubr.f32.gmra.mrb[0].mxu0 %v779
          %v1204 = vpop.f32.mrb[0].mxu0
          %v1205 = vadd.f32 %v971, %v1204
          %v1206 = vpop.f32.mrb[0].mxu0
          %1207 = vmatprep.mubr.f32.mxu0 0.0
          %1208 = vmatmul.mubr.f32.gmra.mrb[0].mxu0 %v782
          %v1209 = vpop.f32.mrb[0].mxu0
          %v1210 = vadd.f32 %v976, %v1209
          %v1211 = vpop.f32.mrb[0].mxu0
          %1212 = vmatprep.mubr.f32.mxu0 0.0
          %1213 = vmatmul.mubr.f32.gmra.mrb[0].mxu0 %v785
          %v1214 = vpop.f32.mrb[0].mxu0
          %v1215 = vadd.f32 %v981, %v1214
          %v1216 = vpop.f32.mrb[0].mxu0
          %1217 = vmatprep.mubr.f32.mxu0 0.0
          %1218 = vmatmul.mubr.f32.gmra.mrb[0].mxu0 %v788
          %v1219 = vpop.f32.mrb[0].mxu0
          %v1220 = vadd.f32 %v986, %v1219
          %v1221 = vpop.f32.mrb[0].mxu0
          %1222 = vmatprep.mubr.f32.mxu0 0.0
          %1223 = vmatmul.mubr.f32.gmra.mrb[0].mxu0 %v791
          %v1224 = vpop.f32.mrb[0].mxu0
          %v1225 = vadd.f32 %v991, %v1224
          %v1226 = vpop.f32.mrb[0].mxu0
          %1227 = vmatprep.mubr.f32.mxu0 0.0
          %1228 = vmatmul.mubr.f32.gmra.mrb[0].mxu0 %v794
          %v1229 = vpop.f32.mrb[0].mxu0
          %v1230 = vadd.f32 %v996, %v1229
          %v1231 = vpop.f32.mrb[0].mxu0
          %1232 = vmatprep.mubr.f32.mxu0 0.0
          %1233 = vmatmul.mubr.f32.gmra.mrb[0].mxu0 %v797
          %v1234 = vpop.f32.mrb[0].mxu0
          %v1235 = vadd.f32 %v1001, %v1234
          %v1236 = vpop.f32.mrb[0].mxu0
          %1237 = vmatprep.mubr.f32.mxu0 0.0
          %1238 = vmatmul.mubr.f32.gmra.mrb[0].mxu0 %v800
          %v1239 = vpop.f32.mrb[0].mxu0
          %v1240 = vadd.f32 %v1006, %v1239
          %v1241 = vpop.f32.mrb[0].mxu0
          %1242 = vmatprep.mubr.f32.mxu0 0.0
          %1243 = vmatmul.mubr.f32.gmra.mrb[0].mxu0 %v803
          %v1244 = vpop.f32.mrb[0].mxu0
          %v1245 = vadd.f32 %v1011, %v1244
          %v1246 = vpop.f32.mrb[0].mxu0
          %1247 = vmatprep.mubr.f32.mxu0 0.0
          %1248 = vmatmul.mubr.f32.gmra.mrb[0].mxu0 %v806
          %v1249 = vpop.f32.mrb[0].mxu0
          %v1250 = vadd.f32 %v1016, %v1249
          %v1251 = vpop.f32.mrb[0].mxu0
          %1252 = vmatprep.mubr.f32.mxu0 0.0
          %1253 = vmatmul.mubr.f32.gmra.mrb[0].mxu0 %v809
          %v1254 = vpop.f32.mrb[0].mxu0
          %v1255 = vadd.f32 %v1021, %v1254
          %v1256 = vpop.f32.mrb[0].mxu0
          %1257 = vmatprep.mubr.f32.mxu0 0.0
          %1258 = vmatmul.mubr.f32.gmra.mrb[0].mxu0 %v812
          %v1259 = vpop.f32.mrb[0].mxu0
          %v1260 = vadd.f32 %v1026, %v1259
          %v1261 = vpop.f32.mrb[0].mxu0
          %1262 = vmatprep.mubr.f32.mxu0 0.0
          %1263 = vmatmul.mubr.f32.gmra.mrb[0].mxu0 %v815
          %v1264 = vpop.f32.mrb[0].mxu0
          %v1265 = vadd.f32 %v1031, %v1264
          %v1266 = vpop.f32.mrb[0].mxu0
          %1267 = vmatprep.mubr.f32.mxu0 0.0
          %1268 = vmatmul.mubr.f32.gmra.mrb[0].mxu0 %v818
          %v1269 = vpop.f32.mrb[0].mxu0
          %v1270 = vadd.f32 %v1036, %v1269
          %v1271 = vpop.f32.mrb[0].mxu0
          %1272 = vmatprep.mubr.f32.mxu0 0.0
          %1273 = vmatmul.mubr.f32.gmra.mrb[0].mxu0 %v821
          %v1274 = vpop.f32.mrb[0].mxu0
          %v1275 = vadd.f32 %v1041, %v1274
          %v1276 = vpop.f32.mrb[0].mxu0
          %1277 = vmatprep.mubr.f32.mxu0 0.0
          %1278 = vmatmul.mubr.f32.gmra.mrb[0].mxu0 %v824
          %v1279 = vpop.f32.mrb[0].mxu0
          %v1280 = vadd.f32 %v1046, %v1279
          %v1281 = vpop.f32.mrb[0].mxu0
          %1282 = vmatprep.mubr.f32.mxu0 0.0
          %1283 = vmatmul.mubr.f32.gmra.mrb[0].mxu0 %v827
          %v1284 = vpop.f32.mrb[0].mxu0
          %v1285 = vadd.f32 %v1051, %v1284
          %v1286 = vpop.f32.mrb[0].mxu0
          %1287 = vmatprep.mubr.f32.mxu0 0.0
          %1288 = vmatmul.mubr.f32.gmra.mrb[0].mxu0 %v830
          %v1289 = vpop.f32.mrb[0].mxu0
          %v1290 = vadd.f32 %v1056, %v1289
          %v1291 = vpop.f32.mrb[0].mxu0
          %1292 = vmatprep.mubr.f32.mxu0 0.0
          %1293 = vmatmul.mubr.f32.gmra.mrb[0].mxu0 %v833
          %v1294 = vpop.f32.mrb[0].mxu0
          %v1295 = vadd.f32 %v1061, %v1294
          %v1296 = vpop.f32.mrb[0].mxu0
          %1297 = vmatprep.mubr.f32.mxu0 0.0
          %1298 = vmatmul.mubr.f32.gmra.mrb[0].mxu0 %v836
          %v1299 = vpop.f32.mrb[0].mxu0
          %v1300 = vadd.f32 %v1066, %v1299
          %v1301 = vpop.f32.mrb[0].mxu0
          %1302 = vmatprep.mubr.f32.mxu0 0.0
          %1303 = vmatmul.mubr.f32.gmra.mrb[0].mxu0 %v839
          %v1304 = vpop.f32.mrb[0].mxu0
          %v1305 = vadd.f32 %v1071, %v1304
          %v1306 = vpop.f32.mrb[0].mxu0
          %1307 = vmatprep.mubr.f32.mxu0 0.0
          %1308 = vmatmul.mubr.f32.gmra.mrb[0].mxu0 %v842
          %v1309 = vpop.f32.mrb[0].mxu0
          %v1310 = vadd.f32 %v1076, %v1309
          %v1311 = vpop.f32.mrb[0].mxu0
          %1312 = vdwg.mxu0
          %s1313 = scalar_lea.vmem %s1, 32
          %v1314 = vld [vmem:[%s1313] sm:$0xff]
          %v1315 = vld [vmem:[%s1313 + $0x8] sm:$0xf]
          %v1317 = vsel %vm318, %v747, 0
          %v1320 = vsel %vm318, %v748, 0
          %v1323 = vsel %vm850, %v1315, 0
          %1325 = vmatprep.subr.mxu0 0.0
          %1326 = vmatpush1.msra.mxu0 %v1314
          %1327 = vmatprep.subr.mxu0 0.0
          %1328 = vmatpush1.msra.mxu0 %v1323
          %1329 = vmatprep.subr.mxu0 0.0
          %1330 = vmatpush1.msra.mxu0 0.0
          %1331 = vmatprep.subr.mxu0 0.0
          %1332 = vmatpush1.msra.mxu0 0.0
          %1333 = vmatprep.subr.mxu0 0.0
          %1334 = vmatpush1.msra.mxu0 0.0
          %1335 = vmatprep.subr.mxu0 0.0
          %1336 = vmatpush1.msra.mxu0 0.0
          %1337 = vmatprep.subr.mxu0 0.0
          %1338 = vmatpush1.msra.mxu0 0.0
          %1339 = vmatprep.subr.mxu0 0.0
          %1340 = vmatpush1.msra.mxu0 0.0
          %1341 = vmatprep.subr.mxu0 0.0
          %1342 = vmatpush1.msra.mxu0 0.0
          %1343 = vmatprep.subr.mxu0 0.0
          %1344 = vmatpush1.msra.mxu0 0.0
          %1345 = vmatprep.subr.mxu0 0.0
          %1346 = vmatpush1.msra.mxu0 0.0
          %1347 = vmatprep.subr.mxu0 0.0
          %1348 = vmatpush1.msra.mxu0 0.0
          %1349 = vmatprep.subr.mxu0 0.0
          %1350 = vmatpush1.msra.mxu0 0.0
          %1351 = vmatprep.subr.mxu0 0.0
          %1352 = vmatpush1.msra.mxu0 0.0
          %1353 = vmatprep.subr.mxu0 0.0
          %1354 = vmatpush1.msra.mxu0 0.0
          %1355 = vmatprep.subr.mxu0 0.0
          %1356 = vmatpush1.msra.mxu0 0.0
          %1357 = vmatprep.subr.mxu0 0.0
          %1358 = vmatpush1.msra.mxu0 0.0
          %1359 = vmatprep.subr.mxu0 0.0
          %1360 = vmatpush1.msra.mxu0 0.0
          %1361 = vmatprep.subr.mxu0 0.0
          %1362 = vmatpush1.msra.mxu0 0.0
          %1363 = vmatprep.subr.mxu0 0.0
          %1364 = vmatpush1.msra.mxu0 0.0
          %1365 = vmatprep.subr.mxu0 0.0
          %1366 = vmatpush1.msra.mxu0 0.0
          %1367 = vmatprep.subr.mxu0 0.0
          %1368 = vmatpush1.msra.mxu0 0.0
          %1369 = vmatprep.subr.mxu0 0.0
          %1370 = vmatpush1.msra.mxu0 0.0
          %1371 = vmatprep.subr.mxu0 0.0
          %1372 = vmatpush1.msra.mxu0 0.0
          %1373 = vmatprep.subr.mxu0 0.0
          %1374 = vmatpush1.msra.mxu0 0.0
          %1375 = vmatprep.subr.mxu0 0.0
          %1376 = vmatpush1.msra.mxu0 0.0
          %1377 = vmatprep.subr.mxu0 0.0
          %1378 = vmatpush1.msra.mxu0 0.0
          %1379 = vmatprep.subr.mxu0 0.0
          %1380 = vmatpush1.msra.mxu0 0.0
          %1381 = vmatprep.subr.mxu0 0.0
          %1382 = vmatpush1.msra.mxu0 0.0
          %1383 = vmatprep.subr.mxu0 0.0
          %1384 = vmatpush1.msra.mxu0 0.0
          %1385 = vmatprep.subr.mxu0 0.0
          %1386 = vmatpush1.msra.mxu0 0.0
          %1387 = vmatprep.subr.mxu0 0.0
          %1388 = vmatpush1.msra.mxu0 0.0
          %1389 = vmatprep.mubr.f32.mxu0 0.0
          %1390 = vmatmul.mubr.f32.gmra.mrb[0].mxu0 %v761
          %v1391 = vpop.f32.mrb[0].mxu0
          %v1392 = vadd.f32 0.0, %v1391
          %v1393 = vpop.f32.mrb[0].mxu0
          %1394 = vmatprep.mubr.f32.mxu0 0.0
          %1395 = vmatmul.mubr.f32.gmra.mrb[0].mxu0 %v764
          %v1396 = vpop.f32.mrb[0].mxu0
          %v1397 = vadd.f32 0.0, %v1396
          %v1398 = vpop.f32.mrb[0].mxu0
          %1399 = vmatprep.mubr.f32.mxu0 0.0
          %1400 = vmatmul.mubr.f32.gmra.mrb[0].mxu0 %v767
          %v1401 = vpop.f32.mrb[0].mxu0
          %v1402 = vadd.f32 0.0, %v1401
          %v1403 = vpop.f32.mrb[0].mxu0
          %1404 = vmatprep.mubr.f32.mxu0 0.0
          %1405 = vmatmul.mubr.f32.gmra.mrb[0].mxu0 %v770
          %v1406 = vpop.f32.mrb[0].mxu0
          %v1407 = vadd.f32 0.0, %v1406
          %v1408 = vpop.f32.mrb[0].mxu0
          %1409 = vmatprep.mubr.f32.mxu0 0.0
          %1410 = vmatmul.mubr.f32.gmra.mrb[0].mxu0 %v773
          %v1411 = vpop.f32.mrb[0].mxu0
          %v1412 = vadd.f32 0.0, %v1411
          %v1413 = vpop.f32.mrb[0].mxu0
          %1414 = vmatprep.mubr.f32.mxu0 0.0
          %1415 = vmatmul.mubr.f32.gmra.mrb[0].mxu0 %v776
          %v1416 = vpop.f32.mrb[0].mxu0
          %v1417 = vadd.f32 0.0, %v1416
          %v1418 = vpop.f32.mrb[0].mxu0
          %1419 = vmatprep.mubr.f32.mxu0 0.0
          %1420 = vmatmul.mubr.f32.gmra.mrb[0].mxu0 %v779
          %v1421 = vpop.f32.mrb[0].mxu0
          %v1422 = vadd.f32 0.0, %v1421
          %v1423 = vpop.f32.mrb[0].mxu0
          %1424 = vmatprep.mubr.f32.mxu0 0.0
          %1425 = vmatmul.mubr.f32.gmra.mrb[0].mxu0 %v782
          %v1426 = vpop.f32.mrb[0].mxu0
          %v1427 = vadd.f32 0.0, %v1426
          %v1428 = vpop.f32.mrb[0].mxu0
          %1429 = vmatprep.mubr.f32.mxu0 0.0
          %1430 = vmatmul.mubr.f32.gmra.mrb[0].mxu0 %v785
          %v1431 = vpop.f32.mrb[0].mxu0
          %v1432 = vadd.f32 0.0, %v1431
          %v1433 = vpop.f32.mrb[0].mxu0
          %1434 = vmatprep.mubr.f32.mxu0 0.0
          %1435 = vmatmul.mubr.f32.gmra.mrb[0].mxu0 %v788
          %v1436 = vpop.f32.mrb[0].mxu0
          %v1437 = vadd.f32 0.0, %v1436
          %v1438 = vpop.f32.mrb[0].mxu0
          %1439 = vmatprep.mubr.f32.mxu0 0.0
          %1440 = vmatmul.mubr.f32.gmra.mrb[0].mxu0 %v791
          %v1441 = vpop.f32.mrb[0].mxu0
          %v1442 = vadd.f32 0.0, %v1441
          %v1443 = vpop.f32.mrb[0].mxu0
          %1444 = vmatprep.mubr.f32.mxu0 0.0
          %1445 = vmatmul.mubr.f32.gmra.mrb[0].mxu0 %v794
          %v1446 = vpop.f32.mrb[0].mxu0
          %v1447 = vadd.f32 0.0, %v1446
          %v1448 = vpop.f32.mrb[0].mxu0
          %1449 = vmatprep.mubr.f32.mxu0 0.0
          %1450 = vmatmul.mubr.f32.gmra.mrb[0].mxu0 %v797
          %v1451 = vpop.f32.mrb[0].mxu0
          %v1452 = vadd.f32 0.0, %v1451
          %v1453 = vpop.f32.mrb[0].mxu0
          %1454 = vmatprep.mubr.f32.mxu0 0.0
          %1455 = vmatmul.mubr.f32.gmra.mrb[0].mxu0 %v800
          %v1456 = vpop.f32.mrb[0].mxu0
          %v1457 = vadd.f32 0.0, %v1456
          %v1458 = vpop.f32.mrb[0].mxu0
          %1459 = vmatprep.mubr.f32.mxu0 0.0
          %1460 = vmatmul.mubr.f32.gmra.mrb[0].mxu0 %v803
          %v1461 = vpop.f32.mrb[0].mxu0
          %v1462 = vadd.f32 0.0, %v1461
          %v1463 = vpop.f32.mrb[0].mxu0
          %1464 = vmatprep.mubr.f32.mxu0 0.0
          %1465 = vmatmul.mubr.f32.gmra.mrb[0].mxu0 %v806
          %v1466 = vpop.f32.mrb[0].mxu0
          %v1467 = vadd.f32 0.0, %v1466
          %v1468 = vpop.f32.mrb[0].mxu0
          %1469 = vmatprep.mubr.f32.mxu0 0.0
          %1470 = vmatmul.mubr.f32.gmra.mrb[0].mxu0 %v809
          %v1471 = vpop.f32.mrb[0].mxu0
          %v1472 = vadd.f32 0.0, %v1471
          %v1473 = vpop.f32.mrb[0].mxu0
          %1474 = vmatprep.mubr.f32.mxu0 0.0
          %1475 = vmatmul.mubr.f32.gmra.mrb[0].mxu0 %v812
          %v1476 = vpop.f32.mrb[0].mxu0
          %v1477 = vadd.f32 0.0, %v1476
          %v1478 = vpop.f32.mrb[0].mxu0
          %1479 = vmatprep.mubr.f32.mxu0 0.0
          %1480 = vmatmul.mubr.f32.gmra.mrb[0].mxu0 %v815
          %v1481 = vpop.f32.mrb[0].mxu0
          %v1482 = vadd.f32 0.0, %v1481
          %v1483 = vpop.f32.mrb[0].mxu0
          %1484 = vmatprep.mubr.f32.mxu0 0.0
          %1485 = vmatmul.mubr.f32.gmra.mrb[0].mxu0 %v818
          %v1486 = vpop.f32.mrb[0].mxu0
          %v1487 = vadd.f32 0.0, %v1486
          %v1488 = vpop.f32.mrb[0].mxu0
          %1489 = vmatprep.mubr.f32.mxu0 0.0
          %1490 = vmatmul.mubr.f32.gmra.mrb[0].mxu0 %v821
          %v1491 = vpop.f32.mrb[0].mxu0
          %v1492 = vadd.f32 0.0, %v1491
          %v1493 = vpop.f32.mrb[0].mxu0
          %1494 = vmatprep.mubr.f32.mxu0 0.0
          %1495 = vmatmul.mubr.f32.gmra.mrb[0].mxu0 %v824
          %v1496 = vpop.f32.mrb[0].mxu0
          %v1497 = vadd.f32 0.0, %v1496
          %v1498 = vpop.f32.mrb[0].mxu0
          %1499 = vmatprep.mubr.f32.mxu0 0.0
          %1500 = vmatmul.mubr.f32.gmra.mrb[0].mxu0 %v827
          %v1501 = vpop.f32.mrb[0].mxu0
          %v1502 = vadd.f32 0.0, %v1501
          %v1503 = vpop.f32.mrb[0].mxu0
          %1504 = vmatprep.mubr.f32.mxu0 0.0
          %1505 = vmatmul.mubr.f32.gmra.mrb[0].mxu0 %v830
          %v1506 = vpop.f32.mrb[0].mxu0
          %v1507 = vadd.f32 0.0, %v1506
          %v1508 = vpop.f32.mrb[0].mxu0
          %1509 = vmatprep.mubr.f32.mxu0 0.0
          %1510 = vmatmul.mubr.f32.gmra.mrb[0].mxu0 %v833
          %v1511 = vpop.f32.mrb[0].mxu0
          %v1512 = vadd.f32 0.0, %v1511
          %v1513 = vpop.f32.mrb[0].mxu0
          %1514 = vmatprep.mubr.f32.mxu0 0.0
          %1515 = vmatmul.mubr.f32.gmra.mrb[0].mxu0 %v836
          %v1516 = vpop.f32.mrb[0].mxu0
          %v1517 = vadd.f32 0.0, %v1516
          %v1518 = vpop.f32.mrb[0].mxu0
          %1519 = vmatprep.mubr.f32.mxu0 0.0
          %1520 = vmatmul.mubr.f32.gmra.mrb[0].mxu0 %v839
          %v1521 = vpop.f32.mrb[0].mxu0
          %v1522 = vadd.f32 0.0, %v1521
          %v1523 = vpop.f32.mrb[0].mxu0
          %1524 = vmatprep.mubr.f32.mxu0 0.0
          %1525 = vmatmul.mubr.f32.gmra.mrb[0].mxu0 %v842
          %v1526 = vpop.f32.mrb[0].mxu0
          %v1527 = vadd.f32 0.0, %v1526
          %v1528 = vpop.f32.mrb[0].mxu0
          %1529 = vmatprep.mubr.f32.mxu0 0.0
          %1530 = vmatmul.mubr.f32.gmra.mrb[0].mxu0 %v845
          %v1531 = vpop.f32.mrb[0].mxu0
          %v1532 = vadd.f32 0.0, %v1531
          %v1533 = vpop.f32.mrb[0].mxu0
          %1534 = vmatprep.mubr.f32.mxu0 0.0
          %1535 = vmatmul.mubr.f32.gmra.mrb[0].mxu0 %v848
          %v1536 = vpop.f32.mrb[0].mxu0
          %v1537 = vadd.f32 0.0, %v1536
          %v1538 = vpop.f32.mrb[0].mxu0
          %1539 = vmatprep.mubr.f32.mxu0 0.0
          %1540 = vmatmul.mubr.f32.gmra.mrb[0].mxu0 %v1317
          %v1541 = vpop.f32.mrb[0].mxu0
          %v1542 = vadd.f32 0.0, %v1541
          %v1543 = vpop.f32.mrb[0].mxu0
          %1544 = vmatprep.mubr.f32.mxu0 0.0
          %1545 = vmatmul.mubr.f32.gmra.mrb[0].mxu0 %v1320
          %v1546 = vpop.f32.mrb[0].mxu0
          %v1547 = vadd.f32 0.0, %v1546
          %v1548 = vpop.f32.mrb[0].mxu0
          %1549 = vdwg.mxu0
          %v1550 = vadd.f32 %v1155, %v1392
          %v1551 = vadd.f32 %v1160, %v1397
          %v1552 = vadd.f32 %v1165, %v1402
          %v1553 = vadd.f32 %v1170, %v1407
          %v1554 = vadd.f32 %v1175, %v1412
          %v1555 = vadd.f32 %v1180, %v1417
          %v1556 = vadd.f32 %v1185, %v1422
          %v1557 = vadd.f32 %v1190, %v1427
          %v1558 = vadd.f32 %v1195, %v1432
          %v1559 = vadd.f32 %v1200, %v1437
          %v1560 = vadd.f32 %v1205, %v1442
          %v1561 = vadd.f32 %v1210, %v1447
          %v1562 = vadd.f32 %v1215, %v1452
          %v1563 = vadd.f32 %v1220, %v1457
          %v1564 = vadd.f32 %v1225, %v1462
          %v1565 = vadd.f32 %v1230, %v1467
          %v1566 = vadd.f32 %v1235, %v1472
          %v1567 = vadd.f32 %v1240, %v1477
          %v1568 = vadd.f32 %v1245, %v1482
          %v1569 = vadd.f32 %v1250, %v1487
          %v1570 = vadd.f32 %v1255, %v1492
          %v1571 = vadd.f32 %v1260, %v1497
          %v1572 = vadd.f32 %v1265, %v1502
          %v1573 = vadd.f32 %v1270, %v1507
          %v1574 = vadd.f32 %v1275, %v1512
          %v1575 = vadd.f32 %v1280, %v1517
          %v1576 = vadd.f32 %v1285, %v1522
          %v1577 = vadd.f32 %v1290, %v1527
          %v1578 = vadd.f32 %v1295, %v1532
          %v1579 = vadd.f32 %v1300, %v1537
          %v1580 = vadd.f32 %v1305, %v1542
          %v1581 = vadd.f32 %v1310, %v1547
          %v1582 = vld [vmem:[%s2] sm:$0x1]
          %v1584 = vlaneseq
          %v1585 = vshrl.u32 %v1584, 7
          %v1586 = vsub.s32 0, %v1585
          %v1587 = vrot.slane %v1582, %v1586
          %v1589 = vadd.f32 %v1550, %v1587
          %v1590 = vadd.f32 %v1551, %v1587
          %v1591 = vadd.f32 %v1552, %v1587
          %v1592 = vadd.f32 %v1553, %v1587
          %v1593 = vadd.f32 %v1554, %v1587
          %v1594 = vadd.f32 %v1555, %v1587
          %v1595 = vadd.f32 %v1556, %v1587
          %v1596 = vadd.f32 %v1557, %v1587
          %v1597 = vadd.f32 %v1558, %v1587
          %v1598 = vadd.f32 %v1559, %v1587
          %v1599 = vadd.f32 %v1560, %v1587
          %v1600 = vadd.f32 %v1561, %v1587
          %v1601 = vadd.f32 %v1562, %v1587
          %v1602 = vadd.f32 %v1563, %v1587
          %v1603 = vadd.f32 %v1564, %v1587
          %v1604 = vadd.f32 %v1565, %v1587
          %v1605 = vadd.f32 %v1566, %v1587
          %v1606 = vadd.f32 %v1567, %v1587
          %v1607 = vadd.f32 %v1568, %v1587
          %v1608 = vadd.f32 %v1569, %v1587
          %v1609 = vadd.f32 %v1570, %v1587
          %v1610 = vadd.f32 %v1571, %v1587
          %v1611 = vadd.f32 %v1572, %v1587
          %v1612 = vadd.f32 %v1573, %v1587
          %v1613 = vadd.f32 %v1574, %v1587
          %v1614 = vadd.f32 %v1575, %v1587
          %v1615 = vadd.f32 %v1576, %v1587
          %v1616 = vadd.f32 %v1577, %v1587
          %v1617 = vadd.f32 %v1578, %v1587
          %v1618 = vadd.f32 %v1579, %v1587
          %v1619 = vadd.f32 %v1580, %v1587
          %v1620 = vadd.f32 %v1581, %v1587
          %v1621 = vmax.f32 %v1589, 0.0
          %v1622 = vmax.f32 %v1590, 0.0
          %v1623 = vmax.f32 %v1591, 0.0
          %v1624 = vmax.f32 %v1592, 0.0
          %v1625 = vmax.f32 %v1593, 0.0
          %v1626 = vmax.f32 %v1594, 0.0
          %v1627 = vmax.f32 %v1595, 0.0
          %v1628 = vmax.f32 %v1596, 0.0
          %v1629 = vmax.f32 %v1597, 0.0
          %v1630 = vmax.f32 %v1598, 0.0
          %v1631 = vmax.f32 %v1599, 0.0
          %v1632 = vmax.f32 %v1600, 0.0
          %v1633 = vmax.f32 %v1601, 0.0
          %v1634 = vmax.f32 %v1602, 0.0
          %v1635 = vmax.f32 %v1603, 0.0
          %v1636 = vmax.f32 %v1604, 0.0
          %v1637 = vmax.f32 %v1605, 0.0
          %v1638 = vmax.f32 %v1606, 0.0
          %v1639 = vmax.f32 %v1607, 0.0
          %v1640 = vmax.f32 %v1608, 0.0
          %v1641 = vmax.f32 %v1609, 0.0
          %v1642 = vmax.f32 %v1610, 0.0
          %v1643 = vmax.f32 %v1611, 0.0
          %v1644 = vmax.f32 %v1612, 0.0
          %v1645 = vmax.f32 %v1613, 0.0
          %v1646 = vmax.f32 %v1614, 0.0
          %v1647 = vmax.f32 %v1615, 0.0
          %v1648 = vmax.f32 %v1616, 0.0
          %v1649 = vmax.f32 %v1617, 0.0
          %v1650 = vmax.f32 %v1618, 0.0
          %v1651 = vmax.f32 %v1619, 0.0
          %v1652 = vmax.f32 %v1620, 0.0
          %v1653 = vld [vmem:[%s3] sm:$0xff]
          %v1654 = vld [vmem:[%s3 + $0x8] sm:$0xff]
          %v1655 = vld [vmem:[%s3 + $0x10] sm:$0xff]
          %v1656 = vld [vmem:[%s3 + $0x18] sm:$0xff]
          %v1657 = vld [vmem:[%s4] sm:$0x1]
          %v1659 = vlaneseq
          %v1660 = vshrl.u32 %v1659, 7
          %v1661 = vsub.s32 0, %v1660
          %v1662 = vrot.slane %v1657, %v1661
          %vm1664 = vcmask 261120
          %v1666 = vsel %vm1664, %v1621, 0
          %v1669 = vsel %vm1664, %v1622, 0
          %v1672 = vsel %vm1664, %v1623, 0
          %v1675 = vsel %vm1664, %v1624, 0
          %v1678 = vsel %vm1664, %v1625, 0
          %v1681 = vsel %vm1664, %v1626, 0
          %v1684 = vsel %vm1664, %v1627, 0
          %v1687 = vsel %vm1664, %v1628, 0
          %v1690 = vsel %vm1664, %v1629, 0
          %v1693 = vsel %vm1664, %v1630, 0
          %v1696 = vsel %vm1664, %v1631, 0
          %v1699 = vsel %vm1664, %v1632, 0
          %v1702 = vsel %vm1664, %v1633, 0
          %v1705 = vsel %vm1664, %v1634, 0
          %v1708 = vsel %vm1664, %v1635, 0
          %v1711 = vsel %vm1664, %v1636, 0
          %v1714 = vsel %vm1664, %v1637, 0
          %v1717 = vsel %vm1664, %v1638, 0
          %v1720 = vsel %vm1664, %v1639, 0
          %v1723 = vsel %vm1664, %v1640, 0
          %v1726 = vsel %vm1664, %v1641, 0
          %v1729 = vsel %vm1664, %v1642, 0
          %v1732 = vsel %vm1664, %v1643, 0
          %v1735 = vsel %vm1664, %v1644, 0
          %v1738 = vsel %vm1664, %v1645, 0
          %v1741 = vsel %vm1664, %v1646, 0
          %v1744 = vsel %vm1664, %v1647, 0
          %v1747 = vsel %vm1664, %v1648, 0
          %v1750 = vsel %vm1664, %v1649, 0
          %v1753 = vsel %vm1664, %v1650, 0
          %v1756 = vsel %vm1664, %v1651, 0
          %v1759 = vsel %vm1664, %v1652, 0
          %1761 = vmatprep.subr.mxu0 0.0
          %1762 = vmatpush1.msra.mxu0 %v1653
          %1763 = vmatprep.subr.mxu0 0.0
          %1764 = vmatpush1.msra.mxu0 %v1654
          %1765 = vmatprep.subr.mxu0 0.0
          %1766 = vmatpush1.msra.mxu0 %v1655
          %1767 = vmatprep.subr.mxu0 0.0
          %1768 = vmatpush1.msra.mxu0 %v1656
          %1769 = vmatprep.subr.mxu0 0.0
          %1770 = vmatpush1.msra.mxu0 0.0
          %1771 = vmatprep.subr.mxu0 0.0
          %1772 = vmatpush1.msra.mxu0 0.0
          %1773 = vmatprep.subr.mxu0 0.0
          %1774 = vmatpush1.msra.mxu0 0.0
          %1775 = vmatprep.subr.mxu0 0.0
          %1776 = vmatpush1.msra.mxu0 0.0
          %1777 = vmatprep.subr.mxu0 0.0
          %1778 = vmatpush1.msra.mxu0 0.0
          %1779 = vmatprep.subr.mxu0 0.0
          %1780 = vmatpush1.msra.mxu0 0.0
          %1781 = vmatprep.subr.mxu0 0.0
          %1782 = vmatpush1.msra.mxu0 0.0
          %1783 = vmatprep.subr.mxu0 0.0
          %1784 = vmatpush1.msra.mxu0 0.0
          %1785 = vmatprep.subr.mxu0 0.0
          %1786 = vmatpush1.msra.mxu0 0.0
          %1787 = vmatprep.subr.mxu0 0.0
          %1788 = vmatpush1.msra.mxu0 0.0
          %1789 = vmatprep.subr.mxu0 0.0
          %1790 = vmatpush1.msra.mxu0 0.0
          %1791 = vmatprep.subr.mxu0 0.0
          %1792 = vmatpush1.msra.mxu0 0.0
          %1793 = vmatprep.subr.mxu0 0.0
          %1794 = vmatpush1.msra.mxu0 0.0
          %1795 = vmatprep.subr.mxu0 0.0
          %1796 = vmatpush1.msra.mxu0 0.0
          %1797 = vmatprep.subr.mxu0 0.0
          %1798 = vmatpush1.msra.mxu0 0.0
          %1799 = vmatprep.subr.mxu0 0.0
          %1800 = vmatpush1.msra.mxu0 0.0
          %1801 = vmatprep.subr.mxu0 0.0
          %1802 = vmatpush1.msra.mxu0 0.0
          %1803 = vmatprep.subr.mxu0 0.0
          %1804 = vmatpush1.msra.mxu0 0.0
          %1805 = vmatprep.subr.mxu0 0.0
          %1806 = vmatpush1.msra.mxu0 0.0
          %1807 = vmatprep.subr.mxu0 0.0
          %1808 = vmatpush1.msra.mxu0 0.0
          %1809 = vmatprep.subr.mxu0 0.0
          %1810 = vmatpush1.msra.mxu0 0.0
          %1811 = vmatprep.subr.mxu0 0.0
          %1812 = vmatpush1.msra.mxu0 0.0
          %1813 = vmatprep.subr.mxu0 0.0
          %1814 = vmatpush1.msra.mxu0 0.0
          %1815 = vmatprep.subr.mxu0 0.0
          %1816 = vmatpush1.msra.mxu0 0.0
          %1817 = vmatprep.subr.mxu0 0.0
          %1818 = vmatpush1.msra.mxu0 0.0
          %1819 = vmatprep.subr.mxu0 0.0
          %1820 = vmatpush1.msra.mxu0 0.0
          %1821 = vmatprep.subr.mxu0 0.0
          %1822 = vmatpush1.msra.mxu0 0.0
          %1823 = vmatprep.subr.mxu0 0.0
          %1824 = vmatpush1.msra.mxu0 0.0
          %1825 = vmatprep.mubr.f32.mxu0 0.0
          %1826 = vmatmul.mubr.f32.gmra.mrb[0].mxu0 %v1666
          %v1827 = vpop.f32.mrb[0].mxu0
          %v1828 = vadd.f32 %v1662, %v1827
          %v1829 = vpop.f32.mrb[0].mxu0
          %1830 = vmatprep.mubr.f32.mxu0 0.0
          %1831 = vmatmul.mubr.f32.gmra.mrb[0].mxu0 %v1669
          %v1832 = vpop.f32.mrb[0].mxu0
          %v1833 = vadd.f32 %v1662, %v1832
          %v1834 = vpop.f32.mrb[0].mxu0
          %1835 = vmatprep.mubr.f32.mxu0 0.0
          %1836 = vmatmul.mubr.f32.gmra.mrb[0].mxu0 %v1672
          %v1837 = vpop.f32.mrb[0].mxu0
          %v1838 = vadd.f32 %v1662, %v1837
          %v1839 = vpop.f32.mrb[0].mxu0
          %1840 = vmatprep.mubr.f32.mxu0 0.0
          %1841 = vmatmul.mubr.f32.gmra.mrb[0].mxu0 %v1675
          %v1842 = vpop.f32.mrb[0].mxu0
          %v1843 = vadd.f32 %v1662, %v1842
          %v1844 = vpop.f32.mrb[0].mxu0
          %1845 = vmatprep.mubr.f32.mxu0 0.0
          %1846 = vmatmul.mubr.f32.gmra.mrb[0].mxu0 %v1678
          %v1847 = vpop.f32.mrb[0].mxu0
          %v1848 = vadd.f32 %v1662, %v1847
          %v1849 = vpop.f32.mrb[0].mxu0
          %1850 = vmatprep.mubr.f32.mxu0 0.0
          %1851 = vmatmul.mubr.f32.gmra.mrb[0].mxu0 %v1681
          %v1852 = vpop.f32.mrb[0].mxu0
          %v1853 = vadd.f32 %v1662, %v1852
          %v1854 = vpop.f32.mrb[0].mxu0
          %1855 = vmatprep.mubr.f32.mxu0 0.0
          %1856 = vmatmul.mubr.f32.gmra.mrb[0].mxu0 %v1684
          %v1857 = vpop.f32.mrb[0].mxu0
          %v1858 = vadd.f32 %v1662, %v1857
          %v1859 = vpop.f32.mrb[0].mxu0
          %1860 = vmatprep.mubr.f32.mxu0 0.0
          %1861 = vmatmul.mubr.f32.gmra.mrb[0].mxu0 %v1687
          %v1862 = vpop.f32.mrb[0].mxu0
          %v1863 = vadd.f32 %v1662, %v1862
          %v1864 = vpop.f32.mrb[0].mxu0
          %1865 = vmatprep.mubr.f32.mxu0 0.0
          %1866 = vmatmul.mubr.f32.gmra.mrb[0].mxu0 %v1690
          %v1867 = vpop.f32.mrb[0].mxu0
          %v1868 = vadd.f32 %v1662, %v1867
          %v1869 = vpop.f32.mrb[0].mxu0
          %1870 = vmatprep.mubr.f32.mxu0 0.0
          %1871 = vmatmul.mubr.f32.gmra.mrb[0].mxu0 %v1693
          %v1872 = vpop.f32.mrb[0].mxu0
          %v1873 = vadd.f32 %v1662, %v1872
          %v1874 = vpop.f32.mrb[0].mxu0
          %1875 = vmatprep.mubr.f32.mxu0 0.0
          %1876 = vmatmul.mubr.f32.gmra.mrb[0].mxu0 %v1696
          %v1877 = vpop.f32.mrb[0].mxu0
          %v1878 = vadd.f32 %v1662, %v1877
          %v1879 = vpop.f32.mrb[0].mxu0
          %1880 = vmatprep.mubr.f32.mxu0 0.0
          %1881 = vmatmul.mubr.f32.gmra.mrb[0].mxu0 %v1699
          %v1882 = vpop.f32.mrb[0].mxu0
          %v1883 = vadd.f32 %v1662, %v1882
          %v1884 = vpop.f32.mrb[0].mxu0
          %1885 = vmatprep.mubr.f32.mxu0 0.0
          %1886 = vmatmul.mubr.f32.gmra.mrb[0].mxu0 %v1702
          %v1887 = vpop.f32.mrb[0].mxu0
          %v1888 = vadd.f32 %v1662, %v1887
          %v1889 = vpop.f32.mrb[0].mxu0
          %1890 = vmatprep.mubr.f32.mxu0 0.0
          %1891 = vmatmul.mubr.f32.gmra.mrb[0].mxu0 %v1705
          %v1892 = vpop.f32.mrb[0].mxu0
          %v1893 = vadd.f32 %v1662, %v1892
          %v1894 = vpop.f32.mrb[0].mxu0
          %1895 = vmatprep.mubr.f32.mxu0 0.0
          %1896 = vmatmul.mubr.f32.gmra.mrb[0].mxu0 %v1708
          %v1897 = vpop.f32.mrb[0].mxu0
          %v1898 = vadd.f32 %v1662, %v1897
          %v1899 = vpop.f32.mrb[0].mxu0
          %1900 = vmatprep.mubr.f32.mxu0 0.0
          %1901 = vmatmul.mubr.f32.gmra.mrb[0].mxu0 %v1711
          %v1902 = vpop.f32.mrb[0].mxu0
          %v1903 = vadd.f32 %v1662, %v1902
          %v1904 = vpop.f32.mrb[0].mxu0
          %1905 = vmatprep.mubr.f32.mxu0 0.0
          %1906 = vmatmul.mubr.f32.gmra.mrb[0].mxu0 %v1714
          %v1907 = vpop.f32.mrb[0].mxu0
          %v1908 = vadd.f32 %v1662, %v1907
          %v1909 = vpop.f32.mrb[0].mxu0
          %1910 = vmatprep.mubr.f32.mxu0 0.0
          %1911 = vmatmul.mubr.f32.gmra.mrb[0].mxu0 %v1717
          %v1912 = vpop.f32.mrb[0].mxu0
          %v1913 = vadd.f32 %v1662, %v1912
          %v1914 = vpop.f32.mrb[0].mxu0
          %1915 = vmatprep.mubr.f32.mxu0 0.0
          %1916 = vmatmul.mubr.f32.gmra.mrb[0].mxu0 %v1720
          %v1917 = vpop.f32.mrb[0].mxu0
          %v1918 = vadd.f32 %v1662, %v1917
          %v1919 = vpop.f32.mrb[0].mxu0
          %1920 = vmatprep.mubr.f32.mxu0 0.0
          %1921 = vmatmul.mubr.f32.gmra.mrb[0].mxu0 %v1723
          %v1922 = vpop.f32.mrb[0].mxu0
          %v1923 = vadd.f32 %v1662, %v1922
          %v1924 = vpop.f32.mrb[0].mxu0
          %1925 = vmatprep.mubr.f32.mxu0 0.0
          %1926 = vmatmul.mubr.f32.gmra.mrb[0].mxu0 %v1726
          %v1927 = vpop.f32.mrb[0].mxu0
          %v1928 = vadd.f32 %v1662, %v1927
          %v1929 = vpop.f32.mrb[0].mxu0
          %1930 = vmatprep.mubr.f32.mxu0 0.0
          %1931 = vmatmul.mubr.f32.gmra.mrb[0].mxu0 %v1729
          %v1932 = vpop.f32.mrb[0].mxu0
          %v1933 = vadd.f32 %v1662, %v1932
          %v1934 = vpop.f32.mrb[0].mxu0
          %1935 = vmatprep.mubr.f32.mxu0 0.0
          %1936 = vmatmul.mubr.f32.gmra.mrb[0].mxu0 %v1732
          %v1937 = vpop.f32.mrb[0].mxu0
          %v1938 = vadd.f32 %v1662, %v1937
          %v1939 = vpop.f32.mrb[0].mxu0
          %1940 = vmatprep.mubr.f32.mxu0 0.0
          %1941 = vmatmul.mubr.f32.gmra.mrb[0].mxu0 %v1735
          %v1942 = vpop.f32.mrb[0].mxu0
          %v1943 = vadd.f32 %v1662, %v1942
          %v1944 = vpop.f32.mrb[0].mxu0
          %1945 = vmatprep.mubr.f32.mxu0 0.0
          %1946 = vmatmul.mubr.f32.gmra.mrb[0].mxu0 %v1738
          %v1947 = vpop.f32.mrb[0].mxu0
          %v1948 = vadd.f32 %v1662, %v1947
          %v1949 = vpop.f32.mrb[0].mxu0
          %1950 = vmatprep.mubr.f32.mxu0 0.0
          %1951 = vmatmul.mubr.f32.gmra.mrb[0].mxu0 %v1741
          %v1952 = vpop.f32.mrb[0].mxu0
          %v1953 = vadd.f32 %v1662, %v1952
          %v1954 = vpop.f32.mrb[0].mxu0
          %1955 = vmatprep.mubr.f32.mxu0 0.0
          %1956 = vmatmul.mubr.f32.gmra.mrb[0].mxu0 %v1744
          %v1957 = vpop.f32.mrb[0].mxu0
          %v1958 = vadd.f32 %v1662, %v1957
          %v1959 = vpop.f32.mrb[0].mxu0
          %1960 = vmatprep.mubr.f32.mxu0 0.0
          %1961 = vmatmul.mubr.f32.gmra.mrb[0].mxu0 %v1747
          %v1962 = vpop.f32.mrb[0].mxu0
          %v1963 = vadd.f32 %v1662, %v1962
          %v1964 = vpop.f32.mrb[0].mxu0
          %1965 = vmatprep.mubr.f32.mxu0 0.0
          %1966 = vmatmul.mubr.f32.gmra.mrb[0].mxu0 %v1750
          %v1967 = vpop.f32.mrb[0].mxu0
          %v1968 = vadd.f32 %v1662, %v1967
          %v1969 = vpop.f32.mrb[0].mxu0
          %1970 = vmatprep.mubr.f32.mxu0 0.0
          %1971 = vmatmul.mubr.f32.gmra.mrb[0].mxu0 %v1753
          %v1972 = vpop.f32.mrb[0].mxu0
          %v1973 = vadd.f32 %v1662, %v1972
          %v1974 = vpop.f32.mrb[0].mxu0
          %1975 = vmatprep.mubr.f32.mxu0 0.0
          %1976 = vmatmul.mubr.f32.gmra.mrb[0].mxu0 %v1756
          %v1977 = vpop.f32.mrb[0].mxu0
          %v1978 = vadd.f32 %v1662, %v1977
          %v1979 = vpop.f32.mrb[0].mxu0
          %1980 = vmatprep.mubr.f32.mxu0 0.0
          %1981 = vmatmul.mubr.f32.gmra.mrb[0].mxu0 %v1759
          %v1982 = vpop.f32.mrb[0].mxu0
          %v1983 = vadd.f32 %v1662, %v1982
          %v1984 = vpop.f32.mrb[0].mxu0
          %1985 = vdwg.mxu0
          %2018 = vset.pattern.permute.xlu0 0
          %2019 = vperm.xlu0 %2018, %v1828
          %v2020 = vpop.permute.xlu0 %2019
          %2021 = vset.pattern.permute.xlu0 0
          %2022 = vperm.xlu0 %2021, %v1833
          %v2023 = vpop.permute.xlu0 %2022
          %2024 = vset.pattern.permute.xlu0 0
          %2025 = vperm.xlu0 %2024, %v1838
          %v2026 = vpop.permute.xlu0 %2025
          %2027 = vset.pattern.permute.xlu0 0
          %2028 = vperm.xlu0 %2027, %v1843
          %v2029 = vpop.permute.xlu0 %2028
          %2030 = vset.pattern.permute.xlu0 0
          %2031 = vperm.xlu0 %2030, %v1848
          %v2032 = vpop.permute.xlu0 %2031
          %2033 = vset.pattern.permute.xlu0 0
          %2034 = vperm.xlu0 %2033, %v1853
          %v2035 = vpop.permute.xlu0 %2034
          %2036 = vset.pattern.permute.xlu0 0
          %2037 = vperm.xlu0 %2036, %v1858
          %v2038 = vpop.permute.xlu0 %2037
          %2039 = vset.pattern.permute.xlu0 0
          %2040 = vperm.xlu0 %2039, %v1863
          %v2041 = vpop.permute.xlu0 %2040
          %2042 = vset.pattern.permute.xlu0 0
          %2043 = vperm.xlu0 %2042, %v1868
          %v2044 = vpop.permute.xlu0 %2043
          %2045 = vset.pattern.permute.xlu0 0
          %2046 = vperm.xlu0 %2045, %v1873
          %v2047 = vpop.permute.xlu0 %2046
          %2048 = vset.pattern.permute.xlu0 0
          %2049 = vperm.xlu0 %2048, %v1878
          %v2050 = vpop.permute.xlu0 %2049
          %2051 = vset.pattern.permute.xlu0 0
          %2052 = vperm.xlu0 %2051, %v1883
          %v2053 = vpop.permute.xlu0 %2052
          %2054 = vset.pattern.permute.xlu0 0
          %2055 = vperm.xlu0 %2054, %v1888
          %v2056 = vpop.permute.xlu0 %2055
          %2057 = vset.pattern.permute.xlu0 0
          %2058 = vperm.xlu0 %2057, %v1893
          %v2059 = vpop.permute.xlu0 %2058
          %2060 = vset.pattern.permute.xlu0 0
          %2061 = vperm.xlu0 %2060, %v1898
          %v2062 = vpop.permute.xlu0 %2061
          %2063 = vset.pattern.permute.xlu0 0
          %2064 = vperm.xlu0 %2063, %v1903
          %v2065 = vpop.permute.xlu0 %2064
          %2066 = vset.pattern.permute.xlu0 0
          %2067 = vperm.xlu0 %2066, %v1908
          %v2068 = vpop.permute.xlu0 %2067
          %2069 = vset.pattern.permute.xlu0 0
          %2070 = vperm.xlu0 %2069, %v1913
          %v2071 = vpop.permute.xlu0 %2070
          %2072 = vset.pattern.permute.xlu0 0
          %2073 = vperm.xlu0 %2072, %v1918
          %v2074 = vpop.permute.xlu0 %2073
          %2075 = vset.pattern.permute.xlu0 0
          %2076 = vperm.xlu0 %2075, %v1923
          %v2077 = vpop.permute.xlu0 %2076
          %2078 = vset.pattern.permute.xlu0 0
          %2079 = vperm.xlu0 %2078, %v1928
          %v2080 = vpop.permute.xlu0 %2079
          %2081 = vset.pattern.permute.xlu0 0
          %2082 = vperm.xlu0 %2081, %v1933
          %v2083 = vpop.permute.xlu0 %2082
          %2084 = vset.pattern.permute.xlu0 0
          %2085 = vperm.xlu0 %2084, %v1938
          %v2086 = vpop.permute.xlu0 %2085
          %2087 = vset.pattern.permute.xlu0 0
          %2088 = vperm.xlu0 %2087, %v1943
          %v2089 = vpop.permute.xlu0 %2088
          %2090 = vset.pattern.permute.xlu0 0
          %2091 = vperm.xlu0 %2090, %v1948
          %v2092 = vpop.permute.xlu0 %2091
          %2093 = vset.pattern.permute.xlu0 0
          %2094 = vperm.xlu0 %2093, %v1953
          %v2095 = vpop.permute.xlu0 %2094
          %2096 = vset.pattern.permute.xlu0 0
          %2097 = vperm.xlu0 %2096, %v1958
          %v2098 = vpop.permute.xlu0 %2097
          %2099 = vset.pattern.permute.xlu0 0
          %2100 = vperm.xlu0 %2099, %v1963
          %v2101 = vpop.permute.xlu0 %2100
          %2102 = vset.pattern.permute.xlu0 0
          %2103 = vperm.xlu0 %2102, %v1968
          %v2104 = vpop.permute.xlu0 %2103
          %2105 = vset.pattern.permute.xlu0 0
          %2106 = vperm.xlu0 %2105, %v1973
          %v2107 = vpop.permute.xlu0 %2106
          %2108 = vset.pattern.permute.xlu0 0
          %2109 = vperm.xlu0 %2108, %v1978
          %v2110 = vpop.permute.xlu0 %2109
          %2111 = vset.pattern.permute.xlu0 0
          %2112 = vperm.xlu0 %2111, %v1983
          %v2113 = vpop.permute.xlu0 %2112
          %v2114 = vlaneseq
          %v2115 = vand.u32 %v2114, 127
          %v2116 = vlaneseq
          %v2117 = vshrl.u32 %v2116, 7
          %v2118 = vsub.s32 %v2115, %v2117
          %v2119 = vrot.slane %v2020, %v2118
          %v2120 = vadd.s32 %v2115, 4294967288
          %v2121 = vlaneseq
          %v2122 = vshrl.u32 %v2121, 7
          %v2123 = vsub.s32 %v2120, %v2122
          %v2124 = vrot.slane %v2023, %v2123
          %vm2125 = vcmask 130112
          %v2126 = vsel %vm2125, %v2124, %v2119
          %v2127 = vlaneseq
          %v2128 = vshrl.u32 %v2127, 7
          %v2129 = vsub.s32 %v2115, %v2128
          %v2130 = vrot.slane %v2026, %v2129
          %v2131 = vlaneseq
          %v2132 = vshrl.u32 %v2131, 7
          %v2133 = vsub.s32 %v2120, %v2132
          %v2134 = vrot.slane %v2029, %v2133
          %v2135 = vsel %vm2125, %v2134, %v2130
          %v2136 = vlaneseq
          %v2137 = vshrl.u32 %v2136, 7
          %v2138 = vsub.s32 %v2115, %v2137
          %v2139 = vrot.slane %v2032, %v2138
          %v2140 = vlaneseq
          %v2141 = vshrl.u32 %v2140, 7
          %v2142 = vsub.s32 %v2120, %v2141
          %v2143 = vrot.slane %v2035, %v2142
          %v2144 = vsel %vm2125, %v2143, %v2139
          %v2145 = vlaneseq
          %v2146 = vshrl.u32 %v2145, 7
          %v2147 = vsub.s32 %v2115, %v2146
          %v2148 = vrot.slane %v2038, %v2147
          %v2149 = vlaneseq
          %v2150 = vshrl.u32 %v2149, 7
          %v2151 = vsub.s32 %v2120, %v2150
          %v2152 = vrot.slane %v2041, %v2151
          %v2153 = vsel %vm2125, %v2152, %v2148
          %v2154 = vlaneseq
          %v2155 = vshrl.u32 %v2154, 7
          %v2156 = vsub.s32 %v2115, %v2155
          %v2157 = vrot.slane %v2044, %v2156
          %v2158 = vlaneseq
          %v2159 = vshrl.u32 %v2158, 7
          %v2160 = vsub.s32 %v2120, %v2159
          %v2161 = vrot.slane %v2047, %v2160
          %v2162 = vsel %vm2125, %v2161, %v2157
          %v2163 = vlaneseq
          %v2164 = vshrl.u32 %v2163, 7
          %v2165 = vsub.s32 %v2115, %v2164
          %v2166 = vrot.slane %v2050, %v2165
          %v2167 = vlaneseq
          %v2168 = vshrl.u32 %v2167, 7
          %v2169 = vsub.s32 %v2120, %v2168
          %v2170 = vrot.slane %v2053, %v2169
          %v2171 = vsel %vm2125, %v2170, %v2166
          %v2172 = vlaneseq
          %v2173 = vshrl.u32 %v2172, 7
          %v2174 = vsub.s32 %v2115, %v2173
          %v2175 = vrot.slane %v2056, %v2174
          %v2176 = vlaneseq
          %v2177 = vshrl.u32 %v2176, 7
          %v2178 = vsub.s32 %v2120, %v2177
          %v2179 = vrot.slane %v2059, %v2178
          %v2180 = vsel %vm2125, %v2179, %v2175
          %v2181 = vlaneseq
          %v2182 = vshrl.u32 %v2181, 7
          %v2183 = vsub.s32 %v2115, %v2182
          %v2184 = vrot.slane %v2062, %v2183
          %v2185 = vlaneseq
          %v2186 = vshrl.u32 %v2185, 7
          %v2187 = vsub.s32 %v2120, %v2186
          %v2188 = vrot.slane %v2065, %v2187
          %v2189 = vsel %vm2125, %v2188, %v2184
          %v2190 = vlaneseq
          %v2191 = vshrl.u32 %v2190, 7
          %v2192 = vsub.s32 %v2115, %v2191
          %v2193 = vrot.slane %v2068, %v2192
          %v2194 = vlaneseq
          %v2195 = vshrl.u32 %v2194, 7
          %v2196 = vsub.s32 %v2120, %v2195
          %v2197 = vrot.slane %v2071, %v2196
          %v2198 = vsel %vm2125, %v2197, %v2193
          %v2199 = vlaneseq
          %v2200 = vshrl.u32 %v2199, 7
          %v2201 = vsub.s32 %v2115, %v2200
          %v2202 = vrot.slane %v2074, %v2201
          %v2203 = vlaneseq
          %v2204 = vshrl.u32 %v2203, 7
          %v2205 = vsub.s32 %v2120, %v2204
          %v2206 = vrot.slane %v2077, %v2205
          %v2207 = vsel %vm2125, %v2206, %v2202
          %v2208 = vlaneseq
          %v2209 = vshrl.u32 %v2208, 7
          %v2210 = vsub.s32 %v2115, %v2209
          %v2211 = vrot.slane %v2080, %v2210
          %v2212 = vlaneseq
          %v2213 = vshrl.u32 %v2212, 7
          %v2214 = vsub.s32 %v2120, %v2213
          %v2215 = vrot.slane %v2083, %v2214
          %v2216 = vsel %vm2125, %v2215, %v2211
          %v2217 = vlaneseq
          %v2218 = vshrl.u32 %v2217, 7
          %v2219 = vsub.s32 %v2115, %v2218
          %v2220 = vrot.slane %v2086, %v2219
          %v2221 = vlaneseq
          %v2222 = vshrl.u32 %v2221, 7
          %v2223 = vsub.s32 %v2120, %v2222
          %v2224 = vrot.slane %v2089, %v2223
          %v2225 = vsel %vm2125, %v2224, %v2220
          %v2226 = vlaneseq
          %v2227 = vshrl.u32 %v2226, 7
          %v2228 = vsub.s32 %v2115, %v2227
          %v2229 = vrot.slane %v2092, %v2228
          %v2230 = vlaneseq
          %v2231 = vshrl.u32 %v2230, 7
          %v2232 = vsub.s32 %v2120, %v2231
          %v2233 = vrot.slane %v2095, %v2232
          %v2234 = vsel %vm2125, %v2233, %v2229
          %v2235 = vlaneseq
          %v2236 = vshrl.u32 %v2235, 7
          %v2237 = vsub.s32 %v2115, %v2236
          %v2238 = vrot.slane %v2098, %v2237
          %v2239 = vlaneseq
          %v2240 = vshrl.u32 %v2239, 7
          %v2241 = vsub.s32 %v2120, %v2240
          %v2242 = vrot.slane %v2101, %v2241
          %v2243 = vsel %vm2125, %v2242, %v2238
          %v2244 = vlaneseq
          %v2245 = vshrl.u32 %v2244, 7
          %v2246 = vsub.s32 %v2115, %v2245
          %v2247 = vrot.slane %v2104, %v2246
          %v2248 = vlaneseq
          %v2249 = vshrl.u32 %v2248, 7
          %v2250 = vsub.s32 %v2120, %v2249
          %v2251 = vrot.slane %v2107, %v2250
          %v2252 = vsel %vm2125, %v2251, %v2247
          %v2253 = vlaneseq
          %v2254 = vshrl.u32 %v2253, 7
          %v2255 = vsub.s32 %v2115, %v2254
          %v2256 = vrot.slane %v2110, %v2255
          %v2257 = vlaneseq
          %v2258 = vshrl.u32 %v2257, 7
          %v2259 = vsub.s32 %v2120, %v2258
          %v2260 = vrot.slane %v2113, %v2259
          %v2261 = vsel %vm2125, %v2260, %v2256
          %vm2262 = vcmask 1041409
          %v2263 = vsel %vm2262, %v2135, %v2126
          %vm2264 = vcmask 1042434
          %v2265 = vsel %vm2264, %v2144, %v2263
          %vm2266 = vcmask 1043459
          %v2267 = vsel %vm2266, %v2153, %v2265
          %vm2268 = vcmask 1044484
          %v2269 = vsel %vm2268, %v2162, %v2267
          %vm2270 = vcmask 1045509
          %v2271 = vsel %vm2270, %v2171, %v2269
          %vm2272 = vcmask 1046534
          %v2273 = vsel %vm2272, %v2180, %v2271
          %vm2274 = vcmask 1047559
          %v2275 = vsel %vm2274, %v2189, %v2273
          %v2276 = vsel %vm2262, %v2207, %v2198
          %v2277 = vsel %vm2264, %v2216, %v2276
          %v2278 = vsel %vm2266, %v2225, %v2277
          %v2279 = vsel %vm2268, %v2234, %v2278
          %v2280 = vsel %vm2270, %v2243, %v2279
          %v2281 = vsel %vm2272, %v2252, %v2280
          %v2282 = vsel %vm2274, %v2261, %v2281
          %2283 = vset.pattern.permute.xlu0 1
          %2284 = vperm.xlu0 %2283, %v1828
          %v2285 = vpop.permute.xlu0 %2284
          %2286 = vset.pattern.permute.xlu0 1
          %2287 = vperm.xlu0 %2286, %v1833
          %v2288 = vpop.permute.xlu0 %2287
          %2289 = vset.pattern.permute.xlu0 1
          %2290 = vperm.xlu0 %2289, %v1838
          %v2291 = vpop.permute.xlu0 %2290
          %2292 = vset.pattern.permute.xlu0 1
          %2293 = vperm.xlu0 %2292, %v1843
          %v2294 = vpop.permute.xlu0 %2293
          %2295 = vset.pattern.permute.xlu0 1
          %2296 = vperm.xlu0 %2295, %v1848
          %v2297 = vpop.permute.xlu0 %2296
          %2298 = vset.pattern.permute.xlu0 1
          %2299 = vperm.xlu0 %2298, %v1853
          %v2300 = vpop.permute.xlu0 %2299
          %2301 = vset.pattern.permute.xlu0 1
          %2302 = vperm.xlu0 %2301, %v1858
          %v2303 = vpop.permute.xlu0 %2302
          %2304 = vset.pattern.permute.xlu0 1
          %2305 = vperm.xlu0 %2304, %v1863
          %v2306 = vpop.permute.xlu0 %2305
          %2307 = vset.pattern.permute.xlu0 1
          %2308 = vperm.xlu0 %2307, %v1868
          %v2309 = vpop.permute.xlu0 %2308
          %2310 = vset.pattern.permute.xlu0 1
          %2311 = vperm.xlu0 %2310, %v1873
          %v2312 = vpop.permute.xlu0 %2311
          %2313 = vset.pattern.permute.xlu0 1
          %2314 = vperm.xlu0 %2313, %v1878
          %v2315 = vpop.permute.xlu0 %2314
          %2316 = vset.pattern.permute.xlu0 1
          %2317 = vperm.xlu0 %2316, %v1883
          %v2318 = vpop.permute.xlu0 %2317
          %2319 = vset.pattern.permute.xlu0 1
          %2320 = vperm.xlu0 %2319, %v1888
          %v2321 = vpop.permute.xlu0 %2320
          %2322 = vset.pattern.permute.xlu0 1
          %2323 = vperm.xlu0 %2322, %v1893
          %v2324 = vpop.permute.xlu0 %2323
          %2325 = vset.pattern.permute.xlu0 1
          %2326 = vperm.xlu0 %2325, %v1898
          %v2327 = vpop.permute.xlu0 %2326
          %2328 = vset.pattern.permute.xlu0 1
          %2329 = vperm.xlu0 %2328, %v1903
          %v2330 = vpop.permute.xlu0 %2329
          %2331 = vset.pattern.permute.xlu0 1
          %2332 = vperm.xlu0 %2331, %v1908
          %v2333 = vpop.permute.xlu0 %2332
          %2334 = vset.pattern.permute.xlu0 1
          %2335 = vperm.xlu0 %2334, %v1913
          %v2336 = vpop.permute.xlu0 %2335
          %2337 = vset.pattern.permute.xlu0 1
          %2338 = vperm.xlu0 %2337, %v1918
          %v2339 = vpop.permute.xlu0 %2338
          %2340 = vset.pattern.permute.xlu0 1
          %2341 = vperm.xlu0 %2340, %v1923
          %v2342 = vpop.permute.xlu0 %2341
          %2343 = vset.pattern.permute.xlu0 1
          %2344 = vperm.xlu0 %2343, %v1928
          %v2345 = vpop.permute.xlu0 %2344
          %2346 = vset.pattern.permute.xlu0 1
          %2347 = vperm.xlu0 %2346, %v1933
          %v2348 = vpop.permute.xlu0 %2347
          %2349 = vset.pattern.permute.xlu0 1
          %2350 = vperm.xlu0 %2349, %v1938
          %v2351 = vpop.permute.xlu0 %2350
          %2352 = vset.pattern.permute.xlu0 1
          %2353 = vperm.xlu0 %2352, %v1943
          %v2354 = vpop.permute.xlu0 %2353
          %2355 = vset.pattern.permute.xlu0 1
          %2356 = vperm.xlu0 %2355, %v1948
          %v2357 = vpop.permute.xlu0 %2356
          %2358 = vset.pattern.permute.xlu0 1
          %2359 = vperm.xlu0 %2358, %v1953
          %v2360 = vpop.permute.xlu0 %2359
          %2361 = vset.pattern.permute.xlu0 1
          %2362 = vperm.xlu0 %2361, %v1958
          %v2363 = vpop.permute.xlu0 %2362
          %2364 = vset.pattern.permute.xlu0 1
          %2365 = vperm.xlu0 %2364, %v1963
          %v2366 = vpop.permute.xlu0 %2365
          %2367 = vset.pattern.permute.xlu0 1
          %2368 = vperm.xlu0 %2367, %v1968
          %v2369 = vpop.permute.xlu0 %2368
          %2370 = vset.pattern.permute.xlu0 1
          %2371 = vperm.xlu0 %2370, %v1973
          %v2372 = vpop.permute.xlu0 %2371
          %2373 = vset.pattern.permute.xlu0 1
          %2374 = vperm.xlu0 %2373, %v1978
          %v2375 = vpop.permute.xlu0 %2374
          %2376 = vset.pattern.permute.xlu0 1
          %2377 = vperm.xlu0 %2376, %v1983
          %v2378 = vpop.permute.xlu0 %2377
          %v2379 = vlaneseq
          %v2380 = vshrl.u32 %v2379, 7
          %v2381 = vsub.s32 %v2115, %v2380
          %v2382 = vrot.slane %v2285, %v2381
          %v2383 = vlaneseq
          %v2384 = vshrl.u32 %v2383, 7
          %v2385 = vsub.s32 %v2120, %v2384
          %v2386 = vrot.slane %v2288, %v2385
          %v2387 = vsel %vm2125, %v2386, %v2382
          %v2388 = vlaneseq
          %v2389 = vshrl.u32 %v2388, 7
          %v2390 = vsub.s32 %v2115, %v2389
          %v2391 = vrot.slane %v2291, %v2390
          %v2392 = vlaneseq
          %v2393 = vshrl.u32 %v2392, 7
          %v2394 = vsub.s32 %v2120, %v2393
          %v2395 = vrot.slane %v2294, %v2394
          %v2396 = vsel %vm2125, %v2395, %v2391
          %v2397 = vlaneseq
          %v2398 = vshrl.u32 %v2397, 7
          %v2399 = vsub.s32 %v2115, %v2398
          %v2400 = vrot.slane %v2297, %v2399
          %v2401 = vlaneseq
          %v2402 = vshrl.u32 %v2401, 7
          %v2403 = vsub.s32 %v2120, %v2402
          %v2404 = vrot.slane %v2300, %v2403
          %v2405 = vsel %vm2125, %v2404, %v2400
          %v2406 = vlaneseq
          %v2407 = vshrl.u32 %v2406, 7
          %v2408 = vsub.s32 %v2115, %v2407
          %v2409 = vrot.slane %v2303, %v2408
          %v2410 = vlaneseq
          %v2411 = vshrl.u32 %v2410, 7
          %v2412 = vsub.s32 %v2120, %v2411
          %v2413 = vrot.slane %v2306, %v2412
          %v2414 = vsel %vm2125, %v2413, %v2409
          %v2415 = vlaneseq
          %v2416 = vshrl.u32 %v2415, 7
          %v2417 = vsub.s32 %v2115, %v2416
          %v2418 = vrot.slane %v2309, %v2417
          %v2419 = vlaneseq
          %v2420 = vshrl.u32 %v2419, 7
          %v2421 = vsub.s32 %v2120, %v2420
          %v2422 = vrot.slane %v2312, %v2421
          %v2423 = vsel %vm2125, %v2422, %v2418
          %v2424 = vlaneseq
          %v2425 = vshrl.u32 %v2424, 7
          %v2426 = vsub.s32 %v2115, %v2425
          %v2427 = vrot.slane %v2315, %v2426
          %v2428 = vlaneseq
          %v2429 = vshrl.u32 %v2428, 7
          %v2430 = vsub.s32 %v2120, %v2429
          %v2431 = vrot.slane %v2318, %v2430
          %v2432 = vsel %vm2125, %v2431, %v2427
          %v2433 = vlaneseq
          %v2434 = vshrl.u32 %v2433, 7
          %v2435 = vsub.s32 %v2115, %v2434
          %v2436 = vrot.slane %v2321, %v2435
          %v2437 = vlaneseq
          %v2438 = vshrl.u32 %v2437, 7
          %v2439 = vsub.s32 %v2120, %v2438
          %v2440 = vrot.slane %v2324, %v2439
          %v2441 = vsel %vm2125, %v2440, %v2436
          %v2442 = vlaneseq
          %v2443 = vshrl.u32 %v2442, 7
          %v2444 = vsub.s32 %v2115, %v2443
          %v2445 = vrot.slane %v2327, %v2444
          %v2446 = vlaneseq
          %v2447 = vshrl.u32 %v2446, 7
          %v2448 = vsub.s32 %v2120, %v2447
          %v2449 = vrot.slane %v2330, %v2448
          %v2450 = vsel %vm2125, %v2449, %v2445
          %v2451 = vlaneseq
          %v2452 = vshrl.u32 %v2451, 7
          %v2453 = vsub.s32 %v2115, %v2452
          %v2454 = vrot.slane %v2333, %v2453
          %v2455 = vlaneseq
          %v2456 = vshrl.u32 %v2455, 7
          %v2457 = vsub.s32 %v2120, %v2456
          %v2458 = vrot.slane %v2336, %v2457
          %v2459 = vsel %vm2125, %v2458, %v2454
          %v2460 = vlaneseq
          %v2461 = vshrl.u32 %v2460, 7
          %v2462 = vsub.s32 %v2115, %v2461
          %v2463 = vrot.slane %v2339, %v2462
          %v2464 = vlaneseq
          %v2465 = vshrl.u32 %v2464, 7
          %v2466 = vsub.s32 %v2120, %v2465
          %v2467 = vrot.slane %v2342, %v2466
          %v2468 = vsel %vm2125, %v2467, %v2463
          %v2469 = vlaneseq
          %v2470 = vshrl.u32 %v2469, 7
          %v2471 = vsub.s32 %v2115, %v2470
          %v2472 = vrot.slane %v2345, %v2471
          %v2473 = vlaneseq
          %v2474 = vshrl.u32 %v2473, 7
          %v2475 = vsub.s32 %v2120, %v2474
          %v2476 = vrot.slane %v2348, %v2475
          %v2477 = vsel %vm2125, %v2476, %v2472
          %v2478 = vlaneseq
          %v2479 = vshrl.u32 %v2478, 7
          %v2480 = vsub.s32 %v2115, %v2479
          %v2481 = vrot.slane %v2351, %v2480
          %v2482 = vlaneseq
          %v2483 = vshrl.u32 %v2482, 7
          %v2484 = vsub.s32 %v2120, %v2483
          %v2485 = vrot.slane %v2354, %v2484
          %v2486 = vsel %vm2125, %v2485, %v2481
          %v2487 = vlaneseq
          %v2488 = vshrl.u32 %v2487, 7
          %v2489 = vsub.s32 %v2115, %v2488
          %v2490 = vrot.slane %v2357, %v2489
          %v2491 = vlaneseq
          %v2492 = vshrl.u32 %v2491, 7
          %v2493 = vsub.s32 %v2120, %v2492
          %v2494 = vrot.slane %v2360, %v2493
          %v2495 = vsel %vm2125, %v2494, %v2490
          %v2496 = vlaneseq
          %v2497 = vshrl.u32 %v2496, 7
          %v2498 = vsub.s32 %v2115, %v2497
          %v2499 = vrot.slane %v2363, %v2498
          %v2500 = vlaneseq
          %v2501 = vshrl.u32 %v2500, 7
          %v2502 = vsub.s32 %v2120, %v2501
          %v2503 = vrot.slane %v2366, %v2502
          %v2504 = vsel %vm2125, %v2503, %v2499
          %v2505 = vlaneseq
          %v2506 = vshrl.u32 %v2505, 7
          %v2507 = vsub.s32 %v2115, %v2506
          %v2508 = vrot.slane %v2369, %v2507
          %v2509 = vlaneseq
          %v2510 = vshrl.u32 %v2509, 7
          %v2511 = vsub.s32 %v2120, %v2510
          %v2512 = vrot.slane %v2372, %v2511
          %v2513 = vsel %vm2125, %v2512, %v2508
          %v2514 = vlaneseq
          %v2515 = vshrl.u32 %v2514, 7
          %v2516 = vsub.s32 %v2115, %v2515
          %v2517 = vrot.slane %v2375, %v2516
          %v2518 = vlaneseq
          %v2519 = vshrl.u32 %v2518, 7
          %v2520 = vsub.s32 %v2120, %v2519
          %v2521 = vrot.slane %v2378, %v2520
          %v2522 = vsel %vm2125, %v2521, %v2517
          %v2523 = vsel %vm2262, %v2396, %v2387
          %v2524 = vsel %vm2264, %v2405, %v2523
          %v2525 = vsel %vm2266, %v2414, %v2524
          %v2526 = vsel %vm2268, %v2423, %v2525
          %v2527 = vsel %vm2270, %v2432, %v2526
          %v2528 = vsel %vm2272, %v2441, %v2527
          %v2529 = vsel %vm2274, %v2450, %v2528
          %v2530 = vsel %vm2262, %v2468, %v2459
          %v2531 = vsel %vm2264, %v2477, %v2530
          %v2532 = vsel %vm2266, %v2486, %v2531
          %v2533 = vsel %vm2268, %v2495, %v2532
          %v2534 = vsel %vm2270, %v2504, %v2533
          %v2535 = vsel %vm2272, %v2513, %v2534
          %v2536 = vsel %vm2274, %v2522, %v2535
          %2537 = vset.pattern.permute.xlu0 2
          %2538 = vperm.xlu0 %2537, %v1828
          %v2539 = vpop.permute.xlu0 %2538
          %2540 = vset.pattern.permute.xlu0 2
          %2541 = vperm.xlu0 %2540, %v1833
          %v2542 = vpop.permute.xlu0 %2541
          %2543 = vset.pattern.permute.xlu0 2
          %2544 = vperm.xlu0 %2543, %v1838
          %v2545 = vpop.permute.xlu0 %2544
          %2546 = vset.pattern.permute.xlu0 2
          %2547 = vperm.xlu0 %2546, %v1843
          %v2548 = vpop.permute.xlu0 %2547
          %2549 = vset.pattern.permute.xlu0 2
          %2550 = vperm.xlu0 %2549, %v1848
          %v2551 = vpop.permute.xlu0 %2550
          %2552 = vset.pattern.permute.xlu0 2
          %2553 = vperm.xlu0 %2552, %v1853
          %v2554 = vpop.permute.xlu0 %2553
          %2555 = vset.pattern.permute.xlu0 2
          %2556 = vperm.xlu0 %2555, %v1858
          %v2557 = vpop.permute.xlu0 %2556
          %2558 = vset.pattern.permute.xlu0 2
          %2559 = vperm.xlu0 %2558, %v1863
          %v2560 = vpop.permute.xlu0 %2559
          %2561 = vset.pattern.permute.xlu0 2
          %2562 = vperm.xlu0 %2561, %v1868
          %v2563 = vpop.permute.xlu0 %2562
          %2564 = vset.pattern.permute.xlu0 2
          %2565 = vperm.xlu0 %2564, %v1873
          %v2566 = vpop.permute.xlu0 %2565
          %2567 = vset.pattern.permute.xlu0 2
          %2568 = vperm.xlu0 %2567, %v1878
          %v2569 = vpop.permute.xlu0 %2568
          %2570 = vset.pattern.permute.xlu0 2
          %2571 = vperm.xlu0 %2570, %v1883
          %v2572 = vpop.permute.xlu0 %2571
          %2573 = vset.pattern.permute.xlu0 2
          %2574 = vperm.xlu0 %2573, %v1888
          %v2575 = vpop.permute.xlu0 %2574
          %2576 = vset.pattern.permute.xlu0 2
          %2577 = vperm.xlu0 %2576, %v1893
          %v2578 = vpop.permute.xlu0 %2577
          %2579 = vset.pattern.permute.xlu0 2
          %2580 = vperm.xlu0 %2579, %v1898
          %v2581 = vpop.permute.xlu0 %2580
          %2582 = vset.pattern.permute.xlu0 2
          %2583 = vperm.xlu0 %2582, %v1903
          %v2584 = vpop.permute.xlu0 %2583
          %2585 = vset.pattern.permute.xlu0 2
          %2586 = vperm.xlu0 %2585, %v1908
          %v2587 = vpop.permute.xlu0 %2586
          %2588 = vset.pattern.permute.xlu0 2
          %2589 = vperm.xlu0 %2588, %v1913
          %v2590 = vpop.permute.xlu0 %2589
          %2591 = vset.pattern.permute.xlu0 2
          %2592 = vperm.xlu0 %2591, %v1918
          %v2593 = vpop.permute.xlu0 %2592
          %2594 = vset.pattern.permute.xlu0 2
          %2595 = vperm.xlu0 %2594, %v1923
          %v2596 = vpop.permute.xlu0 %2595
          %2597 = vset.pattern.permute.xlu0 2
          %2598 = vperm.xlu0 %2597, %v1928
          %v2599 = vpop.permute.xlu0 %2598
          %2600 = vset.pattern.permute.xlu0 2
          %2601 = vperm.xlu0 %2600, %v1933
          %v2602 = vpop.permute.xlu0 %2601
          %2603 = vset.pattern.permute.xlu0 2
          %2604 = vperm.xlu0 %2603, %v1938
          %v2605 = vpop.permute.xlu0 %2604
          %2606 = vset.pattern.permute.xlu0 2
          %2607 = vperm.xlu0 %2606, %v1943
          %v2608 = vpop.permute.xlu0 %2607
          %2609 = vset.pattern.permute.xlu0 2
          %2610 = vperm.xlu0 %2609, %v1948
          %v2611 = vpop.permute.xlu0 %2610
          %2612 = vset.pattern.permute.xlu0 2
          %2613 = vperm.xlu0 %2612, %v1953
          %v2614 = vpop.permute.xlu0 %2613
          %2615 = vset.pattern.permute.xlu0 2
          %2616 = vperm.xlu0 %2615, %v1958
          %v2617 = vpop.permute.xlu0 %2616
          %2618 = vset.pattern.permute.xlu0 2
          %2619 = vperm.xlu0 %2618, %v1963
          %v2620 = vpop.permute.xlu0 %2619
          %2621 = vset.pattern.permute.xlu0 2
          %2622 = vperm.xlu0 %2621, %v1968
          %v2623 = vpop.permute.xlu0 %2622
          %2624 = vset.pattern.permute.xlu0 2
          %2625 = vperm.xlu0 %2624, %v1973
          %v2626 = vpop.permute.xlu0 %2625
          %2627 = vset.pattern.permute.xlu0 2
          %2628 = vperm.xlu0 %2627, %v1978
          %v2629 = vpop.permute.xlu0 %2628
          %2630 = vset.pattern.permute.xlu0 2
          %2631 = vperm.xlu0 %2630, %v1983
          %v2632 = vpop.permute.xlu0 %2631
          %v2633 = vlaneseq
          %v2634 = vshrl.u32 %v2633, 7
          %v2635 = vsub.s32 %v2115, %v2634
          %v2636 = vrot.slane %v2539, %v2635
          %v2637 = vlaneseq
          %v2638 = vshrl.u32 %v2637, 7
          %v2639 = vsub.s32 %v2120, %v2638
          %v2640 = vrot.slane %v2542, %v2639
          %v2641 = vsel %vm2125, %v2640, %v2636
          %v2642 = vlaneseq
          %v2643 = vshrl.u32 %v2642, 7
          %v2644 = vsub.s32 %v2115, %v2643
          %v2645 = vrot.slane %v2545, %v2644
          %v2646 = vlaneseq
          %v2647 = vshrl.u32 %v2646, 7
          %v2648 = vsub.s32 %v2120, %v2647
          %v2649 = vrot.slane %v2548, %v2648
          %v2650 = vsel %vm2125, %v2649, %v2645
          %v2651 = vlaneseq
          %v2652 = vshrl.u32 %v2651, 7
          %v2653 = vsub.s32 %v2115, %v2652
          %v2654 = vrot.slane %v2551, %v2653
          %v2655 = vlaneseq
          %v2656 = vshrl.u32 %v2655, 7
          %v2657 = vsub.s32 %v2120, %v2656
          %v2658 = vrot.slane %v2554, %v2657
          %v2659 = vsel %vm2125, %v2658, %v2654
          %v2660 = vlaneseq
          %v2661 = vshrl.u32 %v2660, 7
          %v2662 = vsub.s32 %v2115, %v2661
          %v2663 = vrot.slane %v2557, %v2662
          %v2664 = vlaneseq
          %v2665 = vshrl.u32 %v2664, 7
          %v2666 = vsub.s32 %v2120, %v2665
          %v2667 = vrot.slane %v2560, %v2666
          %v2668 = vsel %vm2125, %v2667, %v2663
          %v2669 = vlaneseq
          %v2670 = vshrl.u32 %v2669, 7
          %v2671 = vsub.s32 %v2115, %v2670
          %v2672 = vrot.slane %v2563, %v2671
          %v2673 = vlaneseq
          %v2674 = vshrl.u32 %v2673, 7
          %v2675 = vsub.s32 %v2120, %v2674
          %v2676 = vrot.slane %v2566, %v2675
          %v2677 = vsel %vm2125, %v2676, %v2672
          %v2678 = vlaneseq
          %v2679 = vshrl.u32 %v2678, 7
          %v2680 = vsub.s32 %v2115, %v2679
          %v2681 = vrot.slane %v2569, %v2680
          %v2682 = vlaneseq
          %v2683 = vshrl.u32 %v2682, 7
          %v2684 = vsub.s32 %v2120, %v2683
          %v2685 = vrot.slane %v2572, %v2684
          %v2686 = vsel %vm2125, %v2685, %v2681
          %v2687 = vlaneseq
          %v2688 = vshrl.u32 %v2687, 7
          %v2689 = vsub.s32 %v2115, %v2688
          %v2690 = vrot.slane %v2575, %v2689
          %v2691 = vlaneseq
          %v2692 = vshrl.u32 %v2691, 7
          %v2693 = vsub.s32 %v2120, %v2692
          %v2694 = vrot.slane %v2578, %v2693
          %v2695 = vsel %vm2125, %v2694, %v2690
          %v2696 = vlaneseq
          %v2697 = vshrl.u32 %v2696, 7
          %v2698 = vsub.s32 %v2115, %v2697
          %v2699 = vrot.slane %v2581, %v2698
          %v2700 = vlaneseq
          %v2701 = vshrl.u32 %v2700, 7
          %v2702 = vsub.s32 %v2120, %v2701
          %v2703 = vrot.slane %v2584, %v2702
          %v2704 = vsel %vm2125, %v2703, %v2699
          %v2705 = vlaneseq
          %v2706 = vshrl.u32 %v2705, 7
          %v2707 = vsub.s32 %v2115, %v2706
          %v2708 = vrot.slane %v2587, %v2707
          %v2709 = vlaneseq
          %v2710 = vshrl.u32 %v2709, 7
          %v2711 = vsub.s32 %v2120, %v2710
          %v2712 = vrot.slane %v2590, %v2711
          %v2713 = vsel %vm2125, %v2712, %v2708
          %v2714 = vlaneseq
          %v2715 = vshrl.u32 %v2714, 7
          %v2716 = vsub.s32 %v2115, %v2715
          %v2717 = vrot.slane %v2593, %v2716
          %v2718 = vlaneseq
          %v2719 = vshrl.u32 %v2718, 7
          %v2720 = vsub.s32 %v2120, %v2719
          %v2721 = vrot.slane %v2596, %v2720
          %v2722 = vsel %vm2125, %v2721, %v2717
          %v2723 = vlaneseq
          %v2724 = vshrl.u32 %v2723, 7
          %v2725 = vsub.s32 %v2115, %v2724
          %v2726 = vrot.slane %v2599, %v2725
          %v2727 = vlaneseq
          %v2728 = vshrl.u32 %v2727, 7
          %v2729 = vsub.s32 %v2120, %v2728
          %v2730 = vrot.slane %v2602, %v2729
          %v2731 = vsel %vm2125, %v2730, %v2726
          %v2732 = vlaneseq
          %v2733 = vshrl.u32 %v2732, 7
          %v2734 = vsub.s32 %v2115, %v2733
          %v2735 = vrot.slane %v2605, %v2734
          %v2736 = vlaneseq
          %v2737 = vshrl.u32 %v2736, 7
          %v2738 = vsub.s32 %v2120, %v2737
          %v2739 = vrot.slane %v2608, %v2738
          %v2740 = vsel %vm2125, %v2739, %v2735
          %v2741 = vlaneseq
          %v2742 = vshrl.u32 %v2741, 7
          %v2743 = vsub.s32 %v2115, %v2742
          %v2744 = vrot.slane %v2611, %v2743
          %v2745 = vlaneseq
          %v2746 = vshrl.u32 %v2745, 7
          %v2747 = vsub.s32 %v2120, %v2746
          %v2748 = vrot.slane %v2614, %v2747
          %v2749 = vsel %vm2125, %v2748, %v2744
          %v2750 = vlaneseq
          %v2751 = vshrl.u32 %v2750, 7
          %v2752 = vsub.s32 %v2115, %v2751
          %v2753 = vrot.slane %v2617, %v2752
          %v2754 = vlaneseq
          %v2755 = vshrl.u32 %v2754, 7
          %v2756 = vsub.s32 %v2120, %v2755
          %v2757 = vrot.slane %v2620, %v2756
          %v2758 = vsel %vm2125, %v2757, %v2753
          %v2759 = vlaneseq
          %v2760 = vshrl.u32 %v2759, 7
          %v2761 = vsub.s32 %v2115, %v2760
          %v2762 = vrot.slane %v2623, %v2761
          %v2763 = vlaneseq
          %v2764 = vshrl.u32 %v2763, 7
          %v2765 = vsub.s32 %v2120, %v2764
          %v2766 = vrot.slane %v2626, %v2765
          %v2767 = vsel %vm2125, %v2766, %v2762
          %v2768 = vlaneseq
          %v2769 = vshrl.u32 %v2768, 7
          %v2770 = vsub.s32 %v2115, %v2769
          %v2771 = vrot.slane %v2629, %v2770
          %v2772 = vlaneseq
          %v2773 = vshrl.u32 %v2772, 7
          %v2774 = vsub.s32 %v2120, %v2773
          %v2775 = vrot.slane %v2632, %v2774
          %v2776 = vsel %vm2125, %v2775, %v2771
          %v2777 = vsel %vm2262, %v2650, %v2641
          %v2778 = vsel %vm2264, %v2659, %v2777
          %v2779 = vsel %vm2266, %v2668, %v2778
          %v2780 = vsel %vm2268, %v2677, %v2779
          %v2781 = vsel %vm2270, %v2686, %v2780
          %v2782 = vsel %vm2272, %v2695, %v2781
          %v2783 = vsel %vm2274, %v2704, %v2782
          %v2784 = vsel %vm2262, %v2722, %v2713
          %v2785 = vsel %vm2264, %v2731, %v2784
          %v2786 = vsel %vm2266, %v2740, %v2785
          %v2787 = vsel %vm2268, %v2749, %v2786
          %v2788 = vsel %vm2270, %v2758, %v2787
          %v2789 = vsel %vm2272, %v2767, %v2788
          %v2790 = vsel %vm2274, %v2776, %v2789
          %2791 = vset.pattern.permute.xlu0 3
          %2792 = vperm.xlu0 %2791, %v1828
          %v2793 = vpop.permute.xlu0 %2792
          %2794 = vset.pattern.permute.xlu0 3
          %2795 = vperm.xlu0 %2794, %v1833
          %v2796 = vpop.permute.xlu0 %2795
          %2797 = vset.pattern.permute.xlu0 3
          %2798 = vperm.xlu0 %2797, %v1838
          %v2799 = vpop.permute.xlu0 %2798
          %2800 = vset.pattern.permute.xlu0 3
          %2801 = vperm.xlu0 %2800, %v1843
          %v2802 = vpop.permute.xlu0 %2801
          %2803 = vset.pattern.permute.xlu0 3
          %2804 = vperm.xlu0 %2803, %v1848
          %v2805 = vpop.permute.xlu0 %2804
          %2806 = vset.pattern.permute.xlu0 3
          %2807 = vperm.xlu0 %2806, %v1853
          %v2808 = vpop.permute.xlu0 %2807
          %2809 = vset.pattern.permute.xlu0 3
          %2810 = vperm.xlu0 %2809, %v1858
          %v2811 = vpop.permute.xlu0 %2810
          %2812 = vset.pattern.permute.xlu0 3
          %2813 = vperm.xlu0 %2812, %v1863
          %v2814 = vpop.permute.xlu0 %2813
          %2815 = vset.pattern.permute.xlu0 3
          %2816 = vperm.xlu0 %2815, %v1868
          %v2817 = vpop.permute.xlu0 %2816
          %2818 = vset.pattern.permute.xlu0 3
          %2819 = vperm.xlu0 %2818, %v1873
          %v2820 = vpop.permute.xlu0 %2819
          %2821 = vset.pattern.permute.xlu0 3
          %2822 = vperm.xlu0 %2821, %v1878
          %v2823 = vpop.permute.xlu0 %2822
          %2824 = vset.pattern.permute.xlu0 3
          %2825 = vperm.xlu0 %2824, %v1883
          %v2826 = vpop.permute.xlu0 %2825
          %2827 = vset.pattern.permute.xlu0 3
          %2828 = vperm.xlu0 %2827, %v1888
          %v2829 = vpop.permute.xlu0 %2828
          %2830 = vset.pattern.permute.xlu0 3
          %2831 = vperm.xlu0 %2830, %v1893
          %v2832 = vpop.permute.xlu0 %2831
          %2833 = vset.pattern.permute.xlu0 3
          %2834 = vperm.xlu0 %2833, %v1898
          %v2835 = vpop.permute.xlu0 %2834
          %2836 = vset.pattern.permute.xlu0 3
          %2837 = vperm.xlu0 %2836, %v1903
          %v2838 = vpop.permute.xlu0 %2837
          %2839 = vset.pattern.permute.xlu0 3
          %2840 = vperm.xlu0 %2839, %v1908
          %v2841 = vpop.permute.xlu0 %2840
          %2842 = vset.pattern.permute.xlu0 3
          %2843 = vperm.xlu0 %2842, %v1913
          %v2844 = vpop.permute.xlu0 %2843
          %2845 = vset.pattern.permute.xlu0 3
          %2846 = vperm.xlu0 %2845, %v1918
          %v2847 = vpop.permute.xlu0 %2846
          %2848 = vset.pattern.permute.xlu0 3
          %2849 = vperm.xlu0 %2848, %v1923
          %v2850 = vpop.permute.xlu0 %2849
          %2851 = vset.pattern.permute.xlu0 3
          %2852 = vperm.xlu0 %2851, %v1928
          %v2853 = vpop.permute.xlu0 %2852
          %2854 = vset.pattern.permute.xlu0 3
          %2855 = vperm.xlu0 %2854, %v1933
          %v2856 = vpop.permute.xlu0 %2855
          %2857 = vset.pattern.permute.xlu0 3
          %2858 = vperm.xlu0 %2857, %v1938
          %v2859 = vpop.permute.xlu0 %2858
          %2860 = vset.pattern.permute.xlu0 3
          %2861 = vperm.xlu0 %2860, %v1943
          %v2862 = vpop.permute.xlu0 %2861
          %2863 = vset.pattern.permute.xlu0 3
          %2864 = vperm.xlu0 %2863, %v1948
          %v2865 = vpop.permute.xlu0 %2864
          %2866 = vset.pattern.permute.xlu0 3
          %2867 = vperm.xlu0 %2866, %v1953
          %v2868 = vpop.permute.xlu0 %2867
          %2869 = vset.pattern.permute.xlu0 3
          %2870 = vperm.xlu0 %2869, %v1958
          %v2871 = vpop.permute.xlu0 %2870
          %2872 = vset.pattern.permute.xlu0 3
          %2873 = vperm.xlu0 %2872, %v1963
          %v2874 = vpop.permute.xlu0 %2873
          %2875 = vset.pattern.permute.xlu0 3
          %2876 = vperm.xlu0 %2875, %v1968
          %v2877 = vpop.permute.xlu0 %2876
          %2878 = vset.pattern.permute.xlu0 3
          %2879 = vperm.xlu0 %2878, %v1973
          %v2880 = vpop.permute.xlu0 %2879
          %2881 = vset.pattern.permute.xlu0 3
          %2882 = vperm.xlu0 %2881, %v1978
          %v2883 = vpop.permute.xlu0 %2882
          %2884 = vset.pattern.permute.xlu0 3
          %2885 = vperm.xlu0 %2884, %v1983
          %v2886 = vpop.permute.xlu0 %2885
          %v2887 = vlaneseq
          %v2888 = vshrl.u32 %v2887, 7
          %v2889 = vsub.s32 %v2115, %v2888
          %v2890 = vrot.slane %v2793, %v2889
          %v2891 = vlaneseq
          %v2892 = vshrl.u32 %v2891, 7
          %v2893 = vsub.s32 %v2120, %v2892
          %v2894 = vrot.slane %v2796, %v2893
          %v2895 = vsel %vm2125, %v2894, %v2890
          %v2896 = vlaneseq
          %v2897 = vshrl.u32 %v2896, 7
          %v2898 = vsub.s32 %v2115, %v2897
          %v2899 = vrot.slane %v2799, %v2898
          %v2900 = vlaneseq
          %v2901 = vshrl.u32 %v2900, 7
          %v2902 = vsub.s32 %v2120, %v2901
          %v2903 = vrot.slane %v2802, %v2902
          %v2904 = vsel %vm2125, %v2903, %v2899
          %v2905 = vlaneseq
          %v2906 = vshrl.u32 %v2905, 7
          %v2907 = vsub.s32 %v2115, %v2906
          %v2908 = vrot.slane %v2805, %v2907
          %v2909 = vlaneseq
          %v2910 = vshrl.u32 %v2909, 7
          %v2911 = vsub.s32 %v2120, %v2910
          %v2912 = vrot.slane %v2808, %v2911
          %v2913 = vsel %vm2125, %v2912, %v2908
          %v2914 = vlaneseq
          %v2915 = vshrl.u32 %v2914, 7
          %v2916 = vsub.s32 %v2115, %v2915
          %v2917 = vrot.slane %v2811, %v2916
          %v2918 = vlaneseq
          %v2919 = vshrl.u32 %v2918, 7
          %v2920 = vsub.s32 %v2120, %v2919
          %v2921 = vrot.slane %v2814, %v2920
          %v2922 = vsel %vm2125, %v2921, %v2917
          %v2923 = vlaneseq
          %v2924 = vshrl.u32 %v2923, 7
          %v2925 = vsub.s32 %v2115, %v2924
          %v2926 = vrot.slane %v2817, %v2925
          %v2927 = vlaneseq
          %v2928 = vshrl.u32 %v2927, 7
          %v2929 = vsub.s32 %v2120, %v2928
          %v2930 = vrot.slane %v2820, %v2929
          %v2931 = vsel %vm2125, %v2930, %v2926
          %v2932 = vlaneseq
          %v2933 = vshrl.u32 %v2932, 7
          %v2934 = vsub.s32 %v2115, %v2933
          %v2935 = vrot.slane %v2823, %v2934
          %v2936 = vlaneseq
          %v2937 = vshrl.u32 %v2936, 7
          %v2938 = vsub.s32 %v2120, %v2937
          %v2939 = vrot.slane %v2826, %v2938
          %v2940 = vsel %vm2125, %v2939, %v2935
          %v2941 = vlaneseq
          %v2942 = vshrl.u32 %v2941, 7
          %v2943 = vsub.s32 %v2115, %v2942
          %v2944 = vrot.slane %v2829, %v2943
          %v2945 = vlaneseq
          %v2946 = vshrl.u32 %v2945, 7
          %v2947 = vsub.s32 %v2120, %v2946
          %v2948 = vrot.slane %v2832, %v2947
          %v2949 = vsel %vm2125, %v2948, %v2944
          %v2950 = vlaneseq
          %v2951 = vshrl.u32 %v2950, 7
          %v2952 = vsub.s32 %v2115, %v2951
          %v2953 = vrot.slane %v2835, %v2952
          %v2954 = vlaneseq
          %v2955 = vshrl.u32 %v2954, 7
          %v2956 = vsub.s32 %v2120, %v2955
          %v2957 = vrot.slane %v2838, %v2956
          %v2958 = vsel %vm2125, %v2957, %v2953
          %v2959 = vlaneseq
          %v2960 = vshrl.u32 %v2959, 7
          %v2961 = vsub.s32 %v2115, %v2960
          %v2962 = vrot.slane %v2841, %v2961
          %v2963 = vlaneseq
          %v2964 = vshrl.u32 %v2963, 7
          %v2965 = vsub.s32 %v2120, %v2964
          %v2966 = vrot.slane %v2844, %v2965
          %v2967 = vsel %vm2125, %v2966, %v2962
          %v2968 = vlaneseq
          %v2969 = vshrl.u32 %v2968, 7
          %v2970 = vsub.s32 %v2115, %v2969
          %v2971 = vrot.slane %v2847, %v2970
          %v2972 = vlaneseq
          %v2973 = vshrl.u32 %v2972, 7
          %v2974 = vsub.s32 %v2120, %v2973
          %v2975 = vrot.slane %v2850, %v2974
          %v2976 = vsel %vm2125, %v2975, %v2971
          %v2977 = vlaneseq
          %v2978 = vshrl.u32 %v2977, 7
          %v2979 = vsub.s32 %v2115, %v2978
          %v2980 = vrot.slane %v2853, %v2979
          %v2981 = vlaneseq
          %v2982 = vshrl.u32 %v2981, 7
          %v2983 = vsub.s32 %v2120, %v2982
          %v2984 = vrot.slane %v2856, %v2983
          %v2985 = vsel %vm2125, %v2984, %v2980
          %v2986 = vlaneseq
          %v2987 = vshrl.u32 %v2986, 7
          %v2988 = vsub.s32 %v2115, %v2987
          %v2989 = vrot.slane %v2859, %v2988
          %v2990 = vlaneseq
          %v2991 = vshrl.u32 %v2990, 7
          %v2992 = vsub.s32 %v2120, %v2991
          %v2993 = vrot.slane %v2862, %v2992
          %v2994 = vsel %vm2125, %v2993, %v2989
          %v2995 = vlaneseq
          %v2996 = vshrl.u32 %v2995, 7
          %v2997 = vsub.s32 %v2115, %v2996
          %v2998 = vrot.slane %v2865, %v2997
          %v2999 = vlaneseq
          %v3000 = vshrl.u32 %v2999, 7
          %v3001 = vsub.s32 %v2120, %v3000
          %v3002 = vrot.slane %v2868, %v3001
          %v3003 = vsel %vm2125, %v3002, %v2998
          %v3004 = vlaneseq
          %v3005 = vshrl.u32 %v3004, 7
          %v3006 = vsub.s32 %v2115, %v3005
          %v3007 = vrot.slane %v2871, %v3006
          %v3008 = vlaneseq
          %v3009 = vshrl.u32 %v3008, 7
          %v3010 = vsub.s32 %v2120, %v3009
          %v3011 = vrot.slane %v2874, %v3010
          %v3012 = vsel %vm2125, %v3011, %v3007
          %v3013 = vlaneseq
          %v3014 = vshrl.u32 %v3013, 7
          %v3015 = vsub.s32 %v2115, %v3014
          %v3016 = vrot.slane %v2877, %v3015
          %v3017 = vlaneseq
          %v3018 = vshrl.u32 %v3017, 7
          %v3019 = vsub.s32 %v2120, %v3018
          %v3020 = vrot.slane %v2880, %v3019
          %v3021 = vsel %vm2125, %v3020, %v3016
          %v3022 = vlaneseq
          %v3023 = vshrl.u32 %v3022, 7
          %v3024 = vsub.s32 %v2115, %v3023
          %v3025 = vrot.slane %v2883, %v3024
          %v3026 = vlaneseq
          %v3027 = vshrl.u32 %v3026, 7
          %v3028 = vsub.s32 %v2120, %v3027
          %v3029 = vrot.slane %v2886, %v3028
          %v3030 = vsel %vm2125, %v3029, %v3025
          %v3031 = vsel %vm2262, %v2904, %v2895
          %v3032 = vsel %vm2264, %v2913, %v3031
          %v3033 = vsel %vm2266, %v2922, %v3032
          %v3034 = vsel %vm2268, %v2931, %v3033
          %v3035 = vsel %vm2270, %v2940, %v3034
          %v3036 = vsel %vm2272, %v2949, %v3035
          %v3037 = vsel %vm2274, %v2958, %v3036
          %v3038 = vsel %vm2262, %v2976, %v2967
          %v3039 = vsel %vm2264, %v2985, %v3038
          %v3040 = vsel %vm2266, %v2994, %v3039
          %v3041 = vsel %vm2268, %v3003, %v3040
          %v3042 = vsel %vm2270, %v3012, %v3041
          %v3043 = vsel %vm2272, %v3021, %v3042
          %v3044 = vsel %vm2274, %v3030, %v3043
          %v3045 = vld [vmem:[%s6] sm:$0xff]
          %v3046 = vld [vmem:[%s6 + $0x8] sm:$0xff]
          %vm3047 = vcmask 130048
          %v3048 = vsel %vm3047, %v2275, 0
          %v3050 = vsel %vm3047, %v2282, 0
          %v3052 = vsel %vm3047, %v2529, 0
          %v3054 = vsel %vm3047, %v2536, 0
          %v3056 = vsel %vm3047, %v2783, 0
          %v3058 = vsel %vm3047, %v2790, 0
          %v3060 = vsel %vm3047, %v3037, 0
          %v3062 = vsel %vm3047, %v3044, 0
          %3064 = vmatprep.subr.mxu0 0.0
          %3065 = vmatpush1.msra.mxu0 %v3045
          %3066 = vmatprep.subr.mxu0 0.0
          %3067 = vmatpush1.msra.mxu0 %v3046
          %3068 = vmatprep.subr.mxu0 0.0
          %3069 = vmatpush1.msra.mxu0 0.0
          %3070 = vmatprep.subr.mxu0 0.0
          %3071 = vmatpush1.msra.mxu0 0.0
          %3072 = vmatprep.subr.mxu0 0.0
          %3073 = vmatpush1.msra.mxu0 0.0
          %3074 = vmatprep.subr.mxu0 0.0
          %3075 = vmatpush1.msra.mxu0 0.0
          %3076 = vmatprep.subr.mxu0 0.0
          %3077 = vmatpush1.msra.mxu0 0.0
          %3078 = vmatprep.subr.mxu0 0.0
          %3079 = vmatpush1.msra.mxu0 0.0
          %3080 = vmatprep.subr.mxu0 0.0
          %3081 = vmatpush1.msra.mxu0 0.0
          %3082 = vmatprep.subr.mxu0 0.0
          %3083 = vmatpush1.msra.mxu0 0.0
          %3084 = vmatprep.subr.mxu0 0.0
          %3085 = vmatpush1.msra.mxu0 0.0
          %3086 = vmatprep.subr.mxu0 0.0
          %3087 = vmatpush1.msra.mxu0 0.0
          %3088 = vmatprep.subr.mxu0 0.0
          %3089 = vmatpush1.msra.mxu0 0.0
          %3090 = vmatprep.subr.mxu0 0.0
          %3091 = vmatpush1.msra.mxu0 0.0
          %3092 = vmatprep.subr.mxu0 0.0
          %3093 = vmatpush1.msra.mxu0 0.0
          %3094 = vmatprep.subr.mxu0 0.0
          %3095 = vmatpush1.msra.mxu0 0.0
          %3096 = vmatprep.subr.mxu0 0.0
          %3097 = vmatpush1.msra.mxu0 0.0
          %3098 = vmatprep.subr.mxu0 0.0
          %3099 = vmatpush1.msra.mxu0 0.0
          %3100 = vmatprep.subr.mxu0 0.0
          %3101 = vmatpush1.msra.mxu0 0.0
          %3102 = vmatprep.subr.mxu0 0.0
          %3103 = vmatpush1.msra.mxu0 0.0
          %3104 = vmatprep.subr.mxu0 0.0
          %3105 = vmatpush1.msra.mxu0 0.0
          %3106 = vmatprep.subr.mxu0 0.0
          %3107 = vmatpush1.msra.mxu0 0.0
          %3108 = vmatprep.subr.mxu0 0.0
          %3109 = vmatpush1.msra.mxu0 0.0
          %3110 = vmatprep.subr.mxu0 0.0
          %3111 = vmatpush1.msra.mxu0 0.0
          %3112 = vmatprep.subr.mxu0 0.0
          %3113 = vmatpush1.msra.mxu0 0.0
          %3114 = vmatprep.subr.mxu0 0.0
          %3115 = vmatpush1.msra.mxu0 0.0
          %3116 = vmatprep.subr.mxu0 0.0
          %3117 = vmatpush1.msra.mxu0 0.0
          %3118 = vmatprep.subr.mxu0 0.0
          %3119 = vmatpush1.msra.mxu0 0.0
          %3120 = vmatprep.subr.mxu0 0.0
          %3121 = vmatpush1.msra.mxu0 0.0
          %3122 = vmatprep.subr.mxu0 0.0
          %3123 = vmatpush1.msra.mxu0 0.0
          %3124 = vmatprep.subr.mxu0 0.0
          %3125 = vmatpush1.msra.mxu0 0.0
          %3126 = vmatprep.subr.mxu0 0.0
          %3127 = vmatpush1.msra.mxu0 0.0
          %3128 = vmatprep.mubr.f32.mxu0 0.0
          %3129 = vmatmul.mubr.f32.gmra.mrb[0].mxu0 %v3048
          %v3130 = vpop.f32.mrb[0].mxu0
          %v3131 = vadd.f32 0.0, %v3130
          %v3132 = vpop.f32.mrb[0].mxu0
          %3133 = vmatprep.mubr.f32.mxu0 0.0
          %3134 = vmatmul.mubr.f32.gmra.mrb[0].mxu0 %v3050
          %v3135 = vpop.f32.mrb[0].mxu0
          %v3136 = vadd.f32 0.0, %v3135
          %v3137 = vpop.f32.mrb[0].mxu0
          %3138 = vmatprep.mubr.f32.mxu0 0.0
          %3139 = vmatmul.mubr.f32.gmra.mrb[0].mxu0 %v3052
          %v3140 = vpop.f32.mrb[0].mxu0
          %v3141 = vadd.f32 0.0, %v3140
          %v3142 = vpop.f32.mrb[0].mxu0
          %3143 = vmatprep.mubr.f32.mxu0 0.0
          %3144 = vmatmul.mubr.f32.gmra.mrb[0].mxu0 %v3054
          %v3145 = vpop.f32.mrb[0].mxu0
          %v3146 = vadd.f32 0.0, %v3145
          %v3147 = vpop.f32.mrb[0].mxu0
          %3148 = vmatprep.mubr.f32.mxu0 0.0
          %3149 = vmatmul.mubr.f32.gmra.mrb[0].mxu0 %v3056
          %v3150 = vpop.f32.mrb[0].mxu0
          %v3151 = vadd.f32 0.0, %v3150
          %v3152 = vpop.f32.mrb[0].mxu0
          %3153 = vmatprep.mubr.f32.mxu0 0.0
          %3154 = vmatmul.mubr.f32.gmra.mrb[0].mxu0 %v3058
          %v3155 = vpop.f32.mrb[0].mxu0
          %v3156 = vadd.f32 0.0, %v3155
          %v3157 = vpop.f32.mrb[0].mxu0
          %3158 = vmatprep.mubr.f32.mxu0 0.0
          %3159 = vmatmul.mubr.f32.gmra.mrb[0].mxu0 %v3060
          %v3160 = vpop.f32.mrb[0].mxu0
          %v3161 = vadd.f32 0.0, %v3160
          %v3162 = vpop.f32.mrb[0].mxu0
          %3163 = vmatprep.mubr.f32.mxu0 0.0
          %3164 = vmatmul.mubr.f32.gmra.mrb[0].mxu0 %v3062
          %v3165 = vpop.f32.mrb[0].mxu0
          %v3166 = vadd.f32 0.0, %v3165
          %v3167 = vpop.f32.mrb[0].mxu0
          %3168 = vdwg.mxu0
          %vm3169 = vcmask 523264
          %3170 = vst.msk [vmem:[#allocation3] sm:$0xff] %vm3169, %v3131
          %3171 = vst.msk [vmem:[#allocation3 + $0x8] sm:$0xff] %vm3169, %v3136
          %3172 = vst.msk [vmem:[#allocation3 + $0x10] sm:$0xff] %vm3169, %v3141
          %3173 = vst.msk [vmem:[#allocation3 + $0x18] sm:$0xff] %vm3169, %v3146
          %3174 = vst.msk [vmem:[#allocation3 + $0x20] sm:$0xff] %vm3169, %v3151
          %3175 = vst.msk [vmem:[#allocation3 + $0x28] sm:$0xff] %vm3169, %v3156
          %3176 = vst.msk [vmem:[#allocation3 + $0x30] sm:$0xff] %vm3169, %v3161
          %3177 = vst.msk [vmem:[#allocation3 + $0x38] sm:$0xff] %vm3169, %v3166
        $region52: #{tpu_custom_call.1} parent=47 // pred_fallthru
          _
        %v3178 = vld [vmem:[%s311] sm:$0xff]
        %v3179 = vld [vmem:[%s311 + $0x8] sm:$0xff]
        %v3180 = vld [vmem:[%s311 + $0x10] sm:$0xff]
        %v3181 = vld [vmem:[%s311 + $0x18] sm:$0xff]
        %v3182 = vld [vmem:[#allocation3] sm:$0xff]
        %v3183 = vld [vmem:[#allocation3 + $0x8] sm:$0xff]
        %vm3184 = vcmask 130048
        %v3186 = vsel %vm3184, %v3178, 0
        %v3189 = vsel %vm3184, %v3179, 0
        %v3192 = vsel %vm3184, %v3180, 0
        %v3195 = vsel %vm3184, %v3181, 0
        %3197 = vmatprep.subr.mxu0 0.0
        %3198 = vmatpush1.msra.mxu0 %v3182
        %3199 = vmatprep.subr.mxu0 0.0
        %3200 = vmatpush1.msra.mxu0 %v3183
        %3201 = vmatprep.subr.mxu0 0.0
        %3202 = vmatpush1.msra.mxu0 0.0
        %3203 = vmatprep.subr.mxu0 0.0
        %3204 = vmatpush1.msra.mxu0 0.0
        %3205 = vmatprep.subr.mxu0 0.0
        %3206 = vmatpush1.msra.mxu0 0.0
        %3207 = vmatprep.subr.mxu0 0.0
        %3208 = vmatpush1.msra.mxu0 0.0
        %3209 = vmatprep.subr.mxu0 0.0
        %3210 = vmatpush1.msra.mxu0 0.0
        %3211 = vmatprep.subr.mxu0 0.0
        %3212 = vmatpush1.msra.mxu0 0.0
        %3213 = vmatprep.subr.mxu0 0.0
        %3214 = vmatpush1.msra.mxu0 0.0
        %3215 = vmatprep.subr.mxu0 0.0
        %3216 = vmatpush1.msra.mxu0 0.0
        %3217 = vmatprep.subr.mxu0 0.0
        %3218 = vmatpush1.msra.mxu0 0.0
        %3219 = vmatprep.subr.mxu0 0.0
        %3220 = vmatpush1.msra.mxu0 0.0
        %3221 = vmatprep.subr.mxu0 0.0
        %3222 = vmatpush1.msra.mxu0 0.0
        %3223 = vmatprep.subr.mxu0 0.0
        %3224 = vmatpush1.msra.mxu0 0.0
        %3225 = vmatprep.subr.mxu0 0.0
        %3226 = vmatpush1.msra.mxu0 0.0
        %3227 = vmatprep.subr.mxu0 0.0
        %3228 = vmatpush1.msra.mxu0 0.0
        %3229 = vmatprep.subr.mxu0 0.0
        %3230 = vmatpush1.msra.mxu0 0.0
        %3231 = vmatprep.subr.mxu0 0.0
        %3232 = vmatpush1.msra.mxu0 0.0
        %3233 = vmatprep.subr.mxu0 0.0
        %3234 = vmatpush1.msra.mxu0 0.0
        %3235 = vmatprep.subr.mxu0 0.0
        %3236 = vmatpush1.msra.mxu0 0.0
        %3237 = vmatprep.subr.mxu0 0.0
        %3238 = vmatpush1.msra.mxu0 0.0
        %3239 = vmatprep.subr.mxu0 0.0
        %3240 = vmatpush1.msra.mxu0 0.0
        %3241 = vmatprep.subr.mxu0 0.0
        %3242 = vmatpush1.msra.mxu0 0.0
        %3243 = vmatprep.subr.mxu0 0.0
        %3244 = vmatpush1.msra.mxu0 0.0
        %3245 = vmatprep.subr.mxu0 0.0
        %3246 = vmatpush1.msra.mxu0 0.0
        %3247 = vmatprep.subr.mxu0 0.0
        %3248 = vmatpush1.msra.mxu0 0.0
        %3249 = vmatprep.subr.mxu0 0.0
        %3250 = vmatpush1.msra.mxu0 0.0
        %3251 = vmatprep.subr.mxu0 0.0
        %3252 = vmatpush1.msra.mxu0 0.0
        %3253 = vmatprep.subr.mxu0 0.0
        %3254 = vmatpush1.msra.mxu0 0.0
        %3255 = vmatprep.subr.mxu0 0.0
        %3256 = vmatpush1.msra.mxu0 0.0
        %3257 = vmatprep.subr.mxu0 0.0
        %3258 = vmatpush1.msra.mxu0 0.0
        %3259 = vmatprep.subr.mxu0 0.0
        %3260 = vmatpush1.msra.mxu0 0.0
        %3261 = vmatprep.mubr.f32.mxu0 0.0
        %3262 = vmatmul.mubr.f32.gmra.mrb[0].mxu0 %v3186
        %v3263 = vpop.f32.mrb[0].mxu0
        %v3264 = vadd.f32 0.0, %v3263
        %v3265 = vpop.f32.mrb[0].mxu0
        %3266 = vmatprep.mubr.f32.mxu0 0.0
        %3267 = vmatmul.mubr.f32.gmra.mrb[0].mxu0 %v3189
        %v3268 = vpop.f32.mrb[0].mxu0
        %v3269 = vadd.f32 0.0, %v3268
        %v3270 = vpop.f32.mrb[0].mxu0
        %3271 = vmatprep.mubr.f32.mxu0 0.0
        %3272 = vmatmul.mubr.f32.gmra.mrb[0].mxu0 %v3192
        %v3273 = vpop.f32.mrb[0].mxu0
        %v3274 = vadd.f32 0.0, %v3273
        %v3275 = vpop.f32.mrb[0].mxu0
        %3276 = vmatprep.mubr.f32.mxu0 0.0
        %3277 = vmatmul.mubr.f32.gmra.mrb[0].mxu0 %v3195
        %v3278 = vpop.f32.mrb[0].mxu0
        %v3279 = vadd.f32 0.0, %v3278
        %v3280 = vpop.f32.mrb[0].mxu0
        %3281 = vdwg.mxu0
        %vm3282 = vcmask 523264
        %3283 = vst.msk [vmem:[%s301] sm:$0xff] %vm3282, %v3264
        %3284 = vst.msk [vmem:[%s301 + $0x8] sm:$0xff] %vm3282, %v3269
        %3285 = vst.msk [vmem:[%s301 + $0x10] sm:$0xff] %vm3282, %v3274
        %3286 = vst.msk [vmem:[%s301 + $0x18] sm:$0xff] %vm3282, %v3279
        %v3287 = vld [vmem:[#allocation3 + $0x10] sm:$0xff]
        %v3288 = vld [vmem:[#allocation3 + $0x18] sm:$0xff]
        %3289 = vmatprep.subr.mxu0 0.0
        %3290 = vmatpush1.msra.mxu0 %v3287
        %3291 = vmatprep.subr.mxu0 0.0
        %3292 = vmatpush1.msra.mxu0 %v3288
        %3293 = vmatprep.subr.mxu0 0.0
        %3294 = vmatpush1.msra.mxu0 0.0
        %3295 = vmatprep.subr.mxu0 0.0
        %3296 = vmatpush1.msra.mxu0 0.0
        %3297 = vmatprep.subr.mxu0 0.0
        %3298 = vmatpush1.msra.mxu0 0.0
        %3299 = vmatprep.subr.mxu0 0.0
        %3300 = vmatpush1.msra.mxu0 0.0
        %3301 = vmatprep.subr.mxu0 0.0
        %3302 = vmatpush1.msra.mxu0 0.0
        %3303 = vmatprep.subr.mxu0 0.0
        %3304 = vmatpush1.msra.mxu0 0.0
        %3305 = vmatprep.subr.mxu0 0.0
        %3306 = vmatpush1.msra.mxu0 0.0
        %3307 = vmatprep.subr.mxu0 0.0
        %3308 = vmatpush1.msra.mxu0 0.0
        %3309 = vmatprep.subr.mxu0 0.0
        %3310 = vmatpush1.msra.mxu0 0.0
        %3311 = vmatprep.subr.mxu0 0.0
        %3312 = vmatpush1.msra.mxu0 0.0
        %3313 = vmatprep.subr.mxu0 0.0
        %3314 = vmatpush1.msra.mxu0 0.0
        %3315 = vmatprep.subr.mxu0 0.0
        %3316 = vmatpush1.msra.mxu0 0.0
        %3317 = vmatprep.subr.mxu0 0.0
        %3318 = vmatpush1.msra.mxu0 0.0
        %3319 = vmatprep.subr.mxu0 0.0
        %3320 = vmatpush1.msra.mxu0 0.0
        %3321 = vmatprep.subr.mxu0 0.0
        %3322 = vmatpush1.msra.mxu0 0.0
        %3323 = vmatprep.subr.mxu0 0.0
        %3324 = vmatpush1.msra.mxu0 0.0
        %3325 = vmatprep.subr.mxu0 0.0
        %3326 = vmatpush1.msra.mxu0 0.0
        %3327 = vmatprep.subr.mxu0 0.0
        %3328 = vmatpush1.msra.mxu0 0.0
        %3329 = vmatprep.subr.mxu0 0.0
        %3330 = vmatpush1.msra.mxu0 0.0
        %3331 = vmatprep.subr.mxu0 0.0
        %3332 = vmatpush1.msra.mxu0 0.0
        %3333 = vmatprep.subr.mxu0 0.0
        %3334 = vmatpush1.msra.mxu0 0.0
        %3335 = vmatprep.subr.mxu0 0.0
        %3336 = vmatpush1.msra.mxu0 0.0
        %3337 = vmatprep.subr.mxu0 0.0
        %3338 = vmatpush1.msra.mxu0 0.0
        %3339 = vmatprep.subr.mxu0 0.0
        %3340 = vmatpush1.msra.mxu0 0.0
        %3341 = vmatprep.subr.mxu0 0.0
        %3342 = vmatpush1.msra.mxu0 0.0
        %3343 = vmatprep.subr.mxu0 0.0
        %3344 = vmatpush1.msra.mxu0 0.0
        %3345 = vmatprep.subr.mxu0 0.0
        %3346 = vmatpush1.msra.mxu0 0.0
        %3347 = vmatprep.subr.mxu0 0.0
        %3348 = vmatpush1.msra.mxu0 0.0
        %3349 = vmatprep.subr.mxu0 0.0
        %3350 = vmatpush1.msra.mxu0 0.0
        %3351 = vmatprep.subr.mxu0 0.0
        %3352 = vmatpush1.msra.mxu0 0.0
        %3353 = vmatprep.mubr.f32.mxu0 0.0
        %3354 = vmatmul.mubr.f32.gmra.mrb[0].mxu0 %v3186
        %v3355 = vpop.f32.mrb[0].mxu0
        %v3356 = vadd.f32 0.0, %v3355
        %v3357 = vpop.f32.mrb[0].mxu0
        %3358 = vmatprep.mubr.f32.mxu0 0.0
        %3359 = vmatmul.mubr.f32.gmra.mrb[0].mxu0 %v3189
        %v3360 = vpop.f32.mrb[0].mxu0
        %v3361 = vadd.f32 0.0, %v3360
        %v3362 = vpop.f32.mrb[0].mxu0
        %3363 = vmatprep.mubr.f32.mxu0 0.0
        %3364 = vmatmul.mubr.f32.gmra.mrb[0].mxu0 %v3192
        %v3365 = vpop.f32.mrb[0].mxu0
        %v3366 = vadd.f32 0.0, %v3365
        %v3367 = vpop.f32.mrb[0].mxu0
        %3368 = vmatprep.mubr.f32.mxu0 0.0
        %3369 = vmatmul.mubr.f32.gmra.mrb[0].mxu0 %v3195
        %v3370 = vpop.f32.mrb[0].mxu0
        %v3371 = vadd.f32 0.0, %v3370
        %v3372 = vpop.f32.mrb[0].mxu0
        %3373 = vdwg.mxu0
        %s3374 = scalar_lea.vmem %s301, 32 [#allocation4]
        %3375 = vst.msk [vmem:[%s3374] sm:$0xff] %vm3282, %v3356
        %3376 = vst.msk [vmem:[%s3374 + $0x8] sm:$0xff] %vm3282, %v3361
        %3377 = vst.msk [vmem:[%s3374 + $0x10] sm:$0xff] %vm3282, %v3366
        %3378 = vst.msk [vmem:[%s3374 + $0x18] sm:$0xff] %vm3282, %v3371
        %v3379 = vld [vmem:[#allocation3 + $0x20] sm:$0xff]
        %v3380 = vld [vmem:[#allocation3 + $0x28] sm:$0xff]
        %3381 = vmatprep.subr.mxu0 0.0
        %3382 = vmatpush1.msra.mxu0 %v3379
        %3383 = vmatprep.subr.mxu0 0.0
        %3384 = vmatpush1.msra.mxu0 %v3380
        %3385 = vmatprep.subr.mxu0 0.0
        %3386 = vmatpush1.msra.mxu0 0.0
        %3387 = vmatprep.subr.mxu0 0.0
        %3388 = vmatpush1.msra.mxu0 0.0
        %3389 = vmatprep.subr.mxu0 0.0
        %3390 = vmatpush1.msra.mxu0 0.0
        %3391 = vmatprep.subr.mxu0 0.0
        %3392 = vmatpush1.msra.mxu0 0.0
        %3393 = vmatprep.subr.mxu0 0.0
        %3394 = vmatpush1.msra.mxu0 0.0
        %3395 = vmatprep.subr.mxu0 0.0
        %3396 = vmatpush1.msra.mxu0 0.0
        %3397 = vmatprep.subr.mxu0 0.0
        %3398 = vmatpush1.msra.mxu0 0.0
        %3399 = vmatprep.subr.mxu0 0.0
        %3400 = vmatpush1.msra.mxu0 0.0
        %3401 = vmatprep.subr.mxu0 0.0
        %3402 = vmatpush1.msra.mxu0 0.0
        %3403 = vmatprep.subr.mxu0 0.0
        %3404 = vmatpush1.msra.mxu0 0.0
        %3405 = vmatprep.subr.mxu0 0.0
        %3406 = vmatpush1.msra.mxu0 0.0
        %3407 = vmatprep.subr.mxu0 0.0
        %3408 = vmatpush1.msra.mxu0 0.0
        %3409 = vmatprep.subr.mxu0 0.0
        %3410 = vmatpush1.msra.mxu0 0.0
        %3411 = vmatprep.subr.mxu0 0.0
        %3412 = vmatpush1.msra.mxu0 0.0
        %3413 = vmatprep.subr.mxu0 0.0
        %3414 = vmatpush1.msra.mxu0 0.0
        %3415 = vmatprep.subr.mxu0 0.0
        %3416 = vmatpush1.msra.mxu0 0.0
        %3417 = vmatprep.subr.mxu0 0.0
        %3418 = vmatpush1.msra.mxu0 0.0
        %3419 = vmatprep.subr.mxu0 0.0
        %3420 = vmatpush1.msra.mxu0 0.0
        %3421 = vmatprep.subr.mxu0 0.0
        %3422 = vmatpush1.msra.mxu0 0.0
        %3423 = vmatprep.subr.mxu0 0.0
        %3424 = vmatpush1.msra.mxu0 0.0
        %3425 = vmatprep.subr.mxu0 0.0
        %3426 = vmatpush1.msra.mxu0 0.0
        %3427 = vmatprep.subr.mxu0 0.0
        %3428 = vmatpush1.msra.mxu0 0.0
        %3429 = vmatprep.subr.mxu0 0.0
        %3430 = vmatpush1.msra.mxu0 0.0
        %3431 = vmatprep.subr.mxu0 0.0
        %3432 = vmatpush1.msra.mxu0 0.0
        %3433 = vmatprep.subr.mxu0 0.0
        %3434 = vmatpush1.msra.mxu0 0.0
        %3435 = vmatprep.subr.mxu0 0.0
        %3436 = vmatpush1.msra.mxu0 0.0
        %3437 = vmatprep.subr.mxu0 0.0
        %3438 = vmatpush1.msra.mxu0 0.0
        %3439 = vmatprep.subr.mxu0 0.0
        %3440 = vmatpush1.msra.mxu0 0.0
        %3441 = vmatprep.subr.mxu0 0.0
        %3442 = vmatpush1.msra.mxu0 0.0
        %3443 = vmatprep.subr.mxu0 0.0
        %3444 = vmatpush1.msra.mxu0 0.0
        %3445 = vmatprep.mubr.f32.mxu0 0.0
        %3446 = vmatmul.mubr.f32.gmra.mrb[0].mxu0 %v3186
        %v3447 = vpop.f32.mrb[0].mxu0
        %v3448 = vadd.f32 0.0, %v3447
        %v3449 = vpop.f32.mrb[0].mxu0
        %3450 = vmatprep.mubr.f32.mxu0 0.0
        %3451 = vmatmul.mubr.f32.gmra.mrb[0].mxu0 %v3189
        %v3452 = vpop.f32.mrb[0].mxu0
        %v3453 = vadd.f32 0.0, %v3452
        %v3454 = vpop.f32.mrb[0].mxu0
        %3455 = vmatprep.mubr.f32.mxu0 0.0
        %3456 = vmatmul.mubr.f32.gmra.mrb[0].mxu0 %v3192
        %v3457 = vpop.f32.mrb[0].mxu0
        %v3458 = vadd.f32 0.0, %v3457
        %v3459 = vpop.f32.mrb[0].mxu0
        %3460 = vmatprep.mubr.f32.mxu0 0.0
        %3461 = vmatmul.mubr.f32.gmra.mrb[0].mxu0 %v3195
        %v3462 = vpop.f32.mrb[0].mxu0
        %v3463 = vadd.f32 0.0, %v3462
        %v3464 = vpop.f32.mrb[0].mxu0
        %3465 = vdwg.mxu0
        %s3466 = scalar_lea.vmem %s301, 64 [#allocation4]
        %3467 = vst.msk [vmem:[%s3466] sm:$0xff] %vm3282, %v3448
        %3468 = vst.msk [vmem:[%s3466 + $0x8] sm:$0xff] %vm3282, %v3453
        %3469 = vst.msk [vmem:[%s3466 + $0x10] sm:$0xff] %vm3282, %v3458
        %3470 = vst.msk [vmem:[%s3466 + $0x18] sm:$0xff] %vm3282, %v3463
        %v3471 = vld [vmem:[#allocation3 + $0x30] sm:$0xff]
        %v3472 = vld [vmem:[#allocation3 + $0x38] sm:$0xff]
        %3473 = vmatprep.subr.mxu0 0.0
        %3474 = vmatpush1.msra.mxu0 %v3471
        %3475 = vmatprep.subr.mxu0 0.0
        %3476 = vmatpush1.msra.mxu0 %v3472
        %3477 = vmatprep.subr.mxu0 0.0
        %3478 = vmatpush1.msra.mxu0 0.0
        %3479 = vmatprep.subr.mxu0 0.0
        %3480 = vmatpush1.msra.mxu0 0.0
        %3481 = vmatprep.subr.mxu0 0.0
        %3482 = vmatpush1.msra.mxu0 0.0
        %3483 = vmatprep.subr.mxu0 0.0
        %3484 = vmatpush1.msra.mxu0 0.0
        %3485 = vmatprep.subr.mxu0 0.0
        %3486 = vmatpush1.msra.mxu0 0.0
        %3487 = vmatprep.subr.mxu0 0.0
        %3488 = vmatpush1.msra.mxu0 0.0
        %3489 = vmatprep.subr.mxu0 0.0
        %3490 = vmatpush1.msra.mxu0 0.0
        %3491 = vmatprep.subr.mxu0 0.0
        %3492 = vmatpush1.msra.mxu0 0.0
        %3493 = vmatprep.subr.mxu0 0.0
        %3494 = vmatpush1.msra.mxu0 0.0
        %3495 = vmatprep.subr.mxu0 0.0
        %3496 = vmatpush1.msra.mxu0 0.0
        %3497 = vmatprep.subr.mxu0 0.0
        %3498 = vmatpush1.msra.mxu0 0.0
        %3499 = vmatprep.subr.mxu0 0.0
        %3500 = vmatpush1.msra.mxu0 0.0
        %3501 = vmatprep.subr.mxu0 0.0
        %3502 = vmatpush1.msra.mxu0 0.0
        %3503 = vmatprep.subr.mxu0 0.0
        %3504 = vmatpush1.msra.mxu0 0.0
        %3505 = vmatprep.subr.mxu0 0.0
        %3506 = vmatpush1.msra.mxu0 0.0
        %3507 = vmatprep.subr.mxu0 0.0
        %3508 = vmatpush1.msra.mxu0 0.0
        %3509 = vmatprep.subr.mxu0 0.0
        %3510 = vmatpush1.msra.mxu0 0.0
        %3511 = vmatprep.subr.mxu0 0.0
        %3512 = vmatpush1.msra.mxu0 0.0
        %3513 = vmatprep.subr.mxu0 0.0
        %3514 = vmatpush1.msra.mxu0 0.0
        %3515 = vmatprep.subr.mxu0 0.0
        %3516 = vmatpush1.msra.mxu0 0.0
        %3517 = vmatprep.subr.mxu0 0.0
        %3518 = vmatpush1.msra.mxu0 0.0
        %3519 = vmatprep.subr.mxu0 0.0
        %3520 = vmatpush1.msra.mxu0 0.0
        %3521 = vmatprep.subr.mxu0 0.0
        %3522 = vmatpush1.msra.mxu0 0.0
        %3523 = vmatprep.subr.mxu0 0.0
        %3524 = vmatpush1.msra.mxu0 0.0
        %3525 = vmatprep.subr.mxu0 0.0
        %3526 = vmatpush1.msra.mxu0 0.0
        %3527 = vmatprep.subr.mxu0 0.0
        %3528 = vmatpush1.msra.mxu0 0.0
        %3529 = vmatprep.subr.mxu0 0.0
        %3530 = vmatpush1.msra.mxu0 0.0
        %3531 = vmatprep.subr.mxu0 0.0
        %3532 = vmatpush1.msra.mxu0 0.0
        %3533 = vmatprep.subr.mxu0 0.0
        %3534 = vmatpush1.msra.mxu0 0.0
        %3535 = vmatprep.subr.mxu0 0.0
        %3536 = vmatpush1.msra.mxu0 0.0
        %3537 = vmatprep.mubr.f32.mxu0 0.0
        %3538 = vmatmul.mubr.f32.gmra.mrb[0].mxu0 %v3186
        %v3539 = vpop.f32.mrb[0].mxu0
        %v3540 = vadd.f32 0.0, %v3539
        %v3541 = vpop.f32.mrb[0].mxu0
        %3542 = vmatprep.mubr.f32.mxu0 0.0
        %3543 = vmatmul.mubr.f32.gmra.mrb[0].mxu0 %v3189
        %v3544 = vpop.f32.mrb[0].mxu0
        %v3545 = vadd.f32 0.0, %v3544
        %v3546 = vpop.f32.mrb[0].mxu0
        %3547 = vmatprep.mubr.f32.mxu0 0.0
        %3548 = vmatmul.mubr.f32.gmra.mrb[0].mxu0 %v3192
        %v3549 = vpop.f32.mrb[0].mxu0
        %v3550 = vadd.f32 0.0, %v3549
        %v3551 = vpop.f32.mrb[0].mxu0
        %3552 = vmatprep.mubr.f32.mxu0 0.0
        %3553 = vmatmul.mubr.f32.gmra.mrb[0].mxu0 %v3195
        %v3554 = vpop.f32.mrb[0].mxu0
        %v3555 = vadd.f32 0.0, %v3554
        %v3556 = vpop.f32.mrb[0].mxu0
        %3557 = vdwg.mxu0
        %s3558 = scalar_lea.vmem %s301, 96 [#allocation4]
        %3559 = vst.msk [vmem:[%s3558] sm:$0xff] %vm3282, %v3540
        %3560 = vst.msk [vmem:[%s3558 + $0x8] sm:$0xff] %vm3282, %v3545
        %3561 = vst.msk [vmem:[%s3558 + $0x10] sm:$0xff] %vm3282, %v3550
        %3562 = vst.msk [vmem:[%s3558 + $0x18] sm:$0xff] %vm3282, %v3555
        %s3563 = sand.u32 %s200, 1
        %s3564 = scalar_lea.sflag [#allocation5], %s3563
        %s3565 = sand.u32 %s200, 1
        %s3566 = smul.addr %s3565, 128
        %s3567 = scalar_lea.vmem [#allocation4], %s3566
        // Predicated region
        $region53: #{tpu_custom_call.1} parent=47 // pred_check
          %p3568 = pneg %p210
        $region54: #{tpu_custom_call.1} parent=47 // pred_check_branch
          %3570 = sbr.rel (%p3568) target = $region56
        $region55: #{tpu_custom_call.1} parent=47 // pred_region
          #allocation7 [shape = 'u32[6]{0}', space=smem, size = 0x18, scoped, tag = 'DMA stride descriptor']
          %s3571 = smul.u32 4, %s26
          %s3573 = ssub.s32 2048, 2048
          %3574 = vsyncadd %s3564, %s3573
          %s3575 = smul.addr %s25, 32
          %s3576 = sadd.s32 %s3571, %s3575
          %s3577 = smul.addr %s3576, 128
          %s3578 = scalar_lea.hbm %s7, %s3577
          %s3580 = sshll.u32 1, 14
          %s3581 = sxor.u32 4294967295, %s3580
          %s3584 = sshll.u32 7, 18
          %s3585 = sxor.u32 4294967295, %s3584
          %s3586 = sand.u32 0, %s3585
          %s3588 = sor.u32 %s3586, 0
          %s3590 = sshll.u32 3, 24
          %s3591 = sxor.u32 4294967295, %s3590
          %s3592 = sand.u32 %s3588, %s3591
          %s3594 = sor.u32 %s3592, 0
          %s3595 = sshll.u32 %s3567, 4
          %s3596 = int_to_ptr.vmem [resolvable:$true] %s3595
          %3602 = sst [smem:[#allocation7]] 512
          %s3603 = scalar_lea.smem [#allocation7], 1
          %3604 = sst [smem:[%s3603]] 1024
          %s3605 = scalar_lea.smem [#allocation7], 2
          %3606 = sst [smem:[%s3605]] 4
          %s3607 = scalar_lea.smem [#allocation7], 3
          %3608 = sst [smem:[%s3607]] 128
          %s3609 = scalar_lea.smem [#allocation7], 4
          %3610 = sst [smem:[%s3609]] 128
          %s3611 = scalar_lea.smem [#allocation7], 5
          %3612 = sst [smem:[%s3611]] 8
          %3614 = dma.general %s3596, 2048, %s3578, %s3564, [#allocation6], [#allocation7], %s3594, 0
        $region56: #{tpu_custom_call.1} parent=47 // pred_fallthru
          _
      $region48: #{tpu_custom_call.1} parent=5 // pred_fallthru
        _
      %p3615 = scmp.le.s32.totalorder 2, %s16
      // Predicated region
      $region57: #{tpu_custom_call.1} parent=5 // pred_check
        %p3616 = pneg %p3615
      $region58: #{tpu_custom_call.1} parent=5 // pred_check_branch
        %3618 = sbr.rel (%p3616) target = $region60
      $region59: #{tpu_custom_call.1} parent=5 // pred_region
        %s3619 = ssub.s32 %s16, 2
        // Predicated region
        $region61: #{tpu_custom_call.1} parent=59 // pred_check
          %p3620 = pneg %p216
        $region62: #{tpu_custom_call.1} parent=59 // pred_check_branch
          %3622 = sbr.rel (%p3620) target = $region64
        $region63: #{tpu_custom_call.1} parent=59 // pred_region
          %s3623 = sand.u32 %s201, 1
          %s3624 = scalar_lea.sflag [#allocation5], %s3623
          %s3625 = sand.u32 %s201, 1
          %s3626 = smul.addr %s3625, 128
          %s3627 = scalar_lea.vmem [#allocation4], %s3626
          %3628 = dma.done %s3624, 2048
        $region64: #{tpu_custom_call.1} parent=59 // pred_fallthru
          _
      $region60: #{tpu_custom_call.1} parent=5 // pred_fallthru
        _
    $region6: #{tpu_custom_call.1} parent=1 // loop_footer
      %s20 = sadd.s32 1, %s16
    $region7: #{tpu_custom_call.1} parent=1 // loop_footer_branch
      %15 = sbr.rel target = $region3
    $region8: #{tpu_custom_call.1} parent=1 // loop_exit
      _
    %3629 = vsyncpa [#allocation5], 1
    %s3630 = scalar_lea.sflag [#allocation5], 1
    %3631 = vsyncpa %s3630, 1

</llo_original>
